<compile_context>
chip_gen: v7x
topology: tpu7x:2x2x1
jax: 0.10.0
libtpu: 0.0.40
codegen_flags: <defaults>
</compile_context>

<pallas_src>
import functools

import jax
import jax.numpy as jnp
from jax.experimental import pallas as pl
from jax.experimental.pallas import tpu as pltpu

# Layer dims from the PyTorch module, and their 128-aligned padded versions.
DIMS = [1000, 512, 128, 64, 128, 512, 1000]
PAD_DIMS = [1024, 512, 128, 128, 128, 512, 1024]


def _round_up(n, m):
    return ((n + m - 1) // m) * m


def _choose_tiling(batch):
    """Pick (tile_b, padded_b) for the batch grid.

    * tiny batch  : one step, pad only to the bf16 sublane tile (16 rows)
    * small batch : >=2 grid steps so both v7x TensorCores get work
    * large batch : 256-row tiles (amortize ~0.35us/step + MXU fill/drain,
                    padding waste bounded to <256 rows)
    """
    pb16 = _round_up(max(batch, 1), 16)
    if pb16 <= 16:
        tile = pb16
    elif pb16 <= 512:
        tile = _round_up((pb16 + 1) // 2, 16)
    else:
        tile = 256
    return tile, _round_up(pb16, tile)


def _const_block_spec(shape):
    """Grid-invariant block (weights/biases): VMEM-resident, single-buffered."""
    index_map = lambda i, _s=shape: (0,) * len(_s)
    try:
        return pl.BlockSpec(shape, index_map, pipeline_mode=pl.Buffered(1))
    except TypeError:  # older BlockSpec without pipeline_mode kwarg
        return pl.BlockSpec(shape, index_map)


def autoencoder_kernel(x_ref,
                       w1, b1, w2, b2, w3, b3, w4, b4, w5, b5, w6, b6,
                       o_ref):
    """Fused forward: six (matmul + bias + ReLU) stages on one batch tile.

    x_ref:   [tile_b, 1024] bf16 activation tile
    w*:      [in_pad, out_pad] bf16 weights (VMEM-resident across grid steps)
    b*:      [1, out_pad] f32 biases
    o_ref:   [tile_b, 1024] output tile (f32 or bf16)
    """
    layers = ((w1, b1), (w2, b2), (w3, b3), (w4, b4), (w5, b5), (w6, b6))
    h = x_ref[...]                                        # bf16
    for idx, (w_ref, b_ref) in enumerate(layers):
        acc = jnp.dot(h, w_ref[...], preferred_element_type=jnp.float32)
        acc = jnp.maximum(acc + b_ref[...], 0.0)          # bias + ReLU in f32
        if idx < len(layers) - 1:
            h = acc.astype(jnp.bfloat16)                  # bf16 between layers
        else:
            o_ref[...] = acc.astype(o_ref.dtype)


def prepare_params(params):
    """One-time padding + bf16 cast of the parameters (do NOT call per forward).

    params: list of 6 (W [in, out] f32, b [out] f32) in layer order.
    Returns a flat tuple (w1p, b1p, ..., w6p, b6p): padded bf16 W, padded f32 b.
    Zero padding is exact through matmul + bias + ReLU.
    """
    assert len(params) == 6
    flat = []
    for i, (w, b) in enumerate(params):
        assert w.shape == (DIMS[i], DIMS[i + 1]) and b.shape == (DIMS[i + 1],)
        ip, op = PAD_DIMS[i], PAD_DIMS[i + 1]
        wp = jnp.zeros((ip, op), jnp.bfloat16)
        wp = wp.at[:w.shape[0], :w.shape[1]].set(w.astype(jnp.bfloat16))
        bp = jnp.zeros((1, op), jnp.float32)
        bp = bp.at[0, :b.shape[0]].set(b.astype(jnp.float32))
        flat += [wp, bp]
    return tuple(flat)


@functools.partial(jax.jit, static_argnames=("out_dtype", "slice_output"))
def autoencoder_forward(x, prepared_params, out_dtype=jnp.float32,
                        slice_output=True):
    """x: [B, 1000] float32.  prepared_params: output of prepare_params()."""
    batch, din = x.shape
    assert din == DIMS[0]
    tile_b, padded_b = _choose_tiling(batch)
    num_tiles = padded_b // tile_b

    # Pad + cast only the input activations (zero rows/lanes are exact).
    xp = jnp.zeros((padded_b, PAD_DIMS[0]), jnp.bfloat16)
    xp = xp.at[:batch, :din].set(x.astype(jnp.bfloat16))

    # Activations blocked over the batch grid; weights/biases use constant
    # index maps (fetched once, VMEM-resident, single-buffered).
    in_specs = [pl.BlockSpec((tile_b, PAD_DIMS[0]), lambda i: (i, 0))]
    for li in range(6):
        ip, op = PAD_DIMS[li], PAD_DIMS[li + 1]
        in_specs.append(_const_block_spec((ip, op)))
        in_specs.append(_const_block_spec((1, op)))
    out_spec = pl.BlockSpec((tile_b, PAD_DIMS[-1]), lambda i: (i, 0))

    out = pl.pallas_call(
        autoencoder_kernel,
        out_shape=jax.ShapeDtypeStruct((padded_b, PAD_DIMS[-1]), out_dtype),
        grid=(num_tiles,),
        in_specs=in_specs,
        out_specs=out_spec,
        compiler_params=pltpu.CompilerParams(
            dimension_semantics=("parallel",),
            vmem_limit_bytes=32 << 20),
    )(xp, *prepared_params)

    if slice_output:
        # Consumers that can take the 1024-wide padded slab should pass
        # slice_output=False to skip this extra read+write pass.
        out = out[:batch, :DIMS[-1]]
    return out


def init_params(key):
    """Deterministic f32 parameter init (PyTorch-Linear-style uniform bounds)."""
    params = []
    for i in range(len(DIMS) - 1):
        fan_in, fan_out = DIMS[i], DIMS[i + 1]
        key, kw, kb = jax.random.split(key, 3)
        bound = 1.0 / (fan_in ** 0.5)
        w = jax.random.uniform(kw, (fan_in, fan_out), jnp.float32,
                               minval=-bound, maxval=bound)
        b = jax.random.uniform(kb, (fan_out,), jnp.float32,
                               minval=-bound, maxval=bound)
        params.append((w, b))
    return params


def reference_forward(x, params):
    """Plain-JAX reference using the same bf16-weight / f32-accum numerics."""
    h = x.astype(jnp.bfloat16)
    n = len(params)
    for idx, (w, b) in enumerate(params):
        acc = jnp.dot(h, w.astype(jnp.bfloat16),
                      preferred_element_type=jnp.float32)
        acc = jnp.maximum(acc + b, 0.0)
        h = acc.astype(jnp.bfloat16) if idx < n - 1 else acc
    return h


if __name__ == "__main__":
    key = jax.random.PRNGKey(0)
    key, kx = jax.random.split(key)

    params = init_params(key)
    prepared = prepare_params(params)   # one-time padding + bf16 cast

    # Small-batch case: single 16-row tile (no 128-row padding waste).
    batch = 8
    x = jax.random.normal(kx, (batch, DIMS[0]), jnp.float32)
    out = jax.block_until_ready(autoencoder_forward(x, prepared))
    ref = reference_forward(x, params)
    assert out.shape == (batch, DIMS[-1]), out.shape
    assert jnp.allclose(out, ref, atol=5e-3, rtol=5e-3), (
        float(jnp.max(jnp.abs(out - ref))))

    # Multi-tile case: 2 grid steps (exercises the batch pipeline / v7x split).
    batch2 = 200
    x2 = jax.random.normal(jax.random.PRNGKey(1), (batch2, DIMS[0]), jnp.float32)
    out2 = jax.block_until_ready(autoencoder_forward(x2, prepared))
    ref2 = reference_forward(x2, params)
    assert out2.shape == (batch2, DIMS[-1]), out2.shape
    assert jnp.allclose(out2, ref2, atol=5e-3, rtol=5e-3), (
        float(jnp.max(jnp.abs(out2 - ref2))))

    print("KERNEL_OK")
</pallas_src>

<mosaic_0001>
module attributes {stable_mosaic.version = 11 : i64} {
  func.func @autoencoder_kernel(%arg0: i32, %arg1: memref<16x1024xbf16, #tpu.memory_space<vmem>>, %arg2: memref<1024x512xbf16, #tpu.memory_space<vmem>>, %arg3: memref<1x512xf32, #tpu.memory_space<vmem>>, %arg4: memref<512x128xbf16, #tpu.memory_space<vmem>>, %arg5: memref<1x128xf32, #tpu.memory_space<vmem>>, %arg6: memref<128x128xbf16, #tpu.memory_space<vmem>>, %arg7: memref<1x128xf32, #tpu.memory_space<vmem>>, %arg8: memref<128x128xbf16, #tpu.memory_space<vmem>>, %arg9: memref<1x128xf32, #tpu.memory_space<vmem>>, %arg10: memref<128x512xbf16, #tpu.memory_space<vmem>>, %arg11: memref<1x512xf32, #tpu.memory_space<vmem>>, %arg12: memref<512x1024xbf16, #tpu.memory_space<vmem>>, %arg13: memref<1x1024xf32, #tpu.memory_space<vmem>>, %arg14: memref<16x1024xf32, #tpu.memory_space<vmem>>) attributes {dimension_semantics = [#tpu.dimension_semantics<parallel>], iteration_bounds = array<i64: 1>, scalar_prefetch = 0 : i64, scratch_operands = 0 : i64, tpu.core_type = #tpu.core_type<tc>, window_params = [{transform_indices = @transform_0, window_bounds = array<i64: 16, 1024>}, {pipeline_mode = #tpu.pipeline_mode<synchronous>, transform_indices = @transform_1, window_bounds = array<i64: 1024, 512>}, {pipeline_mode = #tpu.pipeline_mode<synchronous>, transform_indices = @transform_2, window_bounds = array<i64: 1, 512>}, {pipeline_mode = #tpu.pipeline_mode<synchronous>, transform_indices = @transform_3, window_bounds = array<i64: 512, 128>}, {pipeline_mode = #tpu.pipeline_mode<synchronous>, transform_indices = @transform_4, window_bounds = array<i64: 1, 128>}, {pipeline_mode = #tpu.pipeline_mode<synchronous>, transform_indices = @transform_5, window_bounds = array<i64: 128, 128>}, {pipeline_mode = #tpu.pipeline_mode<synchronous>, transform_indices = @transform_6, window_bounds = array<i64: 1, 128>}, {pipeline_mode = #tpu.pipeline_mode<synchronous>, transform_indices = @transform_7, window_bounds = array<i64: 128, 128>}, {pipeline_mode = #tpu.pipeline_mode<synchronous>, transform_indices = @transform_8, window_bounds = array<i64: 1, 128>}, {pipeline_mode = #tpu.pipeline_mode<synchronous>, transform_indices = @transform_9, window_bounds = array<i64: 128, 512>}, {pipeline_mode = #tpu.pipeline_mode<synchronous>, transform_indices = @transform_10, window_bounds = array<i64: 1, 512>}, {pipeline_mode = #tpu.pipeline_mode<synchronous>, transform_indices = @transform_11, window_bounds = array<i64: 512, 1024>}, {pipeline_mode = #tpu.pipeline_mode<synchronous>, transform_indices = @transform_12, window_bounds = array<i64: 1, 1024>}, {transform_indices = @transform_13, window_bounds = array<i64: 16, 1024>}]} {
    %c0 = arith.constant 0 : index
    %c0_0 = arith.constant 0 : index
    %0 = vector.load %arg1[%c0, %c0_0] : memref<16x1024xbf16, #tpu.memory_space<vmem>>, vector<16x1024xbf16>
    %c0_1 = arith.constant 0 : index
    %c0_2 = arith.constant 0 : index
    %1 = vector.load %arg2[%c0_1, %c0_2] : memref<1024x512xbf16, #tpu.memory_space<vmem>>, vector<1024x512xbf16>
    %cst = arith.constant dense<0.000000e+00> : vector<16x512xf32>
    %2 = tpu.matmul %0, %1, %cst {dimension_numbers = #tpu.dot_dimension_numbers<[1], [0], [0], [1], [0, 0, 1, 1], [], []>} : vector<16x1024xbf16>, vector<1024x512xbf16>, vector<16x512xf32> -> vector<16x512xf32>
    %c0_3 = arith.constant 0 : index
    %c0_4 = arith.constant 0 : index
    %3 = vector.load %arg3[%c0_3, %c0_4] : memref<1x512xf32, #tpu.memory_space<vmem>>, vector<1x512xf32>
    %4 = vector.broadcast %3 : vector<1x512xf32> to vector<16x512xf32>
    %5 = arith.addf %2, %4 : vector<16x512xf32>
    %cst_5 = arith.constant 0.000000e+00 : f32
    %6 = vector.broadcast %cst_5 : f32 to vector<16x512xf32>
    %7 = arith.maximumf %5, %6 : vector<16x512xf32>
    %8 = arith.truncf %7 : vector<16x512xf32> to vector<16x512xbf16>
    %c0_6 = arith.constant 0 : index
    %c0_7 = arith.constant 0 : index
    %9 = vector.load %arg4[%c0_6, %c0_7] : memref<512x128xbf16, #tpu.memory_space<vmem>>, vector<512x128xbf16>
    %cst_8 = arith.constant dense<0.000000e+00> : vector<16x128xf32>
    %10 = tpu.matmul %8, %9, %cst_8 {dimension_numbers = #tpu.dot_dimension_numbers<[1], [0], [0], [1], [0, 0, 1, 1], [], []>} : vector<16x512xbf16>, vector<512x128xbf16>, vector<16x128xf32> -> vector<16x128xf32>
    %c0_9 = arith.constant 0 : index
    %c0_10 = arith.constant 0 : index
    %11 = vector.load %arg5[%c0_9, %c0_10] : memref<1x128xf32, #tpu.memory_space<vmem>>, vector<1x128xf32>
    %12 = vector.broadcast %11 : vector<1x128xf32> to vector<16x128xf32>
    %13 = arith.addf %10, %12 : vector<16x128xf32>
    %cst_11 = arith.constant 0.000000e+00 : f32
    %14 = vector.broadcast %cst_11 : f32 to vector<16x128xf32>
    %15 = arith.maximumf %13, %14 : vector<16x128xf32>
    %16 = arith.truncf %15 : vector<16x128xf32> to vector<16x128xbf16>
    %c0_12 = arith.constant 0 : index
    %c0_13 = arith.constant 0 : index
    %17 = vector.load %arg6[%c0_12, %c0_13] : memref<128x128xbf16, #tpu.memory_space<vmem>>, vector<128x128xbf16>
    %cst_14 = arith.constant dense<0.000000e+00> : vector<16x128xf32>
    %18 = tpu.matmul %16, %17, %cst_14 {dimension_numbers = #tpu.dot_dimension_numbers<[1], [0], [0], [1], [0, 0, 1, 1], [], []>} : vector<16x128xbf16>, vector<128x128xbf16>, vector<16x128xf32> -> vector<16x128xf32>
    %c0_15 = arith.constant 0 : index
    %c0_16 = arith.constant 0 : index
    %19 = vector.load %arg7[%c0_15, %c0_16] : memref<1x128xf32, #tpu.memory_space<vmem>>, vector<1x128xf32>
    %20 = vector.broadcast %19 : vector<1x128xf32> to vector<16x128xf32>
    %21 = arith.addf %18, %20 : vector<16x128xf32>
    %cst_17 = arith.constant 0.000000e+00 : f32
    %22 = vector.broadcast %cst_17 : f32 to vector<16x128xf32>
    %23 = arith.maximumf %21, %22 : vector<16x128xf32>
    %24 = arith.truncf %23 : vector<16x128xf32> to vector<16x128xbf16>
    %c0_18 = arith.constant 0 : index
    %c0_19 = arith.constant 0 : index
    %25 = vector.load %arg8[%c0_18, %c0_19] : memref<128x128xbf16, #tpu.memory_space<vmem>>, vector<128x128xbf16>
    %cst_20 = arith.constant dense<0.000000e+00> : vector<16x128xf32>
    %26 = tpu.matmul %24, %25, %cst_20 {dimension_numbers = #tpu.dot_dimension_numbers<[1], [0], [0], [1], [0, 0, 1, 1], [], []>} : vector<16x128xbf16>, vector<128x128xbf16>, vector<16x128xf32> -> vector<16x128xf32>
    %c0_21 = arith.constant 0 : index
    %c0_22 = arith.constant 0 : index
    %27 = vector.load %arg9[%c0_21, %c0_22] : memref<1x128xf32, #tpu.memory_space<vmem>>, vector<1x128xf32>
    %28 = vector.broadcast %27 : vector<1x128xf32> to vector<16x128xf32>
    %29 = arith.addf %26, %28 : vector<16x128xf32>
    %cst_23 = arith.constant 0.000000e+00 : f32
    %30 = vector.broadcast %cst_23 : f32 to vector<16x128xf32>
    %31 = arith.maximumf %29, %30 : vector<16x128xf32>
    %32 = arith.truncf %31 : vector<16x128xf32> to vector<16x128xbf16>
    %c0_24 = arith.constant 0 : index
    %c0_25 = arith.constant 0 : index
    %33 = vector.load %arg10[%c0_24, %c0_25] : memref<128x512xbf16, #tpu.memory_space<vmem>>, vector<128x512xbf16>
    %cst_26 = arith.constant dense<0.000000e+00> : vector<16x512xf32>
    %34 = tpu.matmul %32, %33, %cst_26 {dimension_numbers = #tpu.dot_dimension_numbers<[1], [0], [0], [1], [0, 0, 1, 1], [], []>} : vector<16x128xbf16>, vector<128x512xbf16>, vector<16x512xf32> -> vector<16x512xf32>
    %c0_27 = arith.constant 0 : index
    %c0_28 = arith.constant 0 : index
    %35 = vector.load %arg11[%c0_27, %c0_28] : memref<1x512xf32, #tpu.memory_space<vmem>>, vector<1x512xf32>
    %36 = vector.broadcast %35 : vector<1x512xf32> to vector<16x512xf32>
    %37 = arith.addf %34, %36 : vector<16x512xf32>
    %cst_29 = arith.constant 0.000000e+00 : f32
    %38 = vector.broadcast %cst_29 : f32 to vector<16x512xf32>
    %39 = arith.maximumf %37, %38 : vector<16x512xf32>
    %40 = arith.truncf %39 : vector<16x512xf32> to vector<16x512xbf16>
    %c0_30 = arith.constant 0 : index
    %c0_31 = arith.constant 0 : index
    %41 = vector.load %arg12[%c0_30, %c0_31] : memref<512x1024xbf16, #tpu.memory_space<vmem>>, vector<512x1024xbf16>
    %cst_32 = arith.constant dense<0.000000e+00> : vector<16x1024xf32>
    %42 = tpu.matmul %40, %41, %cst_32 {dimension_numbers = #tpu.dot_dimension_numbers<[1], [0], [0], [1], [0, 0, 1, 1], [], []>} : vector<16x512xbf16>, vector<512x1024xbf16>, vector<16x1024xf32> -> vector<16x1024xf32>
    %c0_33 = arith.constant 0 : index
    %c0_34 = arith.constant 0 : index
    %43 = vector.load %arg13[%c0_33, %c0_34] : memref<1x1024xf32, #tpu.memory_space<vmem>>, vector<1x1024xf32>
    %44 = vector.broadcast %43 : vector<1x1024xf32> to vector<16x1024xf32>
    %45 = arith.addf %42, %44 : vector<16x1024xf32>
    %cst_35 = arith.constant 0.000000e+00 : f32
    %46 = vector.broadcast %cst_35 : f32 to vector<16x1024xf32>
    %47 = arith.maximumf %45, %46 : vector<16x1024xf32>
    %c0_36 = arith.constant 0 : index
    %c0_37 = arith.constant 0 : index
    %48 = vector.load %arg14[%c0_36, %c0_37] : memref<16x1024xf32, #tpu.memory_space<vmem>>, vector<16x1024xf32>
    tpu.vector_store %arg14[%c0_36, %c0_37], %47 {strides = array<i32>} : memref<16x1024xf32, #tpu.memory_space<vmem>>, vector<16x1024xf32>,
    return
  }
  func.func @transform_0(%arg0: i32) -> (i32, i32) {
    %c0_i32 = arith.constant 0 : i32
    %c0_i32_0 = arith.constant 0 : i32
    return %arg0, %c0_i32 : i32, i32
  }
  func.func @transform_1(%arg0: i32) -> (i32, i32) {
    %c0_i32 = arith.constant 0 : i32
    %c0_i32_0 = arith.constant 0 : i32
    %c0_i32_1 = arith.constant 0 : i32
    return %c0_i32, %c0_i32_0 : i32, i32
  }
  func.func @transform_2(%arg0: i32) -> (i32, i32) {
    %c0_i32 = arith.constant 0 : i32
    %c0_i32_0 = arith.constant 0 : i32
    %c0_i32_1 = arith.constant 0 : i32
    return %c0_i32, %c0_i32_0 : i32, i32
  }
  func.func @transform_3(%arg0: i32) -> (i32, i32) {
    %c0_i32 = arith.constant 0 : i32
    %c0_i32_0 = arith.constant 0 : i32
    %c0_i32_1 = arith.constant 0 : i32
    return %c0_i32, %c0_i32_0 : i32, i32
  }
  func.func @transform_4(%arg0: i32) -> (i32, i32) {
    %c0_i32 = arith.constant 0 : i32
    %c0_i32_0 = arith.constant 0 : i32
    %c0_i32_1 = arith.constant 0 : i32
    return %c0_i32, %c0_i32_0 : i32, i32
  }
  func.func @transform_5(%arg0: i32) -> (i32, i32) {
    %c0_i32 = arith.constant 0 : i32
    %c0_i32_0 = arith.constant 0 : i32
    %c0_i32_1 = arith.constant 0 : i32
    return %c0_i32, %c0_i32_0 : i32, i32
  }
  func.func @transform_6(%arg0: i32) -> (i32, i32) {
    %c0_i32 = arith.constant 0 : i32
    %c0_i32_0 = arith.constant 0 : i32
    %c0_i32_1 = arith.constant 0 : i32
    return %c0_i32, %c0_i32_0 : i32, i32
  }
  func.func @transform_7(%arg0: i32) -> (i32, i32) {
    %c0_i32 = arith.constant 0 : i32
    %c0_i32_0 = arith.constant 0 : i32
    %c0_i32_1 = arith.constant 0 : i32
    return %c0_i32, %c0_i32_0 : i32, i32
  }
  func.func @transform_8(%arg0: i32) -> (i32, i32) {
    %c0_i32 = arith.constant 0 : i32
    %c0_i32_0 = arith.constant 0 : i32
    %c0_i32_1 = arith.constant 0 : i32
    return %c0_i32, %c0_i32_0 : i32, i32
  }
  func.func @transform_9(%arg0: i32) -> (i32, i32) {
    %c0_i32 = arith.constant 0 : i32
    %c0_i32_0 = arith.constant 0 : i32
    %c0_i32_1 = arith.constant 0 : i32
    return %c0_i32, %c0_i32_0 : i32, i32
  }
  func.func @transform_10(%arg0: i32) -> (i32, i32) {
    %c0_i32 = arith.constant 0 : i32
    %c0_i32_0 = arith.constant 0 : i32
    %c0_i32_1 = arith.constant 0 : i32
    return %c0_i32, %c0_i32_0 : i32, i32
  }
  func.func @transform_11(%arg0: i32) -> (i32, i32) {
    %c0_i32 = arith.constant 0 : i32
    %c0_i32_0 = arith.constant 0 : i32
    %c0_i32_1 = arith.constant 0 : i32
    return %c0_i32, %c0_i32_0 : i32, i32
  }
  func.func @transform_12(%arg0: i32) -> (i32, i32) {
    %c0_i32 = arith.constant 0 : i32
    %c0_i32_0 = arith.constant 0 : i32
    %c0_i32_1 = arith.constant 0 : i32
    return %c0_i32, %c0_i32_0 : i32, i32
  }
  func.func @transform_13(%arg0: i32) -> (i32, i32) {
    %c0_i32 = arith.constant 0 : i32
    %c0_i32_0 = arith.constant 0 : i32
    return %arg0, %c0_i32 : i32, i32
  }
}

</mosaic_0001>

<llo_original>
// kernel: autoencoder_forward.1
$region0: #{autoencoder_forward.1}
  #allocation0 [shape = 'u32[]', space=smem, size = 0x4, offset = 0x4, fixed_abs, tag = 'smem constant byte address 0x4 - core index']
  #allocation1 [shape = 'u32[144,128]{1,0:T(1,128)}', space=vmem, size = 0x12000, scoped, tag = 'internal scratch']
  %s0 = inlined_call_operand.vmem [shape: bf16[16,1024], index: 0, kind: input, shape index: {}]
  %s1 = inlined_call_operand.hbm [shape: bf16[1024,512], index: 1, kind: input, shape index: {}]
  %s2 = inlined_call_operand.vmem [shape: f32[1,512], index: 2, kind: input, shape index: {}]
  %s3 = inlined_call_operand.hbm [shape: bf16[512,128], index: 3, kind: input, shape index: {}]
  %s4 = inlined_call_operand.vmem [shape: f32[1,128], index: 4, kind: input, shape index: {}]
  %s5 = inlined_call_operand.vmem [shape: bf16[128,128], index: 5, kind: input, shape index: {}]
  %s6 = inlined_call_operand.vmem [shape: f32[1,128], index: 6, kind: input, shape index: {}]
  %s7 = inlined_call_operand.vmem [shape: bf16[128,128], index: 7, kind: input, shape index: {}]
  %s8 = inlined_call_operand.vmem [shape: f32[1,128], index: 8, kind: input, shape index: {}]
  %s9 = inlined_call_operand.hbm [shape: bf16[128,512], index: 9, kind: input, shape index: {}]
  %s10 = inlined_call_operand.vmem [shape: f32[1,512], index: 10, kind: input, shape index: {}]
  %s11 = inlined_call_operand.hbm [shape: bf16[512,1024], index: 11, kind: input, shape index: {}]
  %s12 = inlined_call_operand.vmem [shape: f32[1,1024], index: 12, kind: input, shape index: {}]
  %s13 = inlined_call_operand.vmem [shape: f32[16,1024], index: 13, kind: output, shape index: {}]
  %s14 = sld [smem:[#allocation0]]
  $region78: #{autoencoder_forward.1} parent=0
    _
  %s16 = ssub.s32 1, %s14
  %s17 = scalar_select 0, %s16, %s14
  $region1: #{autoencoder_forward.1} parent=0
    #allocation2 [shape = 'u8[1048576]{0}', space=vmem, size = 0x100000, scoped, tag = 'input window, operand 1, single buffered']
    #allocation3 [shape = 's32[1]{0}', space=sflag, size = 0x4, scoped, tag = 'scoped memory for autoencoder_forward.1']
    #allocation4 [shape = 'u8[131072]{0}', space=vmem, size = 0x20000, scoped, tag = 'input window, operand 3, single buffered']
    #allocation5 [shape = 's32[1]{0}', space=sflag, size = 0x4, scoped, tag = 'scoped memory for autoencoder_forward.1']
    #allocation6 [shape = 'u8[131072]{0}', space=vmem, size = 0x20000, scoped, tag = 'input window, operand 9, single buffered']
    #allocation7 [shape = 'u8[1048576]{0}', space=vmem, size = 0x100000, scoped, tag = 'input window, operand 11, single buffered']
    #allocation8 [shape = 's32[1]{0}', space=sflag, size = 0x4, scoped, tag = 'scoped memory for autoencoder_forward.1']
    %18 = vsyncpa [#allocation3], 0
    %19 = vsyncpa [#allocation5], 0
    %20 = vsyncpa [#allocation8], 0
    // Predicated region
    $region2: #{autoencoder_forward.1} parent=1 // pred_check
      _
    $region3: #{autoencoder_forward.1} parent=1 // pred_check_branch
      %22 = sbr.rel (0) target = $region5
    $region4: #{autoencoder_forward.1} parent=1 // pred_region
      _
    $region5: #{autoencoder_forward.1} parent=1 // pred_fallthru
      _
    // Predicated region
    $region6: #{autoencoder_forward.1} parent=1 // pred_check
      _
    $region7: #{autoencoder_forward.1} parent=1 // pred_check_branch
      %24 = sbr.rel (0) target = $region9
    $region8: #{autoencoder_forward.1} parent=1 // pred_region
      %s26 = ssub.s32 32768, 32768
      %27 = vsyncadd [#allocation3], %s26
      %s28 = sshll.u32 [#allocation2], 4
      %s29 = int_to_ptr.vmem [resolvable:$true] %s28
      %34 = dma.hbm_to_vmem [thread:$0]  %s1, 32768, %s29, [#allocation3], 256, 256, 16
    $region9: #{autoencoder_forward.1} parent=1 // pred_fallthru
      _
    // Predicated region
    $region10: #{autoencoder_forward.1} parent=1 // pred_check
      _
    $region11: #{autoencoder_forward.1} parent=1 // pred_check_branch
      %36 = sbr.rel (0) target = $region13
    $region12: #{autoencoder_forward.1} parent=1 // pred_region
      _
    $region13: #{autoencoder_forward.1} parent=1 // pred_fallthru
      _
    // Predicated region
    $region14: #{autoencoder_forward.1} parent=1 // pred_check
      _
    $region15: #{autoencoder_forward.1} parent=1 // pred_check_branch
      %38 = sbr.rel (0) target = $region17
    $region16: #{autoencoder_forward.1} parent=1 // pred_region
      %s40 = ssub.s32 4096, 4096
      %41 = vsyncadd [#allocation5], %s40
      %s42 = sshll.u32 [#allocation4], 4
      %s43 = int_to_ptr.vmem [resolvable:$true] %s42
      %48 = dma.hbm_to_vmem [thread:$0]  %s3, 4096, %s43, [#allocation5], 64, 64, 4
    $region17: #{autoencoder_forward.1} parent=1 // pred_fallthru
      _
    // Predicated region
    $region18: #{autoencoder_forward.1} parent=1 // pred_check
      _
    $region19: #{autoencoder_forward.1} parent=1 // pred_check_branch
      %50 = sbr.rel (0) target = $region21
    $region20: #{autoencoder_forward.1} parent=1 // pred_region
      _
    $region21: #{autoencoder_forward.1} parent=1 // pred_fallthru
      _
    // Predicated region
    $region22: #{autoencoder_forward.1} parent=1 // pred_check
      _
    $region23: #{autoencoder_forward.1} parent=1 // pred_check_branch
      %52 = sbr.rel (0) target = $region25
    $region24: #{autoencoder_forward.1} parent=1 // pred_region
      _
    $region25: #{autoencoder_forward.1} parent=1 // pred_fallthru
      _
    // Predicated region
    $region26: #{autoencoder_forward.1} parent=1 // pred_check
      _
    $region27: #{autoencoder_forward.1} parent=1 // pred_check_branch
      %54 = sbr.rel (0) target = $region29
    $region28: #{autoencoder_forward.1} parent=1 // pred_region
      _
    $region29: #{autoencoder_forward.1} parent=1 // pred_fallthru
      _
    // Predicated region
    $region30: #{autoencoder_forward.1} parent=1 // pred_check
      _
    $region31: #{autoencoder_forward.1} parent=1 // pred_check_branch
      %56 = sbr.rel (0) target = $region33
    $region32: #{autoencoder_forward.1} parent=1 // pred_region
      _
    $region33: #{autoencoder_forward.1} parent=1 // pred_fallthru
      _
    // Predicated region
    $region34: #{autoencoder_forward.1} parent=1 // pred_check
      _
    $region35: #{autoencoder_forward.1} parent=1 // pred_check_branch
      %58 = sbr.rel (0) target = $region37
    $region36: #{autoencoder_forward.1} parent=1 // pred_region
      _
    $region37: #{autoencoder_forward.1} parent=1 // pred_fallthru
      _
    // Predicated region
    $region38: #{autoencoder_forward.1} parent=1 // pred_check
      _
    $region39: #{autoencoder_forward.1} parent=1 // pred_check_branch
      %60 = sbr.rel (0) target = $region41
    $region40: #{autoencoder_forward.1} parent=1 // pred_region
      %s62 = ssub.s32 4096, 4096
      %63 = vsyncadd [#allocation5], %s62
      %s64 = sshll.u32 [#allocation6], 4
      %s65 = int_to_ptr.vmem [resolvable:$true] %s64
      %70 = dma.hbm_to_vmem [thread:$0]  %s9, 4096, %s65, [#allocation5], 256, 256, 16
    $region41: #{autoencoder_forward.1} parent=1 // pred_fallthru
      _
    // Predicated region
    $region42: #{autoencoder_forward.1} parent=1 // pred_check
      _
    $region43: #{autoencoder_forward.1} parent=1 // pred_check_branch
      %72 = sbr.rel (0) target = $region45
    $region44: #{autoencoder_forward.1} parent=1 // pred_region
      _
    $region45: #{autoencoder_forward.1} parent=1 // pred_fallthru
      _
    // Predicated region
    $region46: #{autoencoder_forward.1} parent=1 // pred_check
      _
    $region47: #{autoencoder_forward.1} parent=1 // pred_check_branch
      %74 = sbr.rel (0) target = $region49
    $region48: #{autoencoder_forward.1} parent=1 // pred_region
      %s76 = ssub.s32 32768, 32768
      %77 = vsyncadd [#allocation8], %s76
      %s78 = sshll.u32 [#allocation7], 4
      %s79 = int_to_ptr.vmem [resolvable:$true] %s78
      %84 = dma.hbm_to_vmem [thread:$0]  %s11, 32768, %s79, [#allocation8], 512, 512, 32
    $region49: #{autoencoder_forward.1} parent=1 // pred_fallthru
      _
    // Predicated region
    $region50: #{autoencoder_forward.1} parent=1 // pred_check
      _
    $region51: #{autoencoder_forward.1} parent=1 // pred_check_branch
      %86 = sbr.rel (0) target = $region53
    $region52: #{autoencoder_forward.1} parent=1 // pred_region
      _
    $region53: #{autoencoder_forward.1} parent=1 // pred_fallthru
      _
    // Predicated region
    $region54: #{autoencoder_forward.1} parent=1 // pred_check
      _
    $region55: #{autoencoder_forward.1} parent=1 // pred_check_branch
      %88 = sbr.rel (0) target = $region57
    $region56: #{autoencoder_forward.1} parent=1 // pred_region
      %89 = dma.done [#allocation3], 32768
    $region57: #{autoencoder_forward.1} parent=1 // pred_fallthru
      _
    // Predicated region
    $region58: #{autoencoder_forward.1} parent=1 // pred_check
      _
    $region59: #{autoencoder_forward.1} parent=1 // pred_check_branch
      %91 = sbr.rel (0) target = $region61
    $region60: #{autoencoder_forward.1} parent=1 // pred_region
      %92 = dma.done [#allocation5], 4096
    $region61: #{autoencoder_forward.1} parent=1 // pred_fallthru
      _
    // Predicated region
    $region62: #{autoencoder_forward.1} parent=1 // pred_check
      _
    $region63: #{autoencoder_forward.1} parent=1 // pred_check_branch
      %94 = sbr.rel (0) target = $region65
    $region64: #{autoencoder_forward.1} parent=1 // pred_region
      %95 = dma.done [#allocation5], 4096
    $region65: #{autoencoder_forward.1} parent=1 // pred_fallthru
      _
    // Predicated region
    $region66: #{autoencoder_forward.1} parent=1 // pred_check
      _
    $region67: #{autoencoder_forward.1} parent=1 // pred_check_branch
      %97 = sbr.rel (0) target = $region69
    $region68: #{autoencoder_forward.1} parent=1 // pred_region
      %98 = dma.done [#allocation8], 32768
    $region69: #{autoencoder_forward.1} parent=1 // pred_fallthru
      _
    %v100 = vld [vmem:[%s0] sm:$0xff]
    %v101 = vld [vmem:[%s0 + $0x8] sm:$0xff]
    %v102 = vld [vmem:[%s0 + $0x10] sm:$0xff]
    %v103 = vld [vmem:[%s0 + $0x18] sm:$0xff]
    %v104 = vld [vmem:[%s0 + $0x20] sm:$0xff]
    %v105 = vld [vmem:[%s0 + $0x28] sm:$0xff]
    %v106 = vld [vmem:[%s0 + $0x30] sm:$0xff]
    %v107 = vld [vmem:[%s0 + $0x38] sm:$0xff]
    %v108 = vld [vmem:[#allocation2] sm:$0xff]
    %v109 = vld [vmem:[#allocation2 + $0x8] sm:$0xff]
    %v110 = vld [vmem:[#allocation2 + $0x10] sm:$0xff]
    %v111 = vld [vmem:[#allocation2 + $0x18] sm:$0xff]
    %v112 = vld [vmem:[#allocation2 + $0x20] sm:$0xff]
    %v113 = vld [vmem:[#allocation2 + $0x28] sm:$0xff]
    %v114 = vld [vmem:[#allocation2 + $0x30] sm:$0xff]
    %v115 = vld [vmem:[#allocation2 + $0x38] sm:$0xff]
    %v116 = vld [vmem:[#allocation2 + $0x40] sm:$0xff]
    %v117 = vld [vmem:[#allocation2 + $0x48] sm:$0xff]
    %v118 = vld [vmem:[#allocation2 + $0x50] sm:$0xff]
    %v119 = vld [vmem:[#allocation2 + $0x58] sm:$0xff]
    %v120 = vld [vmem:[#allocation2 + $0x60] sm:$0xff]
    %v121 = vld [vmem:[#allocation2 + $0x68] sm:$0xff]
    %v122 = vld [vmem:[#allocation2 + $0x70] sm:$0xff]
    %v123 = vld [vmem:[#allocation2 + $0x78] sm:$0xff]
    %v124 = vld [vmem:[#allocation2 + $0x80] sm:$0xff]
    %v125 = vld [vmem:[#allocation2 + $0x88] sm:$0xff]
    %v126 = vld [vmem:[#allocation2 + $0x90] sm:$0xff]
    %v127 = vld [vmem:[#allocation2 + $0x98] sm:$0xff]
    %v128 = vld [vmem:[#allocation2 + $0xa0] sm:$0xff]
    %v129 = vld [vmem:[#allocation2 + $0xa8] sm:$0xff]
    %v130 = vld [vmem:[#allocation2 + $0xb0] sm:$0xff]
    %v131 = vld [vmem:[#allocation2 + $0xb8] sm:$0xff]
    %v132 = vld [vmem:[#allocation2 + $0xc0] sm:$0xff]
    %v133 = vld [vmem:[#allocation2 + $0xc8] sm:$0xff]
    %v134 = vld [vmem:[#allocation2 + $0xd0] sm:$0xff]
    %v135 = vld [vmem:[#allocation2 + $0xd8] sm:$0xff]
    %v136 = vld [vmem:[#allocation2 + $0xe0] sm:$0xff]
    %v137 = vld [vmem:[#allocation2 + $0xe8] sm:$0xff]
    %v138 = vld [vmem:[#allocation2 + $0xf0] sm:$0xff]
    %v139 = vld [vmem:[#allocation2 + $0xf8] sm:$0xff]
    %v140 = vld [vmem:[#allocation2 + $0x100] sm:$0xff]
    %v141 = vld [vmem:[#allocation2 + $0x108] sm:$0xff]
    %v142 = vld [vmem:[#allocation2 + $0x110] sm:$0xff]
    %v143 = vld [vmem:[#allocation2 + $0x118] sm:$0xff]
    %v144 = vld [vmem:[#allocation2 + $0x120] sm:$0xff]
    %v145 = vld [vmem:[#allocation2 + $0x128] sm:$0xff]
    %v146 = vld [vmem:[#allocation2 + $0x130] sm:$0xff]
    %v147 = vld [vmem:[#allocation2 + $0x138] sm:$0xff]
    %v148 = vld [vmem:[#allocation2 + $0x140] sm:$0xff]
    %v149 = vld [vmem:[#allocation2 + $0x148] sm:$0xff]
    %v150 = vld [vmem:[#allocation2 + $0x150] sm:$0xff]
    %v151 = vld [vmem:[#allocation2 + $0x158] sm:$0xff]
    %v152 = vld [vmem:[#allocation2 + $0x160] sm:$0xff]
    %v153 = vld [vmem:[#allocation2 + $0x168] sm:$0xff]
    %v154 = vld [vmem:[#allocation2 + $0x170] sm:$0xff]
    %v155 = vld [vmem:[#allocation2 + $0x178] sm:$0xff]
    %v156 = vld [vmem:[#allocation2 + $0x180] sm:$0xff]
    %v157 = vld [vmem:[#allocation2 + $0x188] sm:$0xff]
    %v158 = vld [vmem:[#allocation2 + $0x190] sm:$0xff]
    %v159 = vld [vmem:[#allocation2 + $0x198] sm:$0xff]
    %v160 = vld [vmem:[#allocation2 + $0x1a0] sm:$0xff]
    %v161 = vld [vmem:[#allocation2 + $0x1a8] sm:$0xff]
    %v162 = vld [vmem:[#allocation2 + $0x1b0] sm:$0xff]
    %v163 = vld [vmem:[#allocation2 + $0x1b8] sm:$0xff]
    %v164 = vld [vmem:[#allocation2 + $0x1c0] sm:$0xff]
    %v165 = vld [vmem:[#allocation2 + $0x1c8] sm:$0xff]
    %v166 = vld [vmem:[#allocation2 + $0x1d0] sm:$0xff]
    %v167 = vld [vmem:[#allocation2 + $0x1d8] sm:$0xff]
    %v168 = vld [vmem:[#allocation2 + $0x1e0] sm:$0xff]
    %v169 = vld [vmem:[#allocation2 + $0x1e8] sm:$0xff]
    %v170 = vld [vmem:[#allocation2 + $0x1f0] sm:$0xff]
    %v171 = vld [vmem:[#allocation2 + $0x1f8] sm:$0xff]
    %v172 = vld [vmem:[#allocation2 + $0x200] sm:$0xff]
    %v173 = vld [vmem:[#allocation2 + $0x208] sm:$0xff]
    %v174 = vld [vmem:[#allocation2 + $0x210] sm:$0xff]
    %v175 = vld [vmem:[#allocation2 + $0x218] sm:$0xff]
    %v176 = vld [vmem:[#allocation2 + $0x220] sm:$0xff]
    %v177 = vld [vmem:[#allocation2 + $0x228] sm:$0xff]
    %v178 = vld [vmem:[#allocation2 + $0x230] sm:$0xff]
    %v179 = vld [vmem:[#allocation2 + $0x238] sm:$0xff]
    %v180 = vld [vmem:[#allocation2 + $0x240] sm:$0xff]
    %v181 = vld [vmem:[#allocation2 + $0x248] sm:$0xff]
    %v182 = vld [vmem:[#allocation2 + $0x250] sm:$0xff]
    %v183 = vld [vmem:[#allocation2 + $0x258] sm:$0xff]
    %v184 = vld [vmem:[#allocation2 + $0x260] sm:$0xff]
    %v185 = vld [vmem:[#allocation2 + $0x268] sm:$0xff]
    %v186 = vld [vmem:[#allocation2 + $0x270] sm:$0xff]
    %v187 = vld [vmem:[#allocation2 + $0x278] sm:$0xff]
    %v188 = vld [vmem:[#allocation2 + $0x280] sm:$0xff]
    %v189 = vld [vmem:[#allocation2 + $0x288] sm:$0xff]
    %v190 = vld [vmem:[#allocation2 + $0x290] sm:$0xff]
    %v191 = vld [vmem:[#allocation2 + $0x298] sm:$0xff]
    %v192 = vld [vmem:[#allocation2 + $0x2a0] sm:$0xff]
    %v193 = vld [vmem:[#allocation2 + $0x2a8] sm:$0xff]
    %v194 = vld [vmem:[#allocation2 + $0x2b0] sm:$0xff]
    %v195 = vld [vmem:[#allocation2 + $0x2b8] sm:$0xff]
    %v196 = vld [vmem:[#allocation2 + $0x2c0] sm:$0xff]
    %v197 = vld [vmem:[#allocation2 + $0x2c8] sm:$0xff]
    %v198 = vld [vmem:[#allocation2 + $0x2d0] sm:$0xff]
    %v199 = vld [vmem:[#allocation2 + $0x2d8] sm:$0xff]
    %v200 = vld [vmem:[#allocation2 + $0x2e0] sm:$0xff]
    %v201 = vld [vmem:[#allocation2 + $0x2e8] sm:$0xff]
    %v202 = vld [vmem:[#allocation2 + $0x2f0] sm:$0xff]
    %v203 = vld [vmem:[#allocation2 + $0x2f8] sm:$0xff]
    %v204 = vld [vmem:[#allocation2 + $0x300] sm:$0xff]
    %v205 = vld [vmem:[#allocation2 + $0x308] sm:$0xff]
    %v206 = vld [vmem:[#allocation2 + $0x310] sm:$0xff]
    %v207 = vld [vmem:[#allocation2 + $0x318] sm:$0xff]
    %v208 = vld [vmem:[#allocation2 + $0x320] sm:$0xff]
    %v209 = vld [vmem:[#allocation2 + $0x328] sm:$0xff]
    %v210 = vld [vmem:[#allocation2 + $0x330] sm:$0xff]
    %v211 = vld [vmem:[#allocation2 + $0x338] sm:$0xff]
    %v212 = vld [vmem:[#allocation2 + $0x340] sm:$0xff]
    %v213 = vld [vmem:[#allocation2 + $0x348] sm:$0xff]
    %v214 = vld [vmem:[#allocation2 + $0x350] sm:$0xff]
    %v215 = vld [vmem:[#allocation2 + $0x358] sm:$0xff]
    %v216 = vld [vmem:[#allocation2 + $0x360] sm:$0xff]
    %v217 = vld [vmem:[#allocation2 + $0x368] sm:$0xff]
    %v218 = vld [vmem:[#allocation2 + $0x370] sm:$0xff]
    %v219 = vld [vmem:[#allocation2 + $0x378] sm:$0xff]
    %v220 = vld [vmem:[#allocation2 + $0x380] sm:$0xff]
    %v221 = vld [vmem:[#allocation2 + $0x388] sm:$0xff]
    %v222 = vld [vmem:[#allocation2 + $0x390] sm:$0xff]
    %v223 = vld [vmem:[#allocation2 + $0x398] sm:$0xff]
    %v224 = vld [vmem:[#allocation2 + $0x3a0] sm:$0xff]
    %v225 = vld [vmem:[#allocation2 + $0x3a8] sm:$0xff]
    %v226 = vld [vmem:[#allocation2 + $0x3b0] sm:$0xff]
    %v227 = vld [vmem:[#allocation2 + $0x3b8] sm:$0xff]
    %v228 = vld [vmem:[#allocation2 + $0x3c0] sm:$0xff]
    %v229 = vld [vmem:[#allocation2 + $0x3c8] sm:$0xff]
    %v230 = vld [vmem:[#allocation2 + $0x3d0] sm:$0xff]
    %v231 = vld [vmem:[#allocation2 + $0x3d8] sm:$0xff]
    %v232 = vld [vmem:[#allocation2 + $0x3e0] sm:$0xff]
    %v233 = vld [vmem:[#allocation2 + $0x3e8] sm:$0xff]
    %v234 = vld [vmem:[#allocation2 + $0x3f0] sm:$0xff]
    %v235 = vld [vmem:[#allocation2 + $0x3f8] sm:$0xff]
    %v236 = vld [vmem:[#allocation2 + $0x400] sm:$0xff]
    %v237 = vld [vmem:[#allocation2 + $0x408] sm:$0xff]
    %v238 = vld [vmem:[#allocation2 + $0x410] sm:$0xff]
    %v239 = vld [vmem:[#allocation2 + $0x418] sm:$0xff]
    %v240 = vld [vmem:[#allocation2 + $0x420] sm:$0xff]
    %v241 = vld [vmem:[#allocation2 + $0x428] sm:$0xff]
    %v242 = vld [vmem:[#allocation2 + $0x430] sm:$0xff]
    %v243 = vld [vmem:[#allocation2 + $0x438] sm:$0xff]
    %v244 = vld [vmem:[#allocation2 + $0x440] sm:$0xff]
    %v245 = vld [vmem:[#allocation2 + $0x448] sm:$0xff]
    %v246 = vld [vmem:[#allocation2 + $0x450] sm:$0xff]
    %v247 = vld [vmem:[#allocation2 + $0x458] sm:$0xff]
    %v248 = vld [vmem:[#allocation2 + $0x460] sm:$0xff]
    %v249 = vld [vmem:[#allocation2 + $0x468] sm:$0xff]
    %v250 = vld [vmem:[#allocation2 + $0x470] sm:$0xff]
    %v251 = vld [vmem:[#allocation2 + $0x478] sm:$0xff]
    %v252 = vld [vmem:[#allocation2 + $0x480] sm:$0xff]
    %v253 = vld [vmem:[#allocation2 + $0x488] sm:$0xff]
    %v254 = vld [vmem:[#allocation2 + $0x490] sm:$0xff]
    %v255 = vld [vmem:[#allocation2 + $0x498] sm:$0xff]
    %v256 = vld [vmem:[#allocation2 + $0x4a0] sm:$0xff]
    %v257 = vld [vmem:[#allocation2 + $0x4a8] sm:$0xff]
    %v258 = vld [vmem:[#allocation2 + $0x4b0] sm:$0xff]
    %v259 = vld [vmem:[#allocation2 + $0x4b8] sm:$0xff]
    %v260 = vld [vmem:[#allocation2 + $0x4c0] sm:$0xff]
    %v261 = vld [vmem:[#allocation2 + $0x4c8] sm:$0xff]
    %v262 = vld [vmem:[#allocation2 + $0x4d0] sm:$0xff]
    %v263 = vld [vmem:[#allocation2 + $0x4d8] sm:$0xff]
    %v264 = vld [vmem:[#allocation2 + $0x4e0] sm:$0xff]
    %v265 = vld [vmem:[#allocation2 + $0x4e8] sm:$0xff]
    %v266 = vld [vmem:[#allocation2 + $0x4f0] sm:$0xff]
    %v267 = vld [vmem:[#allocation2 + $0x4f8] sm:$0xff]
    %v268 = vld [vmem:[#allocation2 + $0x500] sm:$0xff]
    %v269 = vld [vmem:[#allocation2 + $0x508] sm:$0xff]
    %v270 = vld [vmem:[#allocation2 + $0x510] sm:$0xff]
    %v271 = vld [vmem:[#allocation2 + $0x518] sm:$0xff]
    %v272 = vld [vmem:[#allocation2 + $0x520] sm:$0xff]
    %v273 = vld [vmem:[#allocation2 + $0x528] sm:$0xff]
    %v274 = vld [vmem:[#allocation2 + $0x530] sm:$0xff]
    %v275 = vld [vmem:[#allocation2 + $0x538] sm:$0xff]
    %v276 = vld [vmem:[#allocation2 + $0x540] sm:$0xff]
    %v277 = vld [vmem:[#allocation2 + $0x548] sm:$0xff]
    %v278 = vld [vmem:[#allocation2 + $0x550] sm:$0xff]
    %v279 = vld [vmem:[#allocation2 + $0x558] sm:$0xff]
    %v280 = vld [vmem:[#allocation2 + $0x560] sm:$0xff]
    %v281 = vld [vmem:[#allocation2 + $0x568] sm:$0xff]
    %v282 = vld [vmem:[#allocation2 + $0x570] sm:$0xff]
    %v283 = vld [vmem:[#allocation2 + $0x578] sm:$0xff]
    %v284 = vld [vmem:[#allocation2 + $0x580] sm:$0xff]
    %v285 = vld [vmem:[#allocation2 + $0x588] sm:$0xff]
    %v286 = vld [vmem:[#allocation2 + $0x590] sm:$0xff]
    %v287 = vld [vmem:[#allocation2 + $0x598] sm:$0xff]
    %v288 = vld [vmem:[#allocation2 + $0x5a0] sm:$0xff]
    %v289 = vld [vmem:[#allocation2 + $0x5a8] sm:$0xff]
    %v290 = vld [vmem:[#allocation2 + $0x5b0] sm:$0xff]
    %v291 = vld [vmem:[#allocation2 + $0x5b8] sm:$0xff]
    %v292 = vld [vmem:[#allocation2 + $0x5c0] sm:$0xff]
    %v293 = vld [vmem:[#allocation2 + $0x5c8] sm:$0xff]
    %v294 = vld [vmem:[#allocation2 + $0x5d0] sm:$0xff]
    %v295 = vld [vmem:[#allocation2 + $0x5d8] sm:$0xff]
    %v296 = vld [vmem:[#allocation2 + $0x5e0] sm:$0xff]
    %v297 = vld [vmem:[#allocation2 + $0x5e8] sm:$0xff]
    %v298 = vld [vmem:[#allocation2 + $0x5f0] sm:$0xff]
    %v299 = vld [vmem:[#allocation2 + $0x5f8] sm:$0xff]
    %v300 = vld [vmem:[#allocation2 + $0x600] sm:$0xff]
    %v301 = vld [vmem:[#allocation2 + $0x608] sm:$0xff]
    %v302 = vld [vmem:[#allocation2 + $0x610] sm:$0xff]
    %v303 = vld [vmem:[#allocation2 + $0x618] sm:$0xff]
    %v304 = vld [vmem:[#allocation2 + $0x620] sm:$0xff]
    %v305 = vld [vmem:[#allocation2 + $0x628] sm:$0xff]
    %v306 = vld [vmem:[#allocation2 + $0x630] sm:$0xff]
    %v307 = vld [vmem:[#allocation2 + $0x638] sm:$0xff]
    %v308 = vld [vmem:[#allocation2 + $0x640] sm:$0xff]
    %v309 = vld [vmem:[#allocation2 + $0x648] sm:$0xff]
    %v310 = vld [vmem:[#allocation2 + $0x650] sm:$0xff]
    %v311 = vld [vmem:[#allocation2 + $0x658] sm:$0xff]
    %v312 = vld [vmem:[#allocation2 + $0x660] sm:$0xff]
    %v313 = vld [vmem:[#allocation2 + $0x668] sm:$0xff]
    %v314 = vld [vmem:[#allocation2 + $0x670] sm:$0xff]
    %v315 = vld [vmem:[#allocation2 + $0x678] sm:$0xff]
    %v316 = vld [vmem:[#allocation2 + $0x680] sm:$0xff]
    %v317 = vld [vmem:[#allocation2 + $0x688] sm:$0xff]
    %v318 = vld [vmem:[#allocation2 + $0x690] sm:$0xff]
    %v319 = vld [vmem:[#allocation2 + $0x698] sm:$0xff]
    %v320 = vld [vmem:[#allocation2 + $0x6a0] sm:$0xff]
    %v321 = vld [vmem:[#allocation2 + $0x6a8] sm:$0xff]
    %v322 = vld [vmem:[#allocation2 + $0x6b0] sm:$0xff]
    %v323 = vld [vmem:[#allocation2 + $0x6b8] sm:$0xff]
    %v324 = vld [vmem:[#allocation2 + $0x6c0] sm:$0xff]
    %v325 = vld [vmem:[#allocation2 + $0x6c8] sm:$0xff]
    %v326 = vld [vmem:[#allocation2 + $0x6d0] sm:$0xff]
    %v327 = vld [vmem:[#allocation2 + $0x6d8] sm:$0xff]
    %v328 = vld [vmem:[#allocation2 + $0x6e0] sm:$0xff]
    %v329 = vld [vmem:[#allocation2 + $0x6e8] sm:$0xff]
    %v330 = vld [vmem:[#allocation2 + $0x6f0] sm:$0xff]
    %v331 = vld [vmem:[#allocation2 + $0x6f8] sm:$0xff]
    %v332 = vld [vmem:[#allocation2 + $0x700] sm:$0xff]
    %v333 = vld [vmem:[#allocation2 + $0x708] sm:$0xff]
    %v334 = vld [vmem:[#allocation2 + $0x710] sm:$0xff]
    %v335 = vld [vmem:[#allocation2 + $0x718] sm:$0xff]
    %v336 = vld [vmem:[#allocation2 + $0x720] sm:$0xff]
    %v337 = vld [vmem:[#allocation2 + $0x728] sm:$0xff]
    %v338 = vld [vmem:[#allocation2 + $0x730] sm:$0xff]
    %v339 = vld [vmem:[#allocation2 + $0x738] sm:$0xff]
    %v340 = vld [vmem:[#allocation2 + $0x740] sm:$0xff]
    %v341 = vld [vmem:[#allocation2 + $0x748] sm:$0xff]
    %v342 = vld [vmem:[#allocation2 + $0x750] sm:$0xff]
    %v343 = vld [vmem:[#allocation2 + $0x758] sm:$0xff]
    %v344 = vld [vmem:[#allocation2 + $0x760] sm:$0xff]
    %v345 = vld [vmem:[#allocation2 + $0x768] sm:$0xff]
    %v346 = vld [vmem:[#allocation2 + $0x770] sm:$0xff]
    %v347 = vld [vmem:[#allocation2 + $0x778] sm:$0xff]
    %v348 = vld [vmem:[#allocation2 + $0x780] sm:$0xff]
    %v349 = vld [vmem:[#allocation2 + $0x788] sm:$0xff]
    %v350 = vld [vmem:[#allocation2 + $0x790] sm:$0xff]
    %v351 = vld [vmem:[#allocation2 + $0x798] sm:$0xff]
    %v352 = vld [vmem:[#allocation2 + $0x7a0] sm:$0xff]
    %v353 = vld [vmem:[#allocation2 + $0x7a8] sm:$0xff]
    %v354 = vld [vmem:[#allocation2 + $0x7b0] sm:$0xff]
    %v355 = vld [vmem:[#allocation2 + $0x7b8] sm:$0xff]
    %v356 = vld [vmem:[#allocation2 + $0x7c0] sm:$0xff]
    %v357 = vld [vmem:[#allocation2 + $0x7c8] sm:$0xff]
    %v358 = vld [vmem:[#allocation2 + $0x7d0] sm:$0xff]
    %v359 = vld [vmem:[#allocation2 + $0x7d8] sm:$0xff]
    %v360 = vld [vmem:[#allocation2 + $0x7e0] sm:$0xff]
    %v361 = vld [vmem:[#allocation2 + $0x7e8] sm:$0xff]
    %v362 = vld [vmem:[#allocation2 + $0x7f0] sm:$0xff]
    %v363 = vld [vmem:[#allocation2 + $0x7f8] sm:$0xff]
    %v364 = vld [vmem:[%s2] sm:$0xf]
    %v366 = vlaneseq
    %v367 = vshrl.u32 %v366, 7
    %v368 = vsub.s32 0, %v367
    %v369 = vrot.slane %v364, %v368
    %v370 = vlaneseq
    %v371 = vshrl.u32 %v370, 7
    %v372 = vsub.s32 1, %v371
    %v373 = vrot.slane %v364, %v372
    %v374 = vlaneseq
    %v375 = vshrl.u32 %v374, 7
    %v376 = vsub.s32 2, %v375
    %v377 = vrot.slane %v364, %v376
    %v378 = vlaneseq
    %v379 = vshrl.u32 %v378, 7
    %v380 = vsub.s32 3, %v379
    %v381 = vrot.slane %v364, %v380
    %v394 = vunpack.c.l.b16 %v100
    %v395 = vunpack.c.h.b16 %v100
    %v396 = vunpack.c.l.b16 %v101
    %v397 = vunpack.c.h.b16 %v101
    %v398 = vunpack.c.l.b16 %v102
    %v399 = vunpack.c.h.b16 %v102
    %v400 = vunpack.c.l.b16 %v103
    %v401 = vunpack.c.h.b16 %v103
    %v402 = vunpack.c.l.b16 %v104
    %v403 = vunpack.c.h.b16 %v104
    %v404 = vunpack.c.l.b16 %v105
    %v405 = vunpack.c.h.b16 %v105
    %v406 = vunpack.c.l.b16 %v106
    %v407 = vunpack.c.h.b16 %v106
    %v408 = vunpack.c.l.b16 %v107
    %v409 = vunpack.c.h.b16 %v107
    %v410 = vpack.c.b16 %v402, %v394
    %v411 = vpack.c.b16 %v403, %v395
    %v412 = vpack.c.b16 %v404, %v396
    %v413 = vpack.c.b16 %v405, %v397
    %v414 = vpack.c.b16 %v406, %v398
    %v415 = vpack.c.b16 %v407, %v399
    %v416 = vpack.c.b16 %v408, %v400
    %v417 = vpack.c.b16 %v409, %v401
    %v682 = vunpack.c.l.b16 %v108
    %v683 = vunpack.c.h.b16 %v108
    %v684 = vunpack.c.l.b16 %v109
    %v685 = vunpack.c.h.b16 %v109
    %v686 = vunpack.c.l.b16 %v110
    %v687 = vunpack.c.h.b16 %v110
    %v688 = vunpack.c.l.b16 %v111
    %v689 = vunpack.c.h.b16 %v111
    %v690 = vunpack.c.l.b16 %v112
    %v691 = vunpack.c.h.b16 %v112
    %v692 = vunpack.c.l.b16 %v113
    %v693 = vunpack.c.h.b16 %v113
    %v694 = vunpack.c.l.b16 %v114
    %v695 = vunpack.c.h.b16 %v114
    %v696 = vunpack.c.l.b16 %v115
    %v697 = vunpack.c.h.b16 %v115
    %v698 = vunpack.c.l.b16 %v116
    %v699 = vunpack.c.h.b16 %v116
    %v700 = vunpack.c.l.b16 %v117
    %v701 = vunpack.c.h.b16 %v117
    %v702 = vunpack.c.l.b16 %v118
    %v703 = vunpack.c.h.b16 %v118
    %v704 = vunpack.c.l.b16 %v119
    %v705 = vunpack.c.h.b16 %v119
    %v706 = vunpack.c.l.b16 %v120
    %v707 = vunpack.c.h.b16 %v120
    %v708 = vunpack.c.l.b16 %v121
    %v709 = vunpack.c.h.b16 %v121
    %v710 = vunpack.c.l.b16 %v122
    %v711 = vunpack.c.h.b16 %v122
    %v712 = vunpack.c.l.b16 %v123
    %v713 = vunpack.c.h.b16 %v123
    %v714 = vunpack.c.l.b16 %v124
    %v715 = vunpack.c.h.b16 %v124
    %v716 = vunpack.c.l.b16 %v125
    %v717 = vunpack.c.h.b16 %v125
    %v718 = vunpack.c.l.b16 %v126
    %v719 = vunpack.c.h.b16 %v126
    %v720 = vunpack.c.l.b16 %v127
    %v721 = vunpack.c.h.b16 %v127
    %v722 = vunpack.c.l.b16 %v128
    %v723 = vunpack.c.h.b16 %v128
    %v724 = vunpack.c.l.b16 %v129
    %v725 = vunpack.c.h.b16 %v129
    %v726 = vunpack.c.l.b16 %v130
    %v727 = vunpack.c.h.b16 %v130
    %v728 = vunpack.c.l.b16 %v131
    %v729 = vunpack.c.h.b16 %v131
    %v730 = vunpack.c.l.b16 %v132
    %v731 = vunpack.c.h.b16 %v132
    %v732 = vunpack.c.l.b16 %v133
    %v733 = vunpack.c.h.b16 %v133
    %v734 = vunpack.c.l.b16 %v134
    %v735 = vunpack.c.h.b16 %v134
    %v736 = vunpack.c.l.b16 %v135
    %v737 = vunpack.c.h.b16 %v135
    %v738 = vunpack.c.l.b16 %v136
    %v739 = vunpack.c.h.b16 %v136
    %v740 = vunpack.c.l.b16 %v137
    %v741 = vunpack.c.h.b16 %v137
    %v742 = vunpack.c.l.b16 %v138
    %v743 = vunpack.c.h.b16 %v138
    %v744 = vunpack.c.l.b16 %v139
    %v745 = vunpack.c.h.b16 %v139
    %v746 = vunpack.c.l.b16 %v140
    %v747 = vunpack.c.h.b16 %v140
    %v748 = vunpack.c.l.b16 %v141
    %v749 = vunpack.c.h.b16 %v141
    %v750 = vunpack.c.l.b16 %v142
    %v751 = vunpack.c.h.b16 %v142
    %v752 = vunpack.c.l.b16 %v143
    %v753 = vunpack.c.h.b16 %v143
    %v754 = vunpack.c.l.b16 %v144
    %v755 = vunpack.c.h.b16 %v144
    %v756 = vunpack.c.l.b16 %v145
    %v757 = vunpack.c.h.b16 %v145
    %v758 = vunpack.c.l.b16 %v146
    %v759 = vunpack.c.h.b16 %v146
    %v760 = vunpack.c.l.b16 %v147
    %v761 = vunpack.c.h.b16 %v147
    %v762 = vunpack.c.l.b16 %v148
    %v763 = vunpack.c.h.b16 %v148
    %v764 = vunpack.c.l.b16 %v149
    %v765 = vunpack.c.h.b16 %v149
    %v766 = vunpack.c.l.b16 %v150
    %v767 = vunpack.c.h.b16 %v150
    %v768 = vunpack.c.l.b16 %v151
    %v769 = vunpack.c.h.b16 %v151
    %v770 = vunpack.c.l.b16 %v152
    %v771 = vunpack.c.h.b16 %v152
    %v772 = vunpack.c.l.b16 %v153
    %v773 = vunpack.c.h.b16 %v153
    %v774 = vunpack.c.l.b16 %v154
    %v775 = vunpack.c.h.b16 %v154
    %v776 = vunpack.c.l.b16 %v155
    %v777 = vunpack.c.h.b16 %v155
    %v778 = vunpack.c.l.b16 %v156
    %v779 = vunpack.c.h.b16 %v156
    %v780 = vunpack.c.l.b16 %v157
    %v781 = vunpack.c.h.b16 %v157
    %v782 = vunpack.c.l.b16 %v158
    %v783 = vunpack.c.h.b16 %v158
    %v784 = vunpack.c.l.b16 %v159
    %v785 = vunpack.c.h.b16 %v159
    %v786 = vunpack.c.l.b16 %v160
    %v787 = vunpack.c.h.b16 %v160
    %v788 = vunpack.c.l.b16 %v161
    %v789 = vunpack.c.h.b16 %v161
    %v790 = vunpack.c.l.b16 %v162
    %v791 = vunpack.c.h.b16 %v162
    %v792 = vunpack.c.l.b16 %v163
    %v793 = vunpack.c.h.b16 %v163
    %v794 = vunpack.c.l.b16 %v164
    %v795 = vunpack.c.h.b16 %v164
    %v796 = vunpack.c.l.b16 %v165
    %v797 = vunpack.c.h.b16 %v165
    %v798 = vunpack.c.l.b16 %v166
    %v799 = vunpack.c.h.b16 %v166
    %v800 = vunpack.c.l.b16 %v167
    %v801 = vunpack.c.h.b16 %v167
    %v802 = vunpack.c.l.b16 %v168
    %v803 = vunpack.c.h.b16 %v168
    %v804 = vunpack.c.l.b16 %v169
    %v805 = vunpack.c.h.b16 %v169
    %v806 = vunpack.c.l.b16 %v170
    %v807 = vunpack.c.h.b16 %v170
    %v808 = vunpack.c.l.b16 %v171
    %v809 = vunpack.c.h.b16 %v171
    %v810 = vunpack.c.l.b16 %v172
    %v811 = vunpack.c.h.b16 %v172
    %v812 = vunpack.c.l.b16 %v173
    %v813 = vunpack.c.h.b16 %v173
    %v814 = vunpack.c.l.b16 %v174
    %v815 = vunpack.c.h.b16 %v174
    %v816 = vunpack.c.l.b16 %v175
    %v817 = vunpack.c.h.b16 %v175
    %v818 = vunpack.c.l.b16 %v176
    %v819 = vunpack.c.h.b16 %v176
    %v820 = vunpack.c.l.b16 %v177
    %v821 = vunpack.c.h.b16 %v177
    %v822 = vunpack.c.l.b16 %v178
    %v823 = vunpack.c.h.b16 %v178
    %v824 = vunpack.c.l.b16 %v179
    %v825 = vunpack.c.h.b16 %v179
    %v826 = vunpack.c.l.b16 %v180
    %v827 = vunpack.c.h.b16 %v180
    %v828 = vunpack.c.l.b16 %v181
    %v829 = vunpack.c.h.b16 %v181
    %v830 = vunpack.c.l.b16 %v182
    %v831 = vunpack.c.h.b16 %v182
    %v832 = vunpack.c.l.b16 %v183
    %v833 = vunpack.c.h.b16 %v183
    %v834 = vunpack.c.l.b16 %v184
    %v835 = vunpack.c.h.b16 %v184
    %v836 = vunpack.c.l.b16 %v185
    %v837 = vunpack.c.h.b16 %v185
    %v838 = vunpack.c.l.b16 %v186
    %v839 = vunpack.c.h.b16 %v186
    %v840 = vunpack.c.l.b16 %v187
    %v841 = vunpack.c.h.b16 %v187
    %v842 = vunpack.c.l.b16 %v188
    %v843 = vunpack.c.h.b16 %v188
    %v844 = vunpack.c.l.b16 %v189
    %v845 = vunpack.c.h.b16 %v189
    %v846 = vunpack.c.l.b16 %v190
    %v847 = vunpack.c.h.b16 %v190
    %v848 = vunpack.c.l.b16 %v191
    %v849 = vunpack.c.h.b16 %v191
    %v850 = vunpack.c.l.b16 %v192
    %v851 = vunpack.c.h.b16 %v192
    %v852 = vunpack.c.l.b16 %v193
    %v853 = vunpack.c.h.b16 %v193
    %v854 = vunpack.c.l.b16 %v194
    %v855 = vunpack.c.h.b16 %v194
    %v856 = vunpack.c.l.b16 %v195
    %v857 = vunpack.c.h.b16 %v195
    %v858 = vunpack.c.l.b16 %v196
    %v859 = vunpack.c.h.b16 %v196
    %v860 = vunpack.c.l.b16 %v197
    %v861 = vunpack.c.h.b16 %v197
    %v862 = vunpack.c.l.b16 %v198
    %v863 = vunpack.c.h.b16 %v198
    %v864 = vunpack.c.l.b16 %v199
    %v865 = vunpack.c.h.b16 %v199
    %v866 = vunpack.c.l.b16 %v200
    %v867 = vunpack.c.h.b16 %v200
    %v868 = vunpack.c.l.b16 %v201
    %v869 = vunpack.c.h.b16 %v201
    %v870 = vunpack.c.l.b16 %v202
    %v871 = vunpack.c.h.b16 %v202
    %v872 = vunpack.c.l.b16 %v203
    %v873 = vunpack.c.h.b16 %v203
    %v874 = vunpack.c.l.b16 %v204
    %v875 = vunpack.c.h.b16 %v204
    %v876 = vunpack.c.l.b16 %v205
    %v877 = vunpack.c.h.b16 %v205
    %v878 = vunpack.c.l.b16 %v206
    %v879 = vunpack.c.h.b16 %v206
    %v880 = vunpack.c.l.b16 %v207
    %v881 = vunpack.c.h.b16 %v207
    %v882 = vunpack.c.l.b16 %v208
    %v883 = vunpack.c.h.b16 %v208
    %v884 = vunpack.c.l.b16 %v209
    %v885 = vunpack.c.h.b16 %v209
    %v886 = vunpack.c.l.b16 %v210
    %v887 = vunpack.c.h.b16 %v210
    %v888 = vunpack.c.l.b16 %v211
    %v889 = vunpack.c.h.b16 %v211
    %v890 = vunpack.c.l.b16 %v212
    %v891 = vunpack.c.h.b16 %v212
    %v892 = vunpack.c.l.b16 %v213
    %v893 = vunpack.c.h.b16 %v213
    %v894 = vunpack.c.l.b16 %v214
    %v895 = vunpack.c.h.b16 %v214
    %v896 = vunpack.c.l.b16 %v215
    %v897 = vunpack.c.h.b16 %v215
    %v898 = vunpack.c.l.b16 %v216
    %v899 = vunpack.c.h.b16 %v216
    %v900 = vunpack.c.l.b16 %v217
    %v901 = vunpack.c.h.b16 %v217
    %v902 = vunpack.c.l.b16 %v218
    %v903 = vunpack.c.h.b16 %v218
    %v904 = vunpack.c.l.b16 %v219
    %v905 = vunpack.c.h.b16 %v219
    %v906 = vunpack.c.l.b16 %v220
    %v907 = vunpack.c.h.b16 %v220
    %v908 = vunpack.c.l.b16 %v221
    %v909 = vunpack.c.h.b16 %v221
    %v910 = vunpack.c.l.b16 %v222
    %v911 = vunpack.c.h.b16 %v222
    %v912 = vunpack.c.l.b16 %v223
    %v913 = vunpack.c.h.b16 %v223
    %v914 = vunpack.c.l.b16 %v224
    %v915 = vunpack.c.h.b16 %v224
    %v916 = vunpack.c.l.b16 %v225
    %v917 = vunpack.c.h.b16 %v225
    %v918 = vunpack.c.l.b16 %v226
    %v919 = vunpack.c.h.b16 %v226
    %v920 = vunpack.c.l.b16 %v227
    %v921 = vunpack.c.h.b16 %v227
    %v922 = vunpack.c.l.b16 %v228
    %v923 = vunpack.c.h.b16 %v228
    %v924 = vunpack.c.l.b16 %v229
    %v925 = vunpack.c.h.b16 %v229
    %v926 = vunpack.c.l.b16 %v230
    %v927 = vunpack.c.h.b16 %v230
    %v928 = vunpack.c.l.b16 %v231
    %v929 = vunpack.c.h.b16 %v231
    %v930 = vunpack.c.l.b16 %v232
    %v931 = vunpack.c.h.b16 %v232
    %v932 = vunpack.c.l.b16 %v233
    %v933 = vunpack.c.h.b16 %v233
    %v934 = vunpack.c.l.b16 %v234
    %v935 = vunpack.c.h.b16 %v234
    %v936 = vunpack.c.l.b16 %v235
    %v937 = vunpack.c.h.b16 %v235
    %v938 = vunpack.c.l.b16 %v236
    %v939 = vunpack.c.h.b16 %v236
    %v940 = vunpack.c.l.b16 %v237
    %v941 = vunpack.c.h.b16 %v237
    %v942 = vunpack.c.l.b16 %v238
    %v943 = vunpack.c.h.b16 %v238
    %v944 = vunpack.c.l.b16 %v239
    %v945 = vunpack.c.h.b16 %v239
    %v946 = vunpack.c.l.b16 %v240
    %v947 = vunpack.c.h.b16 %v240
    %v948 = vunpack.c.l.b16 %v241
    %v949 = vunpack.c.h.b16 %v241
    %v950 = vunpack.c.l.b16 %v242
    %v951 = vunpack.c.h.b16 %v242
    %v952 = vunpack.c.l.b16 %v243
    %v953 = vunpack.c.h.b16 %v243
    %v954 = vunpack.c.l.b16 %v244
    %v955 = vunpack.c.h.b16 %v244
    %v956 = vunpack.c.l.b16 %v245
    %v957 = vunpack.c.h.b16 %v245
    %v958 = vunpack.c.l.b16 %v246
    %v959 = vunpack.c.h.b16 %v246
    %v960 = vunpack.c.l.b16 %v247
    %v961 = vunpack.c.h.b16 %v247
    %v962 = vunpack.c.l.b16 %v248
    %v963 = vunpack.c.h.b16 %v248
    %v964 = vunpack.c.l.b16 %v249
    %v965 = vunpack.c.h.b16 %v249
    %v966 = vunpack.c.l.b16 %v250
    %v967 = vunpack.c.h.b16 %v250
    %v968 = vunpack.c.l.b16 %v251
    %v969 = vunpack.c.h.b16 %v251
    %v970 = vunpack.c.l.b16 %v252
    %v971 = vunpack.c.h.b16 %v252
    %v972 = vunpack.c.l.b16 %v253
    %v973 = vunpack.c.h.b16 %v253
    %v974 = vunpack.c.l.b16 %v254
    %v975 = vunpack.c.h.b16 %v254
    %v976 = vunpack.c.l.b16 %v255
    %v977 = vunpack.c.h.b16 %v255
    %v978 = vunpack.c.l.b16 %v256
    %v979 = vunpack.c.h.b16 %v256
    %v980 = vunpack.c.l.b16 %v257
    %v981 = vunpack.c.h.b16 %v257
    %v982 = vunpack.c.l.b16 %v258
    %v983 = vunpack.c.h.b16 %v258
    %v984 = vunpack.c.l.b16 %v259
    %v985 = vunpack.c.h.b16 %v259
    %v986 = vunpack.c.l.b16 %v260
    %v987 = vunpack.c.h.b16 %v260
    %v988 = vunpack.c.l.b16 %v261
    %v989 = vunpack.c.h.b16 %v261
    %v990 = vunpack.c.l.b16 %v262
    %v991 = vunpack.c.h.b16 %v262
    %v992 = vunpack.c.l.b16 %v263
    %v993 = vunpack.c.h.b16 %v263
    %v994 = vunpack.c.l.b16 %v264
    %v995 = vunpack.c.h.b16 %v264
    %v996 = vunpack.c.l.b16 %v265
    %v997 = vunpack.c.h.b16 %v265
    %v998 = vunpack.c.l.b16 %v266
    %v999 = vunpack.c.h.b16 %v266
    %v1000 = vunpack.c.l.b16 %v267
    %v1001 = vunpack.c.h.b16 %v267
    %v1002 = vunpack.c.l.b16 %v268
    %v1003 = vunpack.c.h.b16 %v268
    %v1004 = vunpack.c.l.b16 %v269
    %v1005 = vunpack.c.h.b16 %v269
    %v1006 = vunpack.c.l.b16 %v270
    %v1007 = vunpack.c.h.b16 %v270
    %v1008 = vunpack.c.l.b16 %v271
    %v1009 = vunpack.c.h.b16 %v271
    %v1010 = vunpack.c.l.b16 %v272
    %v1011 = vunpack.c.h.b16 %v272
    %v1012 = vunpack.c.l.b16 %v273
    %v1013 = vunpack.c.h.b16 %v273
    %v1014 = vunpack.c.l.b16 %v274
    %v1015 = vunpack.c.h.b16 %v274
    %v1016 = vunpack.c.l.b16 %v275
    %v1017 = vunpack.c.h.b16 %v275
    %v1018 = vunpack.c.l.b16 %v276
    %v1019 = vunpack.c.h.b16 %v276
    %v1020 = vunpack.c.l.b16 %v277
    %v1021 = vunpack.c.h.b16 %v277
    %v1022 = vunpack.c.l.b16 %v278
    %v1023 = vunpack.c.h.b16 %v278
    %v1024 = vunpack.c.l.b16 %v279
    %v1025 = vunpack.c.h.b16 %v279
    %v1026 = vunpack.c.l.b16 %v280
    %v1027 = vunpack.c.h.b16 %v280
    %v1028 = vunpack.c.l.b16 %v281
    %v1029 = vunpack.c.h.b16 %v281
    %v1030 = vunpack.c.l.b16 %v282
    %v1031 = vunpack.c.h.b16 %v282
    %v1032 = vunpack.c.l.b16 %v283
    %v1033 = vunpack.c.h.b16 %v283
    %v1034 = vunpack.c.l.b16 %v284
    %v1035 = vunpack.c.h.b16 %v284
    %v1036 = vunpack.c.l.b16 %v285
    %v1037 = vunpack.c.h.b16 %v285
    %v1038 = vunpack.c.l.b16 %v286
    %v1039 = vunpack.c.h.b16 %v286
    %v1040 = vunpack.c.l.b16 %v287
    %v1041 = vunpack.c.h.b16 %v287
    %v1042 = vunpack.c.l.b16 %v288
    %v1043 = vunpack.c.h.b16 %v288
    %v1044 = vunpack.c.l.b16 %v289
    %v1045 = vunpack.c.h.b16 %v289
    %v1046 = vunpack.c.l.b16 %v290
    %v1047 = vunpack.c.h.b16 %v290
    %v1048 = vunpack.c.l.b16 %v291
    %v1049 = vunpack.c.h.b16 %v291
    %v1050 = vunpack.c.l.b16 %v292
    %v1051 = vunpack.c.h.b16 %v292
    %v1052 = vunpack.c.l.b16 %v293
    %v1053 = vunpack.c.h.b16 %v293
    %v1054 = vunpack.c.l.b16 %v294
    %v1055 = vunpack.c.h.b16 %v294
    %v1056 = vunpack.c.l.b16 %v295
    %v1057 = vunpack.c.h.b16 %v295
    %v1058 = vunpack.c.l.b16 %v296
    %v1059 = vunpack.c.h.b16 %v296
    %v1060 = vunpack.c.l.b16 %v297
    %v1061 = vunpack.c.h.b16 %v297
    %v1062 = vunpack.c.l.b16 %v298
    %v1063 = vunpack.c.h.b16 %v298
    %v1064 = vunpack.c.l.b16 %v299
    %v1065 = vunpack.c.h.b16 %v299
    %v1066 = vunpack.c.l.b16 %v300
    %v1067 = vunpack.c.h.b16 %v300
    %v1068 = vunpack.c.l.b16 %v301
    %v1069 = vunpack.c.h.b16 %v301
    %v1070 = vunpack.c.l.b16 %v302
    %v1071 = vunpack.c.h.b16 %v302
    %v1072 = vunpack.c.l.b16 %v303
    %v1073 = vunpack.c.h.b16 %v303
    %v1074 = vunpack.c.l.b16 %v304
    %v1075 = vunpack.c.h.b16 %v304
    %v1076 = vunpack.c.l.b16 %v305
    %v1077 = vunpack.c.h.b16 %v305
    %v1078 = vunpack.c.l.b16 %v306
    %v1079 = vunpack.c.h.b16 %v306
    %v1080 = vunpack.c.l.b16 %v307
    %v1081 = vunpack.c.h.b16 %v307
    %v1082 = vunpack.c.l.b16 %v308
    %v1083 = vunpack.c.h.b16 %v308
    %v1084 = vunpack.c.l.b16 %v309
    %v1085 = vunpack.c.h.b16 %v309
    %v1086 = vunpack.c.l.b16 %v310
    %v1087 = vunpack.c.h.b16 %v310
    %v1088 = vunpack.c.l.b16 %v311
    %v1089 = vunpack.c.h.b16 %v311
    %v1090 = vunpack.c.l.b16 %v312
    %v1091 = vunpack.c.h.b16 %v312
    %v1092 = vunpack.c.l.b16 %v313
    %v1093 = vunpack.c.h.b16 %v313
    %v1094 = vunpack.c.l.b16 %v314
    %v1095 = vunpack.c.h.b16 %v314
    %v1096 = vunpack.c.l.b16 %v315
    %v1097 = vunpack.c.h.b16 %v315
    %v1098 = vunpack.c.l.b16 %v316
    %v1099 = vunpack.c.h.b16 %v316
    %v1100 = vunpack.c.l.b16 %v317
    %v1101 = vunpack.c.h.b16 %v317
    %v1102 = vunpack.c.l.b16 %v318
    %v1103 = vunpack.c.h.b16 %v318
    %v1104 = vunpack.c.l.b16 %v319
    %v1105 = vunpack.c.h.b16 %v319
    %v1106 = vunpack.c.l.b16 %v320
    %v1107 = vunpack.c.h.b16 %v320
    %v1108 = vunpack.c.l.b16 %v321
    %v1109 = vunpack.c.h.b16 %v321
    %v1110 = vunpack.c.l.b16 %v322
    %v1111 = vunpack.c.h.b16 %v322
    %v1112 = vunpack.c.l.b16 %v323
    %v1113 = vunpack.c.h.b16 %v323
    %v1114 = vunpack.c.l.b16 %v324
    %v1115 = vunpack.c.h.b16 %v324
    %v1116 = vunpack.c.l.b16 %v325
    %v1117 = vunpack.c.h.b16 %v325
    %v1118 = vunpack.c.l.b16 %v326
    %v1119 = vunpack.c.h.b16 %v326
    %v1120 = vunpack.c.l.b16 %v327
    %v1121 = vunpack.c.h.b16 %v327
    %v1122 = vunpack.c.l.b16 %v328
    %v1123 = vunpack.c.h.b16 %v328
    %v1124 = vunpack.c.l.b16 %v329
    %v1125 = vunpack.c.h.b16 %v329
    %v1126 = vunpack.c.l.b16 %v330
    %v1127 = vunpack.c.h.b16 %v330
    %v1128 = vunpack.c.l.b16 %v331
    %v1129 = vunpack.c.h.b16 %v331
    %v1130 = vunpack.c.l.b16 %v332
    %v1131 = vunpack.c.h.b16 %v332
    %v1132 = vunpack.c.l.b16 %v333
    %v1133 = vunpack.c.h.b16 %v333
    %v1134 = vunpack.c.l.b16 %v334
    %v1135 = vunpack.c.h.b16 %v334
    %v1136 = vunpack.c.l.b16 %v335
    %v1137 = vunpack.c.h.b16 %v335
    %v1138 = vunpack.c.l.b16 %v336
    %v1139 = vunpack.c.h.b16 %v336
    %v1140 = vunpack.c.l.b16 %v337
    %v1141 = vunpack.c.h.b16 %v337
    %v1142 = vunpack.c.l.b16 %v338
    %v1143 = vunpack.c.h.b16 %v338
    %v1144 = vunpack.c.l.b16 %v339
    %v1145 = vunpack.c.h.b16 %v339
    %v1146 = vunpack.c.l.b16 %v340
    %v1147 = vunpack.c.h.b16 %v340
    %v1148 = vunpack.c.l.b16 %v341
    %v1149 = vunpack.c.h.b16 %v341
    %v1150 = vunpack.c.l.b16 %v342
    %v1151 = vunpack.c.h.b16 %v342
    %v1152 = vunpack.c.l.b16 %v343
    %v1153 = vunpack.c.h.b16 %v343
    %v1154 = vunpack.c.l.b16 %v344
    %v1155 = vunpack.c.h.b16 %v344
    %v1156 = vunpack.c.l.b16 %v345
    %v1157 = vunpack.c.h.b16 %v345
    %v1158 = vunpack.c.l.b16 %v346
    %v1159 = vunpack.c.h.b16 %v346
    %v1160 = vunpack.c.l.b16 %v347
    %v1161 = vunpack.c.h.b16 %v347
    %v1162 = vunpack.c.l.b16 %v348
    %v1163 = vunpack.c.h.b16 %v348
    %v1164 = vunpack.c.l.b16 %v349
    %v1165 = vunpack.c.h.b16 %v349
    %v1166 = vunpack.c.l.b16 %v350
    %v1167 = vunpack.c.h.b16 %v350
    %v1168 = vunpack.c.l.b16 %v351
    %v1169 = vunpack.c.h.b16 %v351
    %v1170 = vunpack.c.l.b16 %v352
    %v1171 = vunpack.c.h.b16 %v352
    %v1172 = vunpack.c.l.b16 %v353
    %v1173 = vunpack.c.h.b16 %v353
    %v1174 = vunpack.c.l.b16 %v354
    %v1175 = vunpack.c.h.b16 %v354
    %v1176 = vunpack.c.l.b16 %v355
    %v1177 = vunpack.c.h.b16 %v355
    %v1178 = vunpack.c.l.b16 %v356
    %v1179 = vunpack.c.h.b16 %v356
    %v1180 = vunpack.c.l.b16 %v357
    %v1181 = vunpack.c.h.b16 %v357
    %v1182 = vunpack.c.l.b16 %v358
    %v1183 = vunpack.c.h.b16 %v358
    %v1184 = vunpack.c.l.b16 %v359
    %v1185 = vunpack.c.h.b16 %v359
    %v1186 = vunpack.c.l.b16 %v360
    %v1187 = vunpack.c.h.b16 %v360
    %v1188 = vunpack.c.l.b16 %v361
    %v1189 = vunpack.c.h.b16 %v361
    %v1190 = vunpack.c.l.b16 %v362
    %v1191 = vunpack.c.h.b16 %v362
    %v1192 = vunpack.c.l.b16 %v363
    %v1193 = vunpack.c.h.b16 %v363
    %v1194 = vpack.c.b16 %v686, %v682
    %v1195 = vpack.c.b16 %v687, %v683
    %v1196 = vpack.c.b16 %v688, %v684
    %v1197 = vpack.c.b16 %v689, %v685
    %v1198 = vpack.c.b16 %v694, %v690
    %v1199 = vpack.c.b16 %v695, %v691
    %v1200 = vpack.c.b16 %v696, %v692
    %v1201 = vpack.c.b16 %v697, %v693
    %v1202 = vpack.c.b16 %v702, %v698
    %v1203 = vpack.c.b16 %v703, %v699
    %v1204 = vpack.c.b16 %v704, %v700
    %v1205 = vpack.c.b16 %v705, %v701
    %v1206 = vpack.c.b16 %v710, %v706
    %v1207 = vpack.c.b16 %v711, %v707
    %v1208 = vpack.c.b16 %v712, %v708
    %v1209 = vpack.c.b16 %v713, %v709
    %v1210 = vpack.c.b16 %v718, %v714
    %v1211 = vpack.c.b16 %v719, %v715
    %v1212 = vpack.c.b16 %v720, %v716
    %v1213 = vpack.c.b16 %v721, %v717
    %v1214 = vpack.c.b16 %v726, %v722
    %v1215 = vpack.c.b16 %v727, %v723
    %v1216 = vpack.c.b16 %v728, %v724
    %v1217 = vpack.c.b16 %v729, %v725
    %v1218 = vpack.c.b16 %v734, %v730
    %v1219 = vpack.c.b16 %v735, %v731
    %v1220 = vpack.c.b16 %v736, %v732
    %v1221 = vpack.c.b16 %v737, %v733
    %v1222 = vpack.c.b16 %v742, %v738
    %v1223 = vpack.c.b16 %v743, %v739
    %v1224 = vpack.c.b16 %v744, %v740
    %v1225 = vpack.c.b16 %v745, %v741
    %v1226 = vpack.c.b16 %v750, %v746
    %v1227 = vpack.c.b16 %v751, %v747
    %v1228 = vpack.c.b16 %v752, %v748
    %v1229 = vpack.c.b16 %v753, %v749
    %v1230 = vpack.c.b16 %v758, %v754
    %v1231 = vpack.c.b16 %v759, %v755
    %v1232 = vpack.c.b16 %v760, %v756
    %v1233 = vpack.c.b16 %v761, %v757
    %v1234 = vpack.c.b16 %v766, %v762
    %v1235 = vpack.c.b16 %v767, %v763
    %v1236 = vpack.c.b16 %v768, %v764
    %v1237 = vpack.c.b16 %v769, %v765
    %v1238 = vpack.c.b16 %v774, %v770
    %v1239 = vpack.c.b16 %v775, %v771
    %v1240 = vpack.c.b16 %v776, %v772
    %v1241 = vpack.c.b16 %v777, %v773
    %v1242 = vpack.c.b16 %v782, %v778
    %v1243 = vpack.c.b16 %v783, %v779
    %v1244 = vpack.c.b16 %v784, %v780
    %v1245 = vpack.c.b16 %v785, %v781
    %v1246 = vpack.c.b16 %v790, %v786
    %v1247 = vpack.c.b16 %v791, %v787
    %v1248 = vpack.c.b16 %v792, %v788
    %v1249 = vpack.c.b16 %v793, %v789
    %v1250 = vpack.c.b16 %v798, %v794
    %v1251 = vpack.c.b16 %v799, %v795
    %v1252 = vpack.c.b16 %v800, %v796
    %v1253 = vpack.c.b16 %v801, %v797
    %v1254 = vpack.c.b16 %v806, %v802
    %v1255 = vpack.c.b16 %v807, %v803
    %v1256 = vpack.c.b16 %v808, %v804
    %v1257 = vpack.c.b16 %v809, %v805
    %v1258 = vpack.c.b16 %v814, %v810
    %v1259 = vpack.c.b16 %v815, %v811
    %v1260 = vpack.c.b16 %v816, %v812
    %v1261 = vpack.c.b16 %v817, %v813
    %v1262 = vpack.c.b16 %v822, %v818
    %v1263 = vpack.c.b16 %v823, %v819
    %v1264 = vpack.c.b16 %v824, %v820
    %v1265 = vpack.c.b16 %v825, %v821
    %v1266 = vpack.c.b16 %v830, %v826
    %v1267 = vpack.c.b16 %v831, %v827
    %v1268 = vpack.c.b16 %v832, %v828
    %v1269 = vpack.c.b16 %v833, %v829
    %v1270 = vpack.c.b16 %v838, %v834
    %v1271 = vpack.c.b16 %v839, %v835
    %v1272 = vpack.c.b16 %v840, %v836
    %v1273 = vpack.c.b16 %v841, %v837
    %v1274 = vpack.c.b16 %v846, %v842
    %v1275 = vpack.c.b16 %v847, %v843
    %v1276 = vpack.c.b16 %v848, %v844
    %v1277 = vpack.c.b16 %v849, %v845
    %v1278 = vpack.c.b16 %v854, %v850
    %v1279 = vpack.c.b16 %v855, %v851
    %v1280 = vpack.c.b16 %v856, %v852
    %v1281 = vpack.c.b16 %v857, %v853
    %v1282 = vpack.c.b16 %v862, %v858
    %v1283 = vpack.c.b16 %v863, %v859
    %v1284 = vpack.c.b16 %v864, %v860
    %v1285 = vpack.c.b16 %v865, %v861
    %v1286 = vpack.c.b16 %v870, %v866
    %v1287 = vpack.c.b16 %v871, %v867
    %v1288 = vpack.c.b16 %v872, %v868
    %v1289 = vpack.c.b16 %v873, %v869
    %v1290 = vpack.c.b16 %v878, %v874
    %v1291 = vpack.c.b16 %v879, %v875
    %v1292 = vpack.c.b16 %v880, %v876
    %v1293 = vpack.c.b16 %v881, %v877
    %v1294 = vpack.c.b16 %v886, %v882
    %v1295 = vpack.c.b16 %v887, %v883
    %v1296 = vpack.c.b16 %v888, %v884
    %v1297 = vpack.c.b16 %v889, %v885
    %v1298 = vpack.c.b16 %v894, %v890
    %v1299 = vpack.c.b16 %v895, %v891
    %v1300 = vpack.c.b16 %v896, %v892
    %v1301 = vpack.c.b16 %v897, %v893
    %v1302 = vpack.c.b16 %v902, %v898
    %v1303 = vpack.c.b16 %v903, %v899
    %v1304 = vpack.c.b16 %v904, %v900
    %v1305 = vpack.c.b16 %v905, %v901
    %v1306 = vpack.c.b16 %v910, %v906
    %v1307 = vpack.c.b16 %v911, %v907
    %v1308 = vpack.c.b16 %v912, %v908
    %v1309 = vpack.c.b16 %v913, %v909
    %v1310 = vpack.c.b16 %v918, %v914
    %v1311 = vpack.c.b16 %v919, %v915
    %v1312 = vpack.c.b16 %v920, %v916
    %v1313 = vpack.c.b16 %v921, %v917
    %v1314 = vpack.c.b16 %v926, %v922
    %v1315 = vpack.c.b16 %v927, %v923
    %v1316 = vpack.c.b16 %v928, %v924
    %v1317 = vpack.c.b16 %v929, %v925
    %v1318 = vpack.c.b16 %v934, %v930
    %v1319 = vpack.c.b16 %v935, %v931
    %v1320 = vpack.c.b16 %v936, %v932
    %v1321 = vpack.c.b16 %v937, %v933
    %v1322 = vpack.c.b16 %v942, %v938
    %v1323 = vpack.c.b16 %v943, %v939
    %v1324 = vpack.c.b16 %v944, %v940
    %v1325 = vpack.c.b16 %v945, %v941
    %v1326 = vpack.c.b16 %v950, %v946
    %v1327 = vpack.c.b16 %v951, %v947
    %v1328 = vpack.c.b16 %v952, %v948
    %v1329 = vpack.c.b16 %v953, %v949
    %v1330 = vpack.c.b16 %v958, %v954
    %v1331 = vpack.c.b16 %v959, %v955
    %v1332 = vpack.c.b16 %v960, %v956
    %v1333 = vpack.c.b16 %v961, %v957
    %v1334 = vpack.c.b16 %v966, %v962
    %v1335 = vpack.c.b16 %v967, %v963
    %v1336 = vpack.c.b16 %v968, %v964
    %v1337 = vpack.c.b16 %v969, %v965
    %v1338 = vpack.c.b16 %v974, %v970
    %v1339 = vpack.c.b16 %v975, %v971
    %v1340 = vpack.c.b16 %v976, %v972
    %v1341 = vpack.c.b16 %v977, %v973
    %v1342 = vpack.c.b16 %v982, %v978
    %v1343 = vpack.c.b16 %v983, %v979
    %v1344 = vpack.c.b16 %v984, %v980
    %v1345 = vpack.c.b16 %v985, %v981
    %v1346 = vpack.c.b16 %v990, %v986
    %v1347 = vpack.c.b16 %v991, %v987
    %v1348 = vpack.c.b16 %v992, %v988
    %v1349 = vpack.c.b16 %v993, %v989
    %v1350 = vpack.c.b16 %v998, %v994
    %v1351 = vpack.c.b16 %v999, %v995
    %v1352 = vpack.c.b16 %v1000, %v996
    %v1353 = vpack.c.b16 %v1001, %v997
    %v1354 = vpack.c.b16 %v1006, %v1002
    %v1355 = vpack.c.b16 %v1007, %v1003
    %v1356 = vpack.c.b16 %v1008, %v1004
    %v1357 = vpack.c.b16 %v1009, %v1005
    %v1358 = vpack.c.b16 %v1014, %v1010
    %v1359 = vpack.c.b16 %v1015, %v1011
    %v1360 = vpack.c.b16 %v1016, %v1012
    %v1361 = vpack.c.b16 %v1017, %v1013
    %v1362 = vpack.c.b16 %v1022, %v1018
    %v1363 = vpack.c.b16 %v1023, %v1019
    %v1364 = vpack.c.b16 %v1024, %v1020
    %v1365 = vpack.c.b16 %v1025, %v1021
    %v1366 = vpack.c.b16 %v1030, %v1026
    %v1367 = vpack.c.b16 %v1031, %v1027
    %v1368 = vpack.c.b16 %v1032, %v1028
    %v1369 = vpack.c.b16 %v1033, %v1029
    %v1370 = vpack.c.b16 %v1038, %v1034
    %v1371 = vpack.c.b16 %v1039, %v1035
    %v1372 = vpack.c.b16 %v1040, %v1036
    %v1373 = vpack.c.b16 %v1041, %v1037
    %v1374 = vpack.c.b16 %v1046, %v1042
    %v1375 = vpack.c.b16 %v1047, %v1043
    %v1376 = vpack.c.b16 %v1048, %v1044
    %v1377 = vpack.c.b16 %v1049, %v1045
    %v1378 = vpack.c.b16 %v1054, %v1050
    %v1379 = vpack.c.b16 %v1055, %v1051
    %v1380 = vpack.c.b16 %v1056, %v1052
    %v1381 = vpack.c.b16 %v1057, %v1053
    %v1382 = vpack.c.b16 %v1062, %v1058
    %v1383 = vpack.c.b16 %v1063, %v1059
    %v1384 = vpack.c.b16 %v1064, %v1060
    %v1385 = vpack.c.b16 %v1065, %v1061
    %v1386 = vpack.c.b16 %v1070, %v1066
    %v1387 = vpack.c.b16 %v1071, %v1067
    %v1388 = vpack.c.b16 %v1072, %v1068
    %v1389 = vpack.c.b16 %v1073, %v1069
    %v1390 = vpack.c.b16 %v1078, %v1074
    %v1391 = vpack.c.b16 %v1079, %v1075
    %v1392 = vpack.c.b16 %v1080, %v1076
    %v1393 = vpack.c.b16 %v1081, %v1077
    %v1394 = vpack.c.b16 %v1086, %v1082
    %v1395 = vpack.c.b16 %v1087, %v1083
    %v1396 = vpack.c.b16 %v1088, %v1084
    %v1397 = vpack.c.b16 %v1089, %v1085
    %v1398 = vpack.c.b16 %v1094, %v1090
    %v1399 = vpack.c.b16 %v1095, %v1091
    %v1400 = vpack.c.b16 %v1096, %v1092
    %v1401 = vpack.c.b16 %v1097, %v1093
    %v1402 = vpack.c.b16 %v1102, %v1098
    %v1403 = vpack.c.b16 %v1103, %v1099
    %v1404 = vpack.c.b16 %v1104, %v1100
    %v1405 = vpack.c.b16 %v1105, %v1101
    %v1406 = vpack.c.b16 %v1110, %v1106
    %v1407 = vpack.c.b16 %v1111, %v1107
    %v1408 = vpack.c.b16 %v1112, %v1108
    %v1409 = vpack.c.b16 %v1113, %v1109
    %v1410 = vpack.c.b16 %v1118, %v1114
    %v1411 = vpack.c.b16 %v1119, %v1115
    %v1412 = vpack.c.b16 %v1120, %v1116
    %v1413 = vpack.c.b16 %v1121, %v1117
    %v1414 = vpack.c.b16 %v1126, %v1122
    %v1415 = vpack.c.b16 %v1127, %v1123
    %v1416 = vpack.c.b16 %v1128, %v1124
    %v1417 = vpack.c.b16 %v1129, %v1125
    %v1418 = vpack.c.b16 %v1134, %v1130
    %v1419 = vpack.c.b16 %v1135, %v1131
    %v1420 = vpack.c.b16 %v1136, %v1132
    %v1421 = vpack.c.b16 %v1137, %v1133
    %v1422 = vpack.c.b16 %v1142, %v1138
    %v1423 = vpack.c.b16 %v1143, %v1139
    %v1424 = vpack.c.b16 %v1144, %v1140
    %v1425 = vpack.c.b16 %v1145, %v1141
    %v1426 = vpack.c.b16 %v1150, %v1146
    %v1427 = vpack.c.b16 %v1151, %v1147
    %v1428 = vpack.c.b16 %v1152, %v1148
    %v1429 = vpack.c.b16 %v1153, %v1149
    %v1430 = vpack.c.b16 %v1158, %v1154
    %v1431 = vpack.c.b16 %v1159, %v1155
    %v1432 = vpack.c.b16 %v1160, %v1156
    %v1433 = vpack.c.b16 %v1161, %v1157
    %v1434 = vpack.c.b16 %v1166, %v1162
    %v1435 = vpack.c.b16 %v1167, %v1163
    %v1436 = vpack.c.b16 %v1168, %v1164
    %v1437 = vpack.c.b16 %v1169, %v1165
    %v1438 = vpack.c.b16 %v1174, %v1170
    %v1439 = vpack.c.b16 %v1175, %v1171
    %v1440 = vpack.c.b16 %v1176, %v1172
    %v1441 = vpack.c.b16 %v1177, %v1173
    %v1442 = vpack.c.b16 %v1182, %v1178
    %v1443 = vpack.c.b16 %v1183, %v1179
    %v1444 = vpack.c.b16 %v1184, %v1180
    %v1445 = vpack.c.b16 %v1185, %v1181
    %v1446 = vpack.c.b16 %v1190, %v1186
    %v1447 = vpack.c.b16 %v1191, %v1187
    %v1448 = vpack.c.b16 %v1192, %v1188
    %v1449 = vpack.c.b16 %v1193, %v1189
    %1706 = vmatprep.subr.bf16.mxu0 %v1195
    %1707 = vmatpush1.bf16.msra.mxu0 %v1194
    %1708 = vmatprep.subr.bf16.mxu0 %v1199
    %1709 = vmatpush1.bf16.msra.mxu0 %v1198
    %1710 = vmatprep.subr.bf16.mxu0 %v1203
    %1711 = vmatpush1.bf16.msra.mxu0 %v1202
    %1712 = vmatprep.subr.bf16.mxu0 %v1207
    %1713 = vmatpush1.bf16.msra.mxu0 %v1206
    %1714 = vmatprep.subr.bf16.mxu0 %v1211
    %1715 = vmatpush1.bf16.msra.mxu0 %v1210
    %1716 = vmatprep.subr.bf16.mxu0 %v1215
    %1717 = vmatpush1.bf16.msra.mxu0 %v1214
    %1718 = vmatprep.subr.bf16.mxu0 %v1219
    %1719 = vmatpush1.bf16.msra.mxu0 %v1218
    %1720 = vmatprep.subr.bf16.mxu0 %v1223
    %1721 = vmatpush1.bf16.msra.mxu0 %v1222
    %1722 = vmatprep.subr.bf16.mxu0 %v1227
    %1723 = vmatpush1.bf16.msra.mxu0 %v1226
    %1724 = vmatprep.subr.bf16.mxu0 %v1231
    %1725 = vmatpush1.bf16.msra.mxu0 %v1230
    %1726 = vmatprep.subr.bf16.mxu0 %v1235
    %1727 = vmatpush1.bf16.msra.mxu0 %v1234
    %1728 = vmatprep.subr.bf16.mxu0 %v1239
    %1729 = vmatpush1.bf16.msra.mxu0 %v1238
    %1730 = vmatprep.subr.bf16.mxu0 %v1243
    %1731 = vmatpush1.bf16.msra.mxu0 %v1242
    %1732 = vmatprep.subr.bf16.mxu0 %v1247
    %1733 = vmatpush1.bf16.msra.mxu0 %v1246
    %1734 = vmatprep.subr.bf16.mxu0 %v1251
    %1735 = vmatpush1.bf16.msra.mxu0 %v1250
    %1736 = vmatprep.subr.bf16.mxu0 %v1255
    %1737 = vmatpush1.bf16.msra.mxu0 %v1254
    %1738 = vmatprep.mubr.bf16.mxu0 %v411
    %1739 = vmatmul.mubr.bf16.gmra.mrb[0].mxu0 %v410
    %v1740 = vpop.f32.mrb[0].mxu0
    %v1741 = vadd.f32 %v369, %v1740
    %v1742 = vpop.f32.mrb[0].mxu0
    %v1743 = vadd.f32 %v373, %v1742
    %v1744 = vpop.f32.mrb[0].mxu0
    %v1745 = vadd.f32 %v369, %v1744
    %v1746 = vpop.f32.mrb[0].mxu0
    %v1747 = vadd.f32 %v373, %v1746
    %1748 = vdwg.mxu0
    %1749 = vmatprep.subr.bf16.mxu0 %v1259
    %1750 = vmatpush1.bf16.msra.mxu0 %v1258
    %1751 = vmatprep.subr.bf16.mxu0 %v1263
    %1752 = vmatpush1.bf16.msra.mxu0 %v1262
    %1753 = vmatprep.subr.bf16.mxu0 %v1267
    %1754 = vmatpush1.bf16.msra.mxu0 %v1266
    %1755 = vmatprep.subr.bf16.mxu0 %v1271
    %1756 = vmatpush1.bf16.msra.mxu0 %v1270
    %1757 = vmatprep.subr.bf16.mxu0 %v1275
    %1758 = vmatpush1.bf16.msra.mxu0 %v1274
    %1759 = vmatprep.subr.bf16.mxu0 %v1279
    %1760 = vmatpush1.bf16.msra.mxu0 %v1278
    %1761 = vmatprep.subr.bf16.mxu0 %v1283
    %1762 = vmatpush1.bf16.msra.mxu0 %v1282
    %1763 = vmatprep.subr.bf16.mxu0 %v1287
    %1764 = vmatpush1.bf16.msra.mxu0 %v1286
    %1765 = vmatprep.subr.bf16.mxu0 %v1291
    %1766 = vmatpush1.bf16.msra.mxu0 %v1290
    %1767 = vmatprep.subr.bf16.mxu0 %v1295
    %1768 = vmatpush1.bf16.msra.mxu0 %v1294
    %1769 = vmatprep.subr.bf16.mxu0 %v1299
    %1770 = vmatpush1.bf16.msra.mxu0 %v1298
    %1771 = vmatprep.subr.bf16.mxu0 %v1303
    %1772 = vmatpush1.bf16.msra.mxu0 %v1302
    %1773 = vmatprep.subr.bf16.mxu0 %v1307
    %1774 = vmatpush1.bf16.msra.mxu0 %v1306
    %1775 = vmatprep.subr.bf16.mxu0 %v1311
    %1776 = vmatpush1.bf16.msra.mxu0 %v1310
    %1777 = vmatprep.subr.bf16.mxu0 %v1315
    %1778 = vmatpush1.bf16.msra.mxu0 %v1314
    %1779 = vmatprep.subr.bf16.mxu0 %v1319
    %1780 = vmatpush1.bf16.msra.mxu0 %v1318
    %1781 = vmatprep.mubr.bf16.mxu0 %v413
    %1782 = vmatmul.mubr.bf16.gmra.mrb[0].mxu0 %v412
    %v1783 = vpop.f32.mrb[0].mxu0
    %v1784 = vadd.f32 %v1741, %v1783
    %v1785 = vpop.f32.mrb[0].mxu0
    %v1786 = vadd.f32 %v1743, %v1785
    %v1787 = vpop.f32.mrb[0].mxu0
    %v1788 = vadd.f32 %v1745, %v1787
    %v1789 = vpop.f32.mrb[0].mxu0
    %v1790 = vadd.f32 %v1747, %v1789
    %1791 = vdwg.mxu0
    %1792 = vmatprep.subr.bf16.mxu0 %v1323
    %1793 = vmatpush1.bf16.msra.mxu0 %v1322
    %1794 = vmatprep.subr.bf16.mxu0 %v1327
    %1795 = vmatpush1.bf16.msra.mxu0 %v1326
    %1796 = vmatprep.subr.bf16.mxu0 %v1331
    %1797 = vmatpush1.bf16.msra.mxu0 %v1330
    %1798 = vmatprep.subr.bf16.mxu0 %v1335
    %1799 = vmatpush1.bf16.msra.mxu0 %v1334
    %1800 = vmatprep.subr.bf16.mxu0 %v1339
    %1801 = vmatpush1.bf16.msra.mxu0 %v1338
    %1802 = vmatprep.subr.bf16.mxu0 %v1343
    %1803 = vmatpush1.bf16.msra.mxu0 %v1342
    %1804 = vmatprep.subr.bf16.mxu0 %v1347
    %1805 = vmatpush1.bf16.msra.mxu0 %v1346
    %1806 = vmatprep.subr.bf16.mxu0 %v1351
    %1807 = vmatpush1.bf16.msra.mxu0 %v1350
    %1808 = vmatprep.subr.bf16.mxu0 %v1355
    %1809 = vmatpush1.bf16.msra.mxu0 %v1354
    %1810 = vmatprep.subr.bf16.mxu0 %v1359
    %1811 = vmatpush1.bf16.msra.mxu0 %v1358
    %1812 = vmatprep.subr.bf16.mxu0 %v1363
    %1813 = vmatpush1.bf16.msra.mxu0 %v1362
    %1814 = vmatprep.subr.bf16.mxu0 %v1367
    %1815 = vmatpush1.bf16.msra.mxu0 %v1366
    %1816 = vmatprep.subr.bf16.mxu0 %v1371
    %1817 = vmatpush1.bf16.msra.mxu0 %v1370
    %1818 = vmatprep.subr.bf16.mxu0 %v1375
    %1819 = vmatpush1.bf16.msra.mxu0 %v1374
    %1820 = vmatprep.subr.bf16.mxu0 %v1379
    %1821 = vmatpush1.bf16.msra.mxu0 %v1378
    %1822 = vmatprep.subr.bf16.mxu0 %v1383
    %1823 = vmatpush1.bf16.msra.mxu0 %v1382
    %1824 = vmatprep.mubr.bf16.mxu0 %v415
    %1825 = vmatmul.mubr.bf16.gmra.mrb[0].mxu0 %v414
    %v1826 = vpop.f32.mrb[0].mxu0
    %v1827 = vadd.f32 %v1784, %v1826
    %v1828 = vpop.f32.mrb[0].mxu0
    %v1829 = vadd.f32 %v1786, %v1828
    %v1830 = vpop.f32.mrb[0].mxu0
    %v1831 = vadd.f32 %v1788, %v1830
    %v1832 = vpop.f32.mrb[0].mxu0
    %v1833 = vadd.f32 %v1790, %v1832
    %1834 = vdwg.mxu0
    %1835 = vmatprep.subr.bf16.mxu0 %v1387
    %1836 = vmatpush1.bf16.msra.mxu0 %v1386
    %1837 = vmatprep.subr.bf16.mxu0 %v1391
    %1838 = vmatpush1.bf16.msra.mxu0 %v1390
    %1839 = vmatprep.subr.bf16.mxu0 %v1395
    %1840 = vmatpush1.bf16.msra.mxu0 %v1394
    %1841 = vmatprep.subr.bf16.mxu0 %v1399
    %1842 = vmatpush1.bf16.msra.mxu0 %v1398
    %1843 = vmatprep.subr.bf16.mxu0 %v1403
    %1844 = vmatpush1.bf16.msra.mxu0 %v1402
    %1845 = vmatprep.subr.bf16.mxu0 %v1407
    %1846 = vmatpush1.bf16.msra.mxu0 %v1406
    %1847 = vmatprep.subr.bf16.mxu0 %v1411
    %1848 = vmatpush1.bf16.msra.mxu0 %v1410
    %1849 = vmatprep.subr.bf16.mxu0 %v1415
    %1850 = vmatpush1.bf16.msra.mxu0 %v1414
    %1851 = vmatprep.subr.bf16.mxu0 %v1419
    %1852 = vmatpush1.bf16.msra.mxu0 %v1418
    %1853 = vmatprep.subr.bf16.mxu0 %v1423
    %1854 = vmatpush1.bf16.msra.mxu0 %v1422
    %1855 = vmatprep.subr.bf16.mxu0 %v1427
    %1856 = vmatpush1.bf16.msra.mxu0 %v1426
    %1857 = vmatprep.subr.bf16.mxu0 %v1431
    %1858 = vmatpush1.bf16.msra.mxu0 %v1430
    %1859 = vmatprep.subr.bf16.mxu0 %v1435
    %1860 = vmatpush1.bf16.msra.mxu0 %v1434
    %1861 = vmatprep.subr.bf16.mxu0 %v1439
    %1862 = vmatpush1.bf16.msra.mxu0 %v1438
    %1863 = vmatprep.subr.bf16.mxu0 %v1443
    %1864 = vmatpush1.bf16.msra.mxu0 %v1442
    %1865 = vmatprep.subr.bf16.mxu0 %v1447
    %1866 = vmatpush1.bf16.msra.mxu0 %v1446
    %1867 = vmatprep.mubr.bf16.mxu0 %v417
    %1868 = vmatmul.mubr.bf16.gmra.mrb[0].mxu0 %v416
    %v1869 = vpop.f32.mrb[0].mxu0
    %v1870 = vadd.f32 %v1827, %v1869
    %v1871 = vpop.f32.mrb[0].mxu0
    %v1872 = vadd.f32 %v1829, %v1871
    %v1873 = vpop.f32.mrb[0].mxu0
    %v1874 = vadd.f32 %v1831, %v1873
    %v1875 = vpop.f32.mrb[0].mxu0
    %v1876 = vadd.f32 %v1833, %v1875
    %1877 = vdwg.mxu0
    %1878 = vmatprep.subr.bf16.mxu0 %v1197
    %1879 = vmatpush1.bf16.msra.mxu0 %v1196
    %1880 = vmatprep.subr.bf16.mxu0 %v1201
    %1881 = vmatpush1.bf16.msra.mxu0 %v1200
    %1882 = vmatprep.subr.bf16.mxu0 %v1205
    %1883 = vmatpush1.bf16.msra.mxu0 %v1204
    %1884 = vmatprep.subr.bf16.mxu0 %v1209
    %1885 = vmatpush1.bf16.msra.mxu0 %v1208
    %1886 = vmatprep.subr.bf16.mxu0 %v1213
    %1887 = vmatpush1.bf16.msra.mxu0 %v1212
    %1888 = vmatprep.subr.bf16.mxu0 %v1217
    %1889 = vmatpush1.bf16.msra.mxu0 %v1216
    %1890 = vmatprep.subr.bf16.mxu0 %v1221
    %1891 = vmatpush1.bf16.msra.mxu0 %v1220
    %1892 = vmatprep.subr.bf16.mxu0 %v1225
    %1893 = vmatpush1.bf16.msra.mxu0 %v1224
    %1894 = vmatprep.subr.bf16.mxu0 %v1229
    %1895 = vmatpush1.bf16.msra.mxu0 %v1228
    %1896 = vmatprep.subr.bf16.mxu0 %v1233
    %1897 = vmatpush1.bf16.msra.mxu0 %v1232
    %1898 = vmatprep.subr.bf16.mxu0 %v1237
    %1899 = vmatpush1.bf16.msra.mxu0 %v1236
    %1900 = vmatprep.subr.bf16.mxu0 %v1241
    %1901 = vmatpush1.bf16.msra.mxu0 %v1240
    %1902 = vmatprep.subr.bf16.mxu0 %v1245
    %1903 = vmatpush1.bf16.msra.mxu0 %v1244
    %1904 = vmatprep.subr.bf16.mxu0 %v1249
    %1905 = vmatpush1.bf16.msra.mxu0 %v1248
    %1906 = vmatprep.subr.bf16.mxu0 %v1253
    %1907 = vmatpush1.bf16.msra.mxu0 %v1252
    %1908 = vmatprep.subr.bf16.mxu0 %v1257
    %1909 = vmatpush1.bf16.msra.mxu0 %v1256
    %1910 = vmatprep.mubr.bf16.mxu0 %v411
    %1911 = vmatmul.mubr.bf16.gmra.mrb[0].mxu0 %v410
    %v1912 = vpop.f32.mrb[0].mxu0
    %v1913 = vadd.f32 %v377, %v1912
    %v1914 = vpop.f32.mrb[0].mxu0
    %v1915 = vadd.f32 %v381, %v1914
    %v1916 = vpop.f32.mrb[0].mxu0
    %v1917 = vadd.f32 %v377, %v1916
    %v1918 = vpop.f32.mrb[0].mxu0
    %v1919 = vadd.f32 %v381, %v1918
    %1920 = vdwg.mxu0
    %1921 = vmatprep.subr.bf16.mxu0 %v1261
    %1922 = vmatpush1.bf16.msra.mxu0 %v1260
    %1923 = vmatprep.subr.bf16.mxu0 %v1265
    %1924 = vmatpush1.bf16.msra.mxu0 %v1264
    %1925 = vmatprep.subr.bf16.mxu0 %v1269
    %1926 = vmatpush1.bf16.msra.mxu0 %v1268
    %1927 = vmatprep.subr.bf16.mxu0 %v1273
    %1928 = vmatpush1.bf16.msra.mxu0 %v1272
    %1929 = vmatprep.subr.bf16.mxu0 %v1277
    %1930 = vmatpush1.bf16.msra.mxu0 %v1276
    %1931 = vmatprep.subr.bf16.mxu0 %v1281
    %1932 = vmatpush1.bf16.msra.mxu0 %v1280
    %1933 = vmatprep.subr.bf16.mxu0 %v1285
    %1934 = vmatpush1.bf16.msra.mxu0 %v1284
    %1935 = vmatprep.subr.bf16.mxu0 %v1289
    %1936 = vmatpush1.bf16.msra.mxu0 %v1288
    %1937 = vmatprep.subr.bf16.mxu0 %v1293
    %1938 = vmatpush1.bf16.msra.mxu0 %v1292
    %1939 = vmatprep.subr.bf16.mxu0 %v1297
    %1940 = vmatpush1.bf16.msra.mxu0 %v1296
    %1941 = vmatprep.subr.bf16.mxu0 %v1301
    %1942 = vmatpush1.bf16.msra.mxu0 %v1300
    %1943 = vmatprep.subr.bf16.mxu0 %v1305
    %1944 = vmatpush1.bf16.msra.mxu0 %v1304
    %1945 = vmatprep.subr.bf16.mxu0 %v1309
    %1946 = vmatpush1.bf16.msra.mxu0 %v1308
    %1947 = vmatprep.subr.bf16.mxu0 %v1313
    %1948 = vmatpush1.bf16.msra.mxu0 %v1312
    %1949 = vmatprep.subr.bf16.mxu0 %v1317
    %1950 = vmatpush1.bf16.msra.mxu0 %v1316
    %1951 = vmatprep.subr.bf16.mxu0 %v1321
    %1952 = vmatpush1.bf16.msra.mxu0 %v1320
    %1953 = vmatprep.mubr.bf16.mxu0 %v413
    %1954 = vmatmul.mubr.bf16.gmra.mrb[0].mxu0 %v412
    %v1955 = vpop.f32.mrb[0].mxu0
    %v1956 = vadd.f32 %v1913, %v1955
    %v1957 = vpop.f32.mrb[0].mxu0
    %v1958 = vadd.f32 %v1915, %v1957
    %v1959 = vpop.f32.mrb[0].mxu0
    %v1960 = vadd.f32 %v1917, %v1959
    %v1961 = vpop.f32.mrb[0].mxu0
    %v1962 = vadd.f32 %v1919, %v1961
    %1963 = vdwg.mxu0
    %1964 = vmatprep.subr.bf16.mxu0 %v1325
    %1965 = vmatpush1.bf16.msra.mxu0 %v1324
    %1966 = vmatprep.subr.bf16.mxu0 %v1329
    %1967 = vmatpush1.bf16.msra.mxu0 %v1328
    %1968 = vmatprep.subr.bf16.mxu0 %v1333
    %1969 = vmatpush1.bf16.msra.mxu0 %v1332
    %1970 = vmatprep.subr.bf16.mxu0 %v1337
    %1971 = vmatpush1.bf16.msra.mxu0 %v1336
    %1972 = vmatprep.subr.bf16.mxu0 %v1341
    %1973 = vmatpush1.bf16.msra.mxu0 %v1340
    %1974 = vmatprep.subr.bf16.mxu0 %v1345
    %1975 = vmatpush1.bf16.msra.mxu0 %v1344
    %1976 = vmatprep.subr.bf16.mxu0 %v1349
    %1977 = vmatpush1.bf16.msra.mxu0 %v1348
    %1978 = vmatprep.subr.bf16.mxu0 %v1353
    %1979 = vmatpush1.bf16.msra.mxu0 %v1352
    %1980 = vmatprep.subr.bf16.mxu0 %v1357
    %1981 = vmatpush1.bf16.msra.mxu0 %v1356
    %1982 = vmatprep.subr.bf16.mxu0 %v1361
    %1983 = vmatpush1.bf16.msra.mxu0 %v1360
    %1984 = vmatprep.subr.bf16.mxu0 %v1365
    %1985 = vmatpush1.bf16.msra.mxu0 %v1364
    %1986 = vmatprep.subr.bf16.mxu0 %v1369
    %1987 = vmatpush1.bf16.msra.mxu0 %v1368
    %1988 = vmatprep.subr.bf16.mxu0 %v1373
    %1989 = vmatpush1.bf16.msra.mxu0 %v1372
    %1990 = vmatprep.subr.bf16.mxu0 %v1377
    %1991 = vmatpush1.bf16.msra.mxu0 %v1376
    %1992 = vmatprep.subr.bf16.mxu0 %v1381
    %1993 = vmatpush1.bf16.msra.mxu0 %v1380
    %1994 = vmatprep.subr.bf16.mxu0 %v1385
    %1995 = vmatpush1.bf16.msra.mxu0 %v1384
    %1996 = vmatprep.mubr.bf16.mxu0 %v415
    %1997 = vmatmul.mubr.bf16.gmra.mrb[0].mxu0 %v414
    %v1998 = vpop.f32.mrb[0].mxu0
    %v1999 = vadd.f32 %v1956, %v1998
    %v2000 = vpop.f32.mrb[0].mxu0
    %v2001 = vadd.f32 %v1958, %v2000
    %v2002 = vpop.f32.mrb[0].mxu0
    %v2003 = vadd.f32 %v1960, %v2002
    %v2004 = vpop.f32.mrb[0].mxu0
    %v2005 = vadd.f32 %v1962, %v2004
    %2006 = vdwg.mxu0
    %2007 = vmatprep.subr.bf16.mxu0 %v1389
    %2008 = vmatpush1.bf16.msra.mxu0 %v1388
    %2009 = vmatprep.subr.bf16.mxu0 %v1393
    %2010 = vmatpush1.bf16.msra.mxu0 %v1392
    %2011 = vmatprep.subr.bf16.mxu0 %v1397
    %2012 = vmatpush1.bf16.msra.mxu0 %v1396
    %2013 = vmatprep.subr.bf16.mxu0 %v1401
    %2014 = vmatpush1.bf16.msra.mxu0 %v1400
    %2015 = vmatprep.subr.bf16.mxu0 %v1405
    %2016 = vmatpush1.bf16.msra.mxu0 %v1404
    %2017 = vmatprep.subr.bf16.mxu0 %v1409
    %2018 = vmatpush1.bf16.msra.mxu0 %v1408
    %2019 = vmatprep.subr.bf16.mxu0 %v1413
    %2020 = vmatpush1.bf16.msra.mxu0 %v1412
    %2021 = vmatprep.subr.bf16.mxu0 %v1417
    %2022 = vmatpush1.bf16.msra.mxu0 %v1416
    %2023 = vmatprep.subr.bf16.mxu0 %v1421
    %2024 = vmatpush1.bf16.msra.mxu0 %v1420
    %2025 = vmatprep.subr.bf16.mxu0 %v1425
    %2026 = vmatpush1.bf16.msra.mxu0 %v1424
    %2027 = vmatprep.subr.bf16.mxu0 %v1429
    %2028 = vmatpush1.bf16.msra.mxu0 %v1428
    %2029 = vmatprep.subr.bf16.mxu0 %v1433
    %2030 = vmatpush1.bf16.msra.mxu0 %v1432
    %2031 = vmatprep.subr.bf16.mxu0 %v1437
    %2032 = vmatpush1.bf16.msra.mxu0 %v1436
    %2033 = vmatprep.subr.bf16.mxu0 %v1441
    %2034 = vmatpush1.bf16.msra.mxu0 %v1440
    %2035 = vmatprep.subr.bf16.mxu0 %v1445
    %2036 = vmatpush1.bf16.msra.mxu0 %v1444
    %2037 = vmatprep.subr.bf16.mxu0 %v1449
    %2038 = vmatpush1.bf16.msra.mxu0 %v1448
    %2039 = vmatprep.mubr.bf16.mxu0 %v417
    %2040 = vmatmul.mubr.bf16.gmra.mrb[0].mxu0 %v416
    %v2041 = vpop.f32.mrb[0].mxu0
    %v2042 = vadd.f32 %v1999, %v2041
    %v2043 = vpop.f32.mrb[0].mxu0
    %v2044 = vadd.f32 %v2001, %v2043
    %v2045 = vpop.f32.mrb[0].mxu0
    %v2046 = vadd.f32 %v2003, %v2045
    %v2047 = vpop.f32.mrb[0].mxu0
    %v2048 = vadd.f32 %v2005, %v2047
    %2049 = vdwg.mxu0
    %v2050 = vmax.f32 %v1870, 0.0
    %v2051 = vmax.f32 %v1872, 0.0
    %v2052 = vmax.f32 %v2042, 0.0
    %v2053 = vmax.f32 %v2044, 0.0
    %v2054 = vmax.f32 %v1874, 0.0
    %v2055 = vmax.f32 %v1876, 0.0
    %v2056 = vmax.f32 %v2046, 0.0
    %v2057 = vmax.f32 %v2048, 0.0
    %v2058 = vpack.c.bf16 %v2054, %v2050
    %v2059 = vpack.c.bf16 %v2055, %v2051
    %v2060 = vpack.c.bf16 %v2056, %v2052
    %v2061 = vpack.c.bf16 %v2057, %v2053
    %v2062 = vld [vmem:[#allocation4] sm:$0xf]
    %v2063 = vld [vmem:[#allocation4 + $0x4] sm:$0xf]
    %v2064 = vld [vmem:[#allocation4 + $0x8] sm:$0xf]
    %v2065 = vld [vmem:[#allocation4 + $0xc] sm:$0xf]
    %v2066 = vld [vmem:[#allocation4 + $0x10] sm:$0xf]
    %v2067 = vld [vmem:[#allocation4 + $0x14] sm:$0xf]
    %v2068 = vld [vmem:[#allocation4 + $0x18] sm:$0xf]
    %v2069 = vld [vmem:[#allocation4 + $0x1c] sm:$0xf]
    %v2070 = vld [vmem:[#allocation4 + $0x20] sm:$0xf]
    %v2071 = vld [vmem:[#allocation4 + $0x24] sm:$0xf]
    %v2072 = vld [vmem:[#allocation4 + $0x28] sm:$0xf]
    %v2073 = vld [vmem:[#allocation4 + $0x2c] sm:$0xf]
    %v2074 = vld [vmem:[#allocation4 + $0x30] sm:$0xf]
    %v2075 = vld [vmem:[#allocation4 + $0x34] sm:$0xf]
    %v2076 = vld [vmem:[#allocation4 + $0x38] sm:$0xf]
    %v2077 = vld [vmem:[#allocation4 + $0x3c] sm:$0xf]
    %v2078 = vld [vmem:[#allocation4 + $0x40] sm:$0xf]
    %v2079 = vld [vmem:[#allocation4 + $0x44] sm:$0xf]
    %v2080 = vld [vmem:[#allocation4 + $0x48] sm:$0xf]
    %v2081 = vld [vmem:[#allocation4 + $0x4c] sm:$0xf]
    %v2082 = vld [vmem:[#allocation4 + $0x50] sm:$0xf]
    %v2083 = vld [vmem:[#allocation4 + $0x54] sm:$0xf]
    %v2084 = vld [vmem:[#allocation4 + $0x58] sm:$0xf]
    %v2085 = vld [vmem:[#allocation4 + $0x5c] sm:$0xf]
    %v2086 = vld [vmem:[#allocation4 + $0x60] sm:$0xf]
    %v2087 = vld [vmem:[#allocation4 + $0x64] sm:$0xf]
    %v2088 = vld [vmem:[#allocation4 + $0x68] sm:$0xf]
    %v2089 = vld [vmem:[#allocation4 + $0x6c] sm:$0xf]
    %v2090 = vld [vmem:[#allocation4 + $0x70] sm:$0xf]
    %v2091 = vld [vmem:[#allocation4 + $0x74] sm:$0xf]
    %v2092 = vld [vmem:[#allocation4 + $0x78] sm:$0xf]
    %v2093 = vld [vmem:[#allocation4 + $0x7c] sm:$0xf]
    %v2094 = vld [vmem:[#allocation4 + $0x80] sm:$0xf]
    %v2095 = vld [vmem:[#allocation4 + $0x84] sm:$0xf]
    %v2096 = vld [vmem:[#allocation4 + $0x88] sm:$0xf]
    %v2097 = vld [vmem:[#allocation4 + $0x8c] sm:$0xf]
    %v2098 = vld [vmem:[#allocation4 + $0x90] sm:$0xf]
    %v2099 = vld [vmem:[#allocation4 + $0x94] sm:$0xf]
    %v2100 = vld [vmem:[#allocation4 + $0x98] sm:$0xf]
    %v2101 = vld [vmem:[#allocation4 + $0x9c] sm:$0xf]
    %v2102 = vld [vmem:[#allocation4 + $0xa0] sm:$0xf]
    %v2103 = vld [vmem:[#allocation4 + $0xa4] sm:$0xf]
    %v2104 = vld [vmem:[#allocation4 + $0xa8] sm:$0xf]
    %v2105 = vld [vmem:[#allocation4 + $0xac] sm:$0xf]
    %v2106 = vld [vmem:[#allocation4 + $0xb0] sm:$0xf]
    %v2107 = vld [vmem:[#allocation4 + $0xb4] sm:$0xf]
    %v2108 = vld [vmem:[#allocation4 + $0xb8] sm:$0xf]
    %v2109 = vld [vmem:[#allocation4 + $0xbc] sm:$0xf]
    %v2110 = vld [vmem:[#allocation4 + $0xc0] sm:$0xf]
    %v2111 = vld [vmem:[#allocation4 + $0xc4] sm:$0xf]
    %v2112 = vld [vmem:[#allocation4 + $0xc8] sm:$0xf]
    %v2113 = vld [vmem:[#allocation4 + $0xcc] sm:$0xf]
    %v2114 = vld [vmem:[#allocation4 + $0xd0] sm:$0xf]
    %v2115 = vld [vmem:[#allocation4 + $0xd4] sm:$0xf]
    %v2116 = vld [vmem:[#allocation4 + $0xd8] sm:$0xf]
    %v2117 = vld [vmem:[#allocation4 + $0xdc] sm:$0xf]
    %v2118 = vld [vmem:[#allocation4 + $0xe0] sm:$0xf]
    %v2119 = vld [vmem:[#allocation4 + $0xe4] sm:$0xf]
    %v2120 = vld [vmem:[#allocation4 + $0xe8] sm:$0xf]
    %v2121 = vld [vmem:[#allocation4 + $0xec] sm:$0xf]
    %v2122 = vld [vmem:[#allocation4 + $0xf0] sm:$0xf]
    %v2123 = vld [vmem:[#allocation4 + $0xf4] sm:$0xf]
    %v2124 = vld [vmem:[#allocation4 + $0xf8] sm:$0xf]
    %v2125 = vld [vmem:[#allocation4 + $0xfc] sm:$0xf]
    %v2126 = vld [vmem:[%s4] sm:$0x1]
    %v2128 = vlaneseq
    %v2129 = vshrl.u32 %v2128, 7
    %v2130 = vsub.s32 0, %v2129
    %v2131 = vrot.slane %v2126, %v2130
    %v2197 = vunpack.c.l.b16 %v2062
    %v2198 = vunpack.c.l.b16 %v2063
    %v2199 = vunpack.c.l.b16 %v2064
    %v2200 = vunpack.c.l.b16 %v2065
    %v2201 = vunpack.c.l.b16 %v2066
    %v2202 = vunpack.c.l.b16 %v2067
    %v2203 = vunpack.c.l.b16 %v2068
    %v2204 = vunpack.c.l.b16 %v2069
    %v2205 = vunpack.c.l.b16 %v2070
    %v2206 = vunpack.c.l.b16 %v2071
    %v2207 = vunpack.c.l.b16 %v2072
    %v2208 = vunpack.c.l.b16 %v2073
    %v2209 = vunpack.c.l.b16 %v2074
    %v2210 = vunpack.c.l.b16 %v2075
    %v2211 = vunpack.c.l.b16 %v2076
    %v2212 = vunpack.c.l.b16 %v2077
    %v2213 = vunpack.c.l.b16 %v2078
    %v2214 = vunpack.c.l.b16 %v2079
    %v2215 = vunpack.c.l.b16 %v2080
    %v2216 = vunpack.c.l.b16 %v2081
    %v2217 = vunpack.c.l.b16 %v2082
    %v2218 = vunpack.c.l.b16 %v2083
    %v2219 = vunpack.c.l.b16 %v2084
    %v2220 = vunpack.c.l.b16 %v2085
    %v2221 = vunpack.c.l.b16 %v2086
    %v2222 = vunpack.c.l.b16 %v2087
    %v2223 = vunpack.c.l.b16 %v2088
    %v2224 = vunpack.c.l.b16 %v2089
    %v2225 = vunpack.c.l.b16 %v2090
    %v2226 = vunpack.c.l.b16 %v2091
    %v2227 = vunpack.c.l.b16 %v2092
    %v2228 = vunpack.c.l.b16 %v2093
    %v2229 = vunpack.c.l.b16 %v2094
    %v2230 = vunpack.c.l.b16 %v2095
    %v2231 = vunpack.c.l.b16 %v2096
    %v2232 = vunpack.c.l.b16 %v2097
    %v2233 = vunpack.c.l.b16 %v2098
    %v2234 = vunpack.c.l.b16 %v2099
    %v2235 = vunpack.c.l.b16 %v2100
    %v2236 = vunpack.c.l.b16 %v2101
    %v2237 = vunpack.c.l.b16 %v2102
    %v2238 = vunpack.c.l.b16 %v2103
    %v2239 = vunpack.c.l.b16 %v2104
    %v2240 = vunpack.c.l.b16 %v2105
    %v2241 = vunpack.c.l.b16 %v2106
    %v2242 = vunpack.c.l.b16 %v2107
    %v2243 = vunpack.c.l.b16 %v2108
    %v2244 = vunpack.c.l.b16 %v2109
    %v2245 = vunpack.c.l.b16 %v2110
    %v2246 = vunpack.c.l.b16 %v2111
    %v2247 = vunpack.c.l.b16 %v2112
    %v2248 = vunpack.c.l.b16 %v2113
    %v2249 = vunpack.c.l.b16 %v2114
    %v2250 = vunpack.c.l.b16 %v2115
    %v2251 = vunpack.c.l.b16 %v2116
    %v2252 = vunpack.c.l.b16 %v2117
    %v2253 = vunpack.c.l.b16 %v2118
    %v2254 = vunpack.c.l.b16 %v2119
    %v2255 = vunpack.c.l.b16 %v2120
    %v2256 = vunpack.c.l.b16 %v2121
    %v2257 = vunpack.c.l.b16 %v2122
    %v2258 = vunpack.c.l.b16 %v2123
    %v2259 = vunpack.c.l.b16 %v2124
    %v2260 = vunpack.c.l.b16 %v2125
    %v2261 = vpack.c.b16 %v2198, %v2197
    %v2262 = vpack.c.b16 %v2200, %v2199
    %v2263 = vpack.c.b16 %v2202, %v2201
    %v2264 = vpack.c.b16 %v2204, %v2203
    %v2265 = vpack.c.b16 %v2206, %v2205
    %v2266 = vpack.c.b16 %v2208, %v2207
    %v2267 = vpack.c.b16 %v2210, %v2209
    %v2268 = vpack.c.b16 %v2212, %v2211
    %v2269 = vpack.c.b16 %v2214, %v2213
    %v2270 = vpack.c.b16 %v2216, %v2215
    %v2271 = vpack.c.b16 %v2218, %v2217
    %v2272 = vpack.c.b16 %v2220, %v2219
    %v2273 = vpack.c.b16 %v2222, %v2221
    %v2274 = vpack.c.b16 %v2224, %v2223
    %v2275 = vpack.c.b16 %v2226, %v2225
    %v2276 = vpack.c.b16 %v2228, %v2227
    %v2277 = vpack.c.b16 %v2230, %v2229
    %v2278 = vpack.c.b16 %v2232, %v2231
    %v2279 = vpack.c.b16 %v2234, %v2233
    %v2280 = vpack.c.b16 %v2236, %v2235
    %v2281 = vpack.c.b16 %v2238, %v2237
    %v2282 = vpack.c.b16 %v2240, %v2239
    %v2283 = vpack.c.b16 %v2242, %v2241
    %v2284 = vpack.c.b16 %v2244, %v2243
    %v2285 = vpack.c.b16 %v2246, %v2245
    %v2286 = vpack.c.b16 %v2248, %v2247
    %v2287 = vpack.c.b16 %v2250, %v2249
    %v2288 = vpack.c.b16 %v2252, %v2251
    %v2289 = vpack.c.b16 %v2254, %v2253
    %v2290 = vpack.c.b16 %v2256, %v2255
    %v2291 = vpack.c.b16 %v2258, %v2257
    %v2292 = vpack.c.b16 %v2260, %v2259
    %2325 = vmatprep.subr.bf16.mxu0 0
    %2326 = vmatpush1.bf16.msra.mxu0 %v2261
    %2327 = vmatprep.subr.bf16.mxu0 0
    %2328 = vmatpush1.bf16.msra.mxu0 %v2262
    %2329 = vmatprep.subr.bf16.mxu0 0
    %2330 = vmatpush1.bf16.msra.mxu0 %v2263
    %2331 = vmatprep.subr.bf16.mxu0 0
    %2332 = vmatpush1.bf16.msra.mxu0 %v2264
    %2333 = vmatprep.subr.bf16.mxu0 0
    %2334 = vmatpush1.bf16.msra.mxu0 %v2265
    %2335 = vmatprep.subr.bf16.mxu0 0
    %2336 = vmatpush1.bf16.msra.mxu0 %v2266
    %2337 = vmatprep.subr.bf16.mxu0 0
    %2338 = vmatpush1.bf16.msra.mxu0 %v2267
    %2339 = vmatprep.subr.bf16.mxu0 0
    %2340 = vmatpush1.bf16.msra.mxu0 %v2268
    %2341 = vmatprep.subr.bf16.mxu0 0
    %2342 = vmatpush1.bf16.msra.mxu0 %v2269
    %2343 = vmatprep.subr.bf16.mxu0 0
    %2344 = vmatpush1.bf16.msra.mxu0 %v2270
    %2345 = vmatprep.subr.bf16.mxu0 0
    %2346 = vmatpush1.bf16.msra.mxu0 %v2271
    %2347 = vmatprep.subr.bf16.mxu0 0
    %2348 = vmatpush1.bf16.msra.mxu0 %v2272
    %2349 = vmatprep.subr.bf16.mxu0 0
    %2350 = vmatpush1.bf16.msra.mxu0 %v2273
    %2351 = vmatprep.subr.bf16.mxu0 0
    %2352 = vmatpush1.bf16.msra.mxu0 %v2274
    %2353 = vmatprep.subr.bf16.mxu0 0
    %2354 = vmatpush1.bf16.msra.mxu0 %v2275
    %2355 = vmatprep.subr.bf16.mxu0 0
    %2356 = vmatpush1.bf16.msra.mxu0 %v2276
    %2357 = vmatprep.mubr.bf16.mxu0 %v2059
    %2358 = vmatmul.mubr.bf16.gmra.mrb[0].mxu0 %v2058
    %v2359 = vpop.f32.mrb[0].mxu0
    %v2360 = vadd.f32 %v2131, %v2359
    %v2361 = vpop.f32.mrb[0].mxu0
    %v2362 = vpop.f32.mrb[0].mxu0
    %v2363 = vadd.f32 %v2131, %v2362
    %v2364 = vpop.f32.mrb[0].mxu0
    %2365 = vdwg.mxu0
    %2366 = vmatprep.subr.bf16.mxu0 0
    %2367 = vmatpush1.bf16.msra.mxu0 %v2277
    %2368 = vmatprep.subr.bf16.mxu0 0
    %2369 = vmatpush1.bf16.msra.mxu0 %v2278
    %2370 = vmatprep.subr.bf16.mxu0 0
    %2371 = vmatpush1.bf16.msra.mxu0 %v2279
    %2372 = vmatprep.subr.bf16.mxu0 0
    %2373 = vmatpush1.bf16.msra.mxu0 %v2280
    %2374 = vmatprep.subr.bf16.mxu0 0
    %2375 = vmatpush1.bf16.msra.mxu0 %v2281
    %2376 = vmatprep.subr.bf16.mxu0 0
    %2377 = vmatpush1.bf16.msra.mxu0 %v2282
    %2378 = vmatprep.subr.bf16.mxu0 0
    %2379 = vmatpush1.bf16.msra.mxu0 %v2283
    %2380 = vmatprep.subr.bf16.mxu0 0
    %2381 = vmatpush1.bf16.msra.mxu0 %v2284
    %2382 = vmatprep.subr.bf16.mxu0 0
    %2383 = vmatpush1.bf16.msra.mxu0 %v2285
    %2384 = vmatprep.subr.bf16.mxu0 0
    %2385 = vmatpush1.bf16.msra.mxu0 %v2286
    %2386 = vmatprep.subr.bf16.mxu0 0
    %2387 = vmatpush1.bf16.msra.mxu0 %v2287
    %2388 = vmatprep.subr.bf16.mxu0 0
    %2389 = vmatpush1.bf16.msra.mxu0 %v2288
    %2390 = vmatprep.subr.bf16.mxu0 0
    %2391 = vmatpush1.bf16.msra.mxu0 %v2289
    %2392 = vmatprep.subr.bf16.mxu0 0
    %2393 = vmatpush1.bf16.msra.mxu0 %v2290
    %2394 = vmatprep.subr.bf16.mxu0 0
    %2395 = vmatpush1.bf16.msra.mxu0 %v2291
    %2396 = vmatprep.subr.bf16.mxu0 0
    %2397 = vmatpush1.bf16.msra.mxu0 %v2292
    %2398 = vmatprep.mubr.bf16.mxu0 %v2061
    %2399 = vmatmul.mubr.bf16.gmra.mrb[0].mxu0 %v2060
    %v2400 = vpop.f32.mrb[0].mxu0
    %v2401 = vadd.f32 %v2360, %v2400
    %v2402 = vpop.f32.mrb[0].mxu0
    %v2403 = vpop.f32.mrb[0].mxu0
    %v2404 = vadd.f32 %v2363, %v2403
    %v2405 = vpop.f32.mrb[0].mxu0
    %2406 = vdwg.mxu0
    %v2407 = vmax.f32 %v2401, 0.0
    %v2408 = vmax.f32 %v2404, 0.0
    %v2409 = vpack.c.bf16 %v2408, %v2407
    %v2410 = vld [vmem:[%s5] sm:$0xf]
    %v2411 = vld [vmem:[%s5 + $0x4] sm:$0xf]
    %v2412 = vld [vmem:[%s5 + $0x8] sm:$0xf]
    %v2413 = vld [vmem:[%s5 + $0xc] sm:$0xf]
    %v2414 = vld [vmem:[%s5 + $0x10] sm:$0xf]
    %v2415 = vld [vmem:[%s5 + $0x14] sm:$0xf]
    %v2416 = vld [vmem:[%s5 + $0x18] sm:$0xf]
    %v2417 = vld [vmem:[%s5 + $0x1c] sm:$0xf]
    %v2418 = vld [vmem:[%s5 + $0x20] sm:$0xf]
    %v2419 = vld [vmem:[%s5 + $0x24] sm:$0xf]
    %v2420 = vld [vmem:[%s5 + $0x28] sm:$0xf]
    %v2421 = vld [vmem:[%s5 + $0x2c] sm:$0xf]
    %v2422 = vld [vmem:[%s5 + $0x30] sm:$0xf]
    %v2423 = vld [vmem:[%s5 + $0x34] sm:$0xf]
    %v2424 = vld [vmem:[%s5 + $0x38] sm:$0xf]
    %v2425 = vld [vmem:[%s5 + $0x3c] sm:$0xf]
    %v2426 = vld [vmem:[%s6] sm:$0x1]
    %v2428 = vlaneseq
    %v2429 = vshrl.u32 %v2428, 7
    %v2430 = vsub.s32 0, %v2429
    %v2431 = vrot.slane %v2426, %v2430
    %v2449 = vunpack.c.l.b16 %v2410
    %v2450 = vunpack.c.l.b16 %v2411
    %v2451 = vunpack.c.l.b16 %v2412
    %v2452 = vunpack.c.l.b16 %v2413
    %v2453 = vunpack.c.l.b16 %v2414
    %v2454 = vunpack.c.l.b16 %v2415
    %v2455 = vunpack.c.l.b16 %v2416
    %v2456 = vunpack.c.l.b16 %v2417
    %v2457 = vunpack.c.l.b16 %v2418
    %v2458 = vunpack.c.l.b16 %v2419
    %v2459 = vunpack.c.l.b16 %v2420
    %v2460 = vunpack.c.l.b16 %v2421
    %v2461 = vunpack.c.l.b16 %v2422
    %v2462 = vunpack.c.l.b16 %v2423
    %v2463 = vunpack.c.l.b16 %v2424
    %v2464 = vunpack.c.l.b16 %v2425
    %v2465 = vpack.c.b16 %v2450, %v2449
    %v2466 = vpack.c.b16 %v2452, %v2451
    %v2467 = vpack.c.b16 %v2454, %v2453
    %v2468 = vpack.c.b16 %v2456, %v2455
    %v2469 = vpack.c.b16 %v2458, %v2457
    %v2470 = vpack.c.b16 %v2460, %v2459
    %v2471 = vpack.c.b16 %v2462, %v2461
    %v2472 = vpack.c.b16 %v2464, %v2463
    %2481 = vmatprep.subr.bf16.mxu0 0
    %2482 = vmatpush1.bf16.msra.mxu0 %v2465
    %2483 = vmatprep.subr.bf16.mxu0 0
    %2484 = vmatpush1.bf16.msra.mxu0 %v2466
    %2485 = vmatprep.subr.bf16.mxu0 0
    %2486 = vmatpush1.bf16.msra.mxu0 %v2467
    %2487 = vmatprep.subr.bf16.mxu0 0
    %2488 = vmatpush1.bf16.msra.mxu0 %v2468
    %2489 = vmatprep.subr.bf16.mxu0 0
    %2490 = vmatpush1.bf16.msra.mxu0 %v2469
    %2491 = vmatprep.subr.bf16.mxu0 0
    %2492 = vmatpush1.bf16.msra.mxu0 %v2470
    %2493 = vmatprep.subr.bf16.mxu0 0
    %2494 = vmatpush1.bf16.msra.mxu0 %v2471
    %2495 = vmatprep.subr.bf16.mxu0 0
    %2496 = vmatpush1.bf16.msra.mxu0 %v2472
    %2497 = vmatprep.subr.bf16.mxu0 0
    %2498 = vmatpush1.bf16.msra.mxu0 0
    %2499 = vmatprep.subr.bf16.mxu0 0
    %2500 = vmatpush1.bf16.msra.mxu0 0
    %2501 = vmatprep.subr.bf16.mxu0 0
    %2502 = vmatpush1.bf16.msra.mxu0 0
    %2503 = vmatprep.subr.bf16.mxu0 0
    %2504 = vmatpush1.bf16.msra.mxu0 0
    %2505 = vmatprep.subr.bf16.mxu0 0
    %2506 = vmatpush1.bf16.msra.mxu0 0
    %2507 = vmatprep.subr.bf16.mxu0 0
    %2508 = vmatpush1.bf16.msra.mxu0 0
    %2509 = vmatprep.subr.bf16.mxu0 0
    %2510 = vmatpush1.bf16.msra.mxu0 0
    %2511 = vmatprep.subr.bf16.mxu0 0
    %2512 = vmatpush1.bf16.msra.mxu0 0
    %2513 = vmatprep.mubr.bf16.mxu0 0
    %2514 = vmatmul.mubr.bf16.gmra.mrb[0].mxu0 %v2409
    %v2515 = vpop.f32.mrb[0].mxu0
    %v2516 = vadd.f32 %v2431, %v2515
    %v2517 = vpop.f32.mrb[0].mxu0
    %v2518 = vpop.f32.mrb[0].mxu0
    %v2519 = vadd.f32 %v2431, %v2518
    %v2520 = vpop.f32.mrb[0].mxu0
    %2521 = vdwg.mxu0
    %v2522 = vmax.f32 %v2516, 0.0
    %v2523 = vmax.f32 %v2519, 0.0
    %v2524 = vpack.c.bf16 %v2523, %v2522
    %v2525 = vld [vmem:[%s7] sm:$0xf]
    %v2526 = vld [vmem:[%s7 + $0x4] sm:$0xf]
    %v2527 = vld [vmem:[%s7 + $0x8] sm:$0xf]
    %v2528 = vld [vmem:[%s7 + $0xc] sm:$0xf]
    %v2529 = vld [vmem:[%s7 + $0x10] sm:$0xf]
    %v2530 = vld [vmem:[%s7 + $0x14] sm:$0xf]
    %v2531 = vld [vmem:[%s7 + $0x18] sm:$0xf]
    %v2532 = vld [vmem:[%s7 + $0x1c] sm:$0xf]
    %v2533 = vld [vmem:[%s7 + $0x20] sm:$0xf]
    %v2534 = vld [vmem:[%s7 + $0x24] sm:$0xf]
    %v2535 = vld [vmem:[%s7 + $0x28] sm:$0xf]
    %v2536 = vld [vmem:[%s7 + $0x2c] sm:$0xf]
    %v2537 = vld [vmem:[%s7 + $0x30] sm:$0xf]
    %v2538 = vld [vmem:[%s7 + $0x34] sm:$0xf]
    %v2539 = vld [vmem:[%s7 + $0x38] sm:$0xf]
    %v2540 = vld [vmem:[%s7 + $0x3c] sm:$0xf]
    %v2541 = vld [vmem:[%s8] sm:$0x1]
    %v2543 = vlaneseq
    %v2544 = vshrl.u32 %v2543, 7
    %v2545 = vsub.s32 0, %v2544
    %v2546 = vrot.slane %v2541, %v2545
    %v2564 = vunpack.c.l.b16 %v2525
    %v2565 = vunpack.c.l.b16 %v2526
    %v2566 = vunpack.c.l.b16 %v2527
    %v2567 = vunpack.c.l.b16 %v2528
    %v2568 = vunpack.c.l.b16 %v2529
    %v2569 = vunpack.c.l.b16 %v2530
    %v2570 = vunpack.c.l.b16 %v2531
    %v2571 = vunpack.c.l.b16 %v2532
    %v2572 = vunpack.c.l.b16 %v2533
    %v2573 = vunpack.c.l.b16 %v2534
    %v2574 = vunpack.c.l.b16 %v2535
    %v2575 = vunpack.c.l.b16 %v2536
    %v2576 = vunpack.c.l.b16 %v2537
    %v2577 = vunpack.c.l.b16 %v2538
    %v2578 = vunpack.c.l.b16 %v2539
    %v2579 = vunpack.c.l.b16 %v2540
    %v2580 = vpack.c.b16 %v2565, %v2564
    %v2581 = vpack.c.b16 %v2567, %v2566
    %v2582 = vpack.c.b16 %v2569, %v2568
    %v2583 = vpack.c.b16 %v2571, %v2570
    %v2584 = vpack.c.b16 %v2573, %v2572
    %v2585 = vpack.c.b16 %v2575, %v2574
    %v2586 = vpack.c.b16 %v2577, %v2576
    %v2587 = vpack.c.b16 %v2579, %v2578
    %2596 = vmatprep.subr.bf16.mxu0 0
    %2597 = vmatpush1.bf16.msra.mxu0 %v2580
    %2598 = vmatprep.subr.bf16.mxu0 0
    %2599 = vmatpush1.bf16.msra.mxu0 %v2581
    %2600 = vmatprep.subr.bf16.mxu0 0
    %2601 = vmatpush1.bf16.msra.mxu0 %v2582
    %2602 = vmatprep.subr.bf16.mxu0 0
    %2603 = vmatpush1.bf16.msra.mxu0 %v2583
    %2604 = vmatprep.subr.bf16.mxu0 0
    %2605 = vmatpush1.bf16.msra.mxu0 %v2584
    %2606 = vmatprep.subr.bf16.mxu0 0
    %2607 = vmatpush1.bf16.msra.mxu0 %v2585
    %2608 = vmatprep.subr.bf16.mxu0 0
    %2609 = vmatpush1.bf16.msra.mxu0 %v2586
    %2610 = vmatprep.subr.bf16.mxu0 0
    %2611 = vmatpush1.bf16.msra.mxu0 %v2587
    %2612 = vmatprep.subr.bf16.mxu0 0
    %2613 = vmatpush1.bf16.msra.mxu0 0
    %2614 = vmatprep.subr.bf16.mxu0 0
    %2615 = vmatpush1.bf16.msra.mxu0 0
    %2616 = vmatprep.subr.bf16.mxu0 0
    %2617 = vmatpush1.bf16.msra.mxu0 0
    %2618 = vmatprep.subr.bf16.mxu0 0
    %2619 = vmatpush1.bf16.msra.mxu0 0
    %2620 = vmatprep.subr.bf16.mxu0 0
    %2621 = vmatpush1.bf16.msra.mxu0 0
    %2622 = vmatprep.subr.bf16.mxu0 0
    %2623 = vmatpush1.bf16.msra.mxu0 0
    %2624 = vmatprep.subr.bf16.mxu0 0
    %2625 = vmatpush1.bf16.msra.mxu0 0
    %2626 = vmatprep.subr.bf16.mxu0 0
    %2627 = vmatpush1.bf16.msra.mxu0 0
    %2628 = vmatprep.mubr.bf16.mxu0 0
    %2629 = vmatmul.mubr.bf16.gmra.mrb[0].mxu0 %v2524
    %v2630 = vpop.f32.mrb[0].mxu0
    %v2631 = vadd.f32 %v2546, %v2630
    %v2632 = vpop.f32.mrb[0].mxu0
    %v2633 = vpop.f32.mrb[0].mxu0
    %v2634 = vadd.f32 %v2546, %v2633
    %v2635 = vpop.f32.mrb[0].mxu0
    %2636 = vdwg.mxu0
    %v2637 = vmax.f32 %v2631, 0.0
    %v2638 = vmax.f32 %v2634, 0.0
    %v2639 = vpack.c.bf16 %v2638, %v2637
    %v2640 = vld [vmem:[#allocation6] sm:$0xff]
    %v2641 = vld [vmem:[#allocation6 + $0x8] sm:$0xff]
    %v2642 = vld [vmem:[#allocation6 + $0x10] sm:$0xff]
    %v2643 = vld [vmem:[#allocation6 + $0x18] sm:$0xff]
    %v2644 = vld [vmem:[#allocation6 + $0x20] sm:$0xff]
    %v2645 = vld [vmem:[#allocation6 + $0x28] sm:$0xff]
    %v2646 = vld [vmem:[#allocation6 + $0x30] sm:$0xff]
    %v2647 = vld [vmem:[#allocation6 + $0x38] sm:$0xff]
    %v2648 = vld [vmem:[#allocation6 + $0x40] sm:$0xff]
    %v2649 = vld [vmem:[#allocation6 + $0x48] sm:$0xff]
    %v2650 = vld [vmem:[#allocation6 + $0x50] sm:$0xff]
    %v2651 = vld [vmem:[#allocation6 + $0x58] sm:$0xff]
    %v2652 = vld [vmem:[#allocation6 + $0x60] sm:$0xff]
    %v2653 = vld [vmem:[#allocation6 + $0x68] sm:$0xff]
    %v2654 = vld [vmem:[#allocation6 + $0x70] sm:$0xff]
    %v2655 = vld [vmem:[#allocation6 + $0x78] sm:$0xff]
    %v2656 = vld [vmem:[#allocation6 + $0x80] sm:$0xff]
    %v2657 = vld [vmem:[#allocation6 + $0x88] sm:$0xff]
    %v2658 = vld [vmem:[#allocation6 + $0x90] sm:$0xff]
    %v2659 = vld [vmem:[#allocation6 + $0x98] sm:$0xff]
    %v2660 = vld [vmem:[#allocation6 + $0xa0] sm:$0xff]
    %v2661 = vld [vmem:[#allocation6 + $0xa8] sm:$0xff]
    %v2662 = vld [vmem:[#allocation6 + $0xb0] sm:$0xff]
    %v2663 = vld [vmem:[#allocation6 + $0xb8] sm:$0xff]
    %v2664 = vld [vmem:[#allocation6 + $0xc0] sm:$0xff]
    %v2665 = vld [vmem:[#allocation6 + $0xc8] sm:$0xff]
    %v2666 = vld [vmem:[#allocation6 + $0xd0] sm:$0xff]
    %v2667 = vld [vmem:[#allocation6 + $0xd8] sm:$0xff]
    %v2668 = vld [vmem:[#allocation6 + $0xe0] sm:$0xff]
    %v2669 = vld [vmem:[#allocation6 + $0xe8] sm:$0xff]
    %v2670 = vld [vmem:[#allocation6 + $0xf0] sm:$0xff]
    %v2671 = vld [vmem:[#allocation6 + $0xf8] sm:$0xff]
    %v2672 = vld [vmem:[%s10] sm:$0xf]
    %v2674 = vlaneseq
    %v2675 = vshrl.u32 %v2674, 7
    %v2676 = vsub.s32 0, %v2675
    %v2677 = vrot.slane %v2672, %v2676
    %v2678 = vlaneseq
    %v2679 = vshrl.u32 %v2678, 7
    %v2680 = vsub.s32 1, %v2679
    %v2681 = vrot.slane %v2672, %v2680
    %v2682 = vlaneseq
    %v2683 = vshrl.u32 %v2682, 7
    %v2684 = vsub.s32 2, %v2683
    %v2685 = vrot.slane %v2672, %v2684
    %v2686 = vlaneseq
    %v2687 = vshrl.u32 %v2686, 7
    %v2688 = vsub.s32 3, %v2687
    %v2689 = vrot.slane %v2672, %v2688
    %v2726 = vunpack.c.l.b16 %v2640
    %v2727 = vunpack.c.h.b16 %v2640
    %v2728 = vunpack.c.l.b16 %v2641
    %v2729 = vunpack.c.h.b16 %v2641
    %v2730 = vunpack.c.l.b16 %v2642
    %v2731 = vunpack.c.h.b16 %v2642
    %v2732 = vunpack.c.l.b16 %v2643
    %v2733 = vunpack.c.h.b16 %v2643
    %v2734 = vunpack.c.l.b16 %v2644
    %v2735 = vunpack.c.h.b16 %v2644
    %v2736 = vunpack.c.l.b16 %v2645
    %v2737 = vunpack.c.h.b16 %v2645
    %v2738 = vunpack.c.l.b16 %v2646
    %v2739 = vunpack.c.h.b16 %v2646
    %v2740 = vunpack.c.l.b16 %v2647
    %v2741 = vunpack.c.h.b16 %v2647
    %v2742 = vunpack.c.l.b16 %v2648
    %v2743 = vunpack.c.h.b16 %v2648
    %v2744 = vunpack.c.l.b16 %v2649
    %v2745 = vunpack.c.h.b16 %v2649
    %v2746 = vunpack.c.l.b16 %v2650
    %v2747 = vunpack.c.h.b16 %v2650
    %v2748 = vunpack.c.l.b16 %v2651
    %v2749 = vunpack.c.h.b16 %v2651
    %v2750 = vunpack.c.l.b16 %v2652
    %v2751 = vunpack.c.h.b16 %v2652
    %v2752 = vunpack.c.l.b16 %v2653
    %v2753 = vunpack.c.h.b16 %v2653
    %v2754 = vunpack.c.l.b16 %v2654
    %v2755 = vunpack.c.h.b16 %v2654
    %v2756 = vunpack.c.l.b16 %v2655
    %v2757 = vunpack.c.h.b16 %v2655
    %v2758 = vunpack.c.l.b16 %v2656
    %v2759 = vunpack.c.h.b16 %v2656
    %v2760 = vunpack.c.l.b16 %v2657
    %v2761 = vunpack.c.h.b16 %v2657
    %v2762 = vunpack.c.l.b16 %v2658
    %v2763 = vunpack.c.h.b16 %v2658
    %v2764 = vunpack.c.l.b16 %v2659
    %v2765 = vunpack.c.h.b16 %v2659
    %v2766 = vunpack.c.l.b16 %v2660
    %v2767 = vunpack.c.h.b16 %v2660
    %v2768 = vunpack.c.l.b16 %v2661
    %v2769 = vunpack.c.h.b16 %v2661
    %v2770 = vunpack.c.l.b16 %v2662
    %v2771 = vunpack.c.h.b16 %v2662
    %v2772 = vunpack.c.l.b16 %v2663
    %v2773 = vunpack.c.h.b16 %v2663
    %v2774 = vunpack.c.l.b16 %v2664
    %v2775 = vunpack.c.h.b16 %v2664
    %v2776 = vunpack.c.l.b16 %v2665
    %v2777 = vunpack.c.h.b16 %v2665
    %v2778 = vunpack.c.l.b16 %v2666
    %v2779 = vunpack.c.h.b16 %v2666
    %v2780 = vunpack.c.l.b16 %v2667
    %v2781 = vunpack.c.h.b16 %v2667
    %v2782 = vunpack.c.l.b16 %v2668
    %v2783 = vunpack.c.h.b16 %v2668
    %v2784 = vunpack.c.l.b16 %v2669
    %v2785 = vunpack.c.h.b16 %v2669
    %v2786 = vunpack.c.l.b16 %v2670
    %v2787 = vunpack.c.h.b16 %v2670
    %v2788 = vunpack.c.l.b16 %v2671
    %v2789 = vunpack.c.h.b16 %v2671
    %v2790 = vpack.c.b16 %v2730, %v2726
    %v2791 = vpack.c.b16 %v2731, %v2727
    %v2792 = vpack.c.b16 %v2732, %v2728
    %v2793 = vpack.c.b16 %v2733, %v2729
    %v2794 = vpack.c.b16 %v2738, %v2734
    %v2795 = vpack.c.b16 %v2739, %v2735
    %v2796 = vpack.c.b16 %v2740, %v2736
    %v2797 = vpack.c.b16 %v2741, %v2737
    %v2798 = vpack.c.b16 %v2746, %v2742
    %v2799 = vpack.c.b16 %v2747, %v2743
    %v2800 = vpack.c.b16 %v2748, %v2744
    %v2801 = vpack.c.b16 %v2749, %v2745
    %v2802 = vpack.c.b16 %v2754, %v2750
    %v2803 = vpack.c.b16 %v2755, %v2751
    %v2804 = vpack.c.b16 %v2756, %v2752
    %v2805 = vpack.c.b16 %v2757, %v2753
    %v2806 = vpack.c.b16 %v2762, %v2758
    %v2807 = vpack.c.b16 %v2763, %v2759
    %v2808 = vpack.c.b16 %v2764, %v2760
    %v2809 = vpack.c.b16 %v2765, %v2761
    %v2810 = vpack.c.b16 %v2770, %v2766
    %v2811 = vpack.c.b16 %v2771, %v2767
    %v2812 = vpack.c.b16 %v2772, %v2768
    %v2813 = vpack.c.b16 %v2773, %v2769
    %v2814 = vpack.c.b16 %v2778, %v2774
    %v2815 = vpack.c.b16 %v2779, %v2775
    %v2816 = vpack.c.b16 %v2780, %v2776
    %v2817 = vpack.c.b16 %v2781, %v2777
    %v2818 = vpack.c.b16 %v2786, %v2782
    %v2819 = vpack.c.b16 %v2787, %v2783
    %v2820 = vpack.c.b16 %v2788, %v2784
    %v2821 = vpack.c.b16 %v2789, %v2785
    %2854 = vmatprep.subr.bf16.mxu0 %v2791
    %2855 = vmatpush1.bf16.msra.mxu0 %v2790
    %2856 = vmatprep.subr.bf16.mxu0 %v2795
    %2857 = vmatpush1.bf16.msra.mxu0 %v2794
    %2858 = vmatprep.subr.bf16.mxu0 %v2799
    %2859 = vmatpush1.bf16.msra.mxu0 %v2798
    %2860 = vmatprep.subr.bf16.mxu0 %v2803
    %2861 = vmatpush1.bf16.msra.mxu0 %v2802
    %2862 = vmatprep.subr.bf16.mxu0 %v2807
    %2863 = vmatpush1.bf16.msra.mxu0 %v2806
    %2864 = vmatprep.subr.bf16.mxu0 %v2811
    %2865 = vmatpush1.bf16.msra.mxu0 %v2810
    %2866 = vmatprep.subr.bf16.mxu0 %v2815
    %2867 = vmatpush1.bf16.msra.mxu0 %v2814
    %2868 = vmatprep.subr.bf16.mxu0 %v2819
    %2869 = vmatpush1.bf16.msra.mxu0 %v2818
    %2870 = vmatprep.subr.bf16.mxu0 0
    %2871 = vmatpush1.bf16.msra.mxu0 0
    %2872 = vmatprep.subr.bf16.mxu0 0
    %2873 = vmatpush1.bf16.msra.mxu0 0
    %2874 = vmatprep.subr.bf16.mxu0 0
    %2875 = vmatpush1.bf16.msra.mxu0 0
    %2876 = vmatprep.subr.bf16.mxu0 0
    %2877 = vmatpush1.bf16.msra.mxu0 0
    %2878 = vmatprep.subr.bf16.mxu0 0
    %2879 = vmatpush1.bf16.msra.mxu0 0
    %2880 = vmatprep.subr.bf16.mxu0 0
    %2881 = vmatpush1.bf16.msra.mxu0 0
    %2882 = vmatprep.subr.bf16.mxu0 0
    %2883 = vmatpush1.bf16.msra.mxu0 0
    %2884 = vmatprep.subr.bf16.mxu0 0
    %2885 = vmatpush1.bf16.msra.mxu0 0
    %2886 = vmatprep.mubr.bf16.mxu0 0
    %2887 = vmatmul.mubr.bf16.gmra.mrb[0].mxu0 %v2639
    %v2888 = vpop.f32.mrb[0].mxu0
    %v2889 = vadd.f32 %v2677, %v2888
    %v2890 = vpop.f32.mrb[0].mxu0
    %v2891 = vadd.f32 %v2681, %v2890
    %v2892 = vpop.f32.mrb[0].mxu0
    %v2893 = vadd.f32 %v2677, %v2892
    %v2894 = vpop.f32.mrb[0].mxu0
    %v2895 = vadd.f32 %v2681, %v2894
    %2896 = vdwg.mxu0
    %2897 = vmatprep.subr.bf16.mxu0 %v2793
    %2898 = vmatpush1.bf16.msra.mxu0 %v2792
    %2899 = vmatprep.subr.bf16.mxu0 %v2797
    %2900 = vmatpush1.bf16.msra.mxu0 %v2796
    %2901 = vmatprep.subr.bf16.mxu0 %v2801
    %2902 = vmatpush1.bf16.msra.mxu0 %v2800
    %2903 = vmatprep.subr.bf16.mxu0 %v2805
    %2904 = vmatpush1.bf16.msra.mxu0 %v2804
    %2905 = vmatprep.subr.bf16.mxu0 %v2809
    %2906 = vmatpush1.bf16.msra.mxu0 %v2808
    %2907 = vmatprep.subr.bf16.mxu0 %v2813
    %2908 = vmatpush1.bf16.msra.mxu0 %v2812
    %2909 = vmatprep.subr.bf16.mxu0 %v2817
    %2910 = vmatpush1.bf16.msra.mxu0 %v2816
    %2911 = vmatprep.subr.bf16.mxu0 %v2821
    %2912 = vmatpush1.bf16.msra.mxu0 %v2820
    %2913 = vmatprep.subr.bf16.mxu0 0
    %2914 = vmatpush1.bf16.msra.mxu0 0
    %2915 = vmatprep.subr.bf16.mxu0 0
    %2916 = vmatpush1.bf16.msra.mxu0 0
    %2917 = vmatprep.subr.bf16.mxu0 0
    %2918 = vmatpush1.bf16.msra.mxu0 0
    %2919 = vmatprep.subr.bf16.mxu0 0
    %2920 = vmatpush1.bf16.msra.mxu0 0
    %2921 = vmatprep.subr.bf16.mxu0 0
    %2922 = vmatpush1.bf16.msra.mxu0 0
    %2923 = vmatprep.subr.bf16.mxu0 0
    %2924 = vmatpush1.bf16.msra.mxu0 0
    %2925 = vmatprep.subr.bf16.mxu0 0
    %2926 = vmatpush1.bf16.msra.mxu0 0
    %2927 = vmatprep.subr.bf16.mxu0 0
    %2928 = vmatpush1.bf16.msra.mxu0 0
    %2929 = vmatprep.mubr.bf16.mxu0 0
    %2930 = vmatmul.mubr.bf16.gmra.mrb[0].mxu0 %v2639
    %v2931 = vpop.f32.mrb[0].mxu0
    %v2932 = vadd.f32 %v2685, %v2931
    %v2933 = vpop.f32.mrb[0].mxu0
    %v2934 = vadd.f32 %v2689, %v2933
    %v2935 = vpop.f32.mrb[0].mxu0
    %v2936 = vadd.f32 %v2685, %v2935
    %v2937 = vpop.f32.mrb[0].mxu0
    %v2938 = vadd.f32 %v2689, %v2937
    %2939 = vdwg.mxu0
    %v2940 = vmax.f32 %v2889, 0.0
    %v2941 = vmax.f32 %v2891, 0.0
    %v2942 = vmax.f32 %v2932, 0.0
    %v2943 = vmax.f32 %v2934, 0.0
    %v2944 = vmax.f32 %v2893, 0.0
    %v2945 = vmax.f32 %v2895, 0.0
    %v2946 = vmax.f32 %v2936, 0.0
    %v2947 = vmax.f32 %v2938, 0.0
    %v2948 = vpack.c.bf16 %v2944, %v2940
    %v2949 = vpack.c.bf16 %v2945, %v2941
    %v2950 = vpack.c.bf16 %v2946, %v2942
    %v2951 = vpack.c.bf16 %v2947, %v2943
    %v2952 = vld [vmem:[#allocation7] sm:$0xff]
    %v2953 = vld [vmem:[#allocation7 + $0x8] sm:$0xff]
    %v2954 = vld [vmem:[#allocation7 + $0x10] sm:$0xff]
    %v2955 = vld [vmem:[#allocation7 + $0x18] sm:$0xff]
    %v2956 = vld [vmem:[#allocation7 + $0x20] sm:$0xff]
    %v2957 = vld [vmem:[#allocation7 + $0x28] sm:$0xff]
    %v2958 = vld [vmem:[#allocation7 + $0x30] sm:$0xff]
    %v2959 = vld [vmem:[#allocation7 + $0x38] sm:$0xff]
    %v2960 = vld [vmem:[#allocation7 + $0x40] sm:$0xff]
    %v2961 = vld [vmem:[#allocation7 + $0x48] sm:$0xff]
    %v2962 = vld [vmem:[#allocation7 + $0x50] sm:$0xff]
    %v2963 = vld [vmem:[#allocation7 + $0x58] sm:$0xff]
    %v2964 = vld [vmem:[#allocation7 + $0x60] sm:$0xff]
    %v2965 = vld [vmem:[#allocation7 + $0x68] sm:$0xff]
    %v2966 = vld [vmem:[#allocation7 + $0x70] sm:$0xff]
    %v2967 = vld [vmem:[#allocation7 + $0x78] sm:$0xff]
    %v2968 = vld [vmem:[#allocation7 + $0x80] sm:$0xff]
    %v2969 = vld [vmem:[#allocation7 + $0x88] sm:$0xff]
    %v2970 = vld [vmem:[#allocation7 + $0x90] sm:$0xff]
    %v2971 = vld [vmem:[#allocation7 + $0x98] sm:$0xff]
    %v2972 = vld [vmem:[#allocation7 + $0xa0] sm:$0xff]
    %v2973 = vld [vmem:[#allocation7 + $0xa8] sm:$0xff]
    %v2974 = vld [vmem:[#allocation7 + $0xb0] sm:$0xff]
    %v2975 = vld [vmem:[#allocation7 + $0xb8] sm:$0xff]
    %v2976 = vld [vmem:[#allocation7 + $0xc0] sm:$0xff]
    %v2977 = vld [vmem:[#allocation7 + $0xc8] sm:$0xff]
    %v2978 = vld [vmem:[#allocation7 + $0xd0] sm:$0xff]
    %v2979 = vld [vmem:[#allocation7 + $0xd8] sm:$0xff]
    %v2980 = vld [vmem:[#allocation7 + $0xe0] sm:$0xff]
    %v2981 = vld [vmem:[#allocation7 + $0xe8] sm:$0xff]
    %v2982 = vld [vmem:[#allocation7 + $0xf0] sm:$0xff]
    %v2983 = vld [vmem:[#allocation7 + $0xf8] sm:$0xff]
    %v2984 = vld [vmem:[#allocation7 + $0x100] sm:$0xff]
    %v2985 = vld [vmem:[#allocation7 + $0x108] sm:$0xff]
    %v2986 = vld [vmem:[#allocation7 + $0x110] sm:$0xff]
    %v2987 = vld [vmem:[#allocation7 + $0x118] sm:$0xff]
    %v2988 = vld [vmem:[#allocation7 + $0x120] sm:$0xff]
    %v2989 = vld [vmem:[#allocation7 + $0x128] sm:$0xff]
    %v2990 = vld [vmem:[#allocation7 + $0x130] sm:$0xff]
    %v2991 = vld [vmem:[#allocation7 + $0x138] sm:$0xff]
    %v2992 = vld [vmem:[#allocation7 + $0x140] sm:$0xff]
    %v2993 = vld [vmem:[#allocation7 + $0x148] sm:$0xff]
    %v2994 = vld [vmem:[#allocation7 + $0x150] sm:$0xff]
    %v2995 = vld [vmem:[#allocation7 + $0x158] sm:$0xff]
    %v2996 = vld [vmem:[#allocation7 + $0x160] sm:$0xff]
    %v2997 = vld [vmem:[#allocation7 + $0x168] sm:$0xff]
    %v2998 = vld [vmem:[#allocation7 + $0x170] sm:$0xff]
    %v2999 = vld [vmem:[#allocation7 + $0x178] sm:$0xff]
    %v3000 = vld [vmem:[#allocation7 + $0x180] sm:$0xff]
    %v3001 = vld [vmem:[#allocation7 + $0x188] sm:$0xff]
    %v3002 = vld [vmem:[#allocation7 + $0x190] sm:$0xff]
    %v3003 = vld [vmem:[#allocation7 + $0x198] sm:$0xff]
    %v3004 = vld [vmem:[#allocation7 + $0x1a0] sm:$0xff]
    %v3005 = vld [vmem:[#allocation7 + $0x1a8] sm:$0xff]
    %v3006 = vld [vmem:[#allocation7 + $0x1b0] sm:$0xff]
    %v3007 = vld [vmem:[#allocation7 + $0x1b8] sm:$0xff]
    %v3008 = vld [vmem:[#allocation7 + $0x1c0] sm:$0xff]
    %v3009 = vld [vmem:[#allocation7 + $0x1c8] sm:$0xff]
    %v3010 = vld [vmem:[#allocation7 + $0x1d0] sm:$0xff]
    %v3011 = vld [vmem:[#allocation7 + $0x1d8] sm:$0xff]
    %v3012 = vld [vmem:[#allocation7 + $0x1e0] sm:$0xff]
    %v3013 = vld [vmem:[#allocation7 + $0x1e8] sm:$0xff]
    %v3014 = vld [vmem:[#allocation7 + $0x1f0] sm:$0xff]
    %v3015 = vld [vmem:[#allocation7 + $0x1f8] sm:$0xff]
    %v3016 = vld [vmem:[#allocation7 + $0x200] sm:$0xff]
    %v3017 = vld [vmem:[#allocation7 + $0x208] sm:$0xff]
    %v3018 = vld [vmem:[#allocation7 + $0x210] sm:$0xff]
    %v3019 = vld [vmem:[#allocation7 + $0x218] sm:$0xff]
    %v3020 = vld [vmem:[#allocation7 + $0x220] sm:$0xff]
    %v3021 = vld [vmem:[#allocation7 + $0x228] sm:$0xff]
    %v3022 = vld [vmem:[#allocation7 + $0x230] sm:$0xff]
    %v3023 = vld [vmem:[#allocation7 + $0x238] sm:$0xff]
    %v3024 = vld [vmem:[#allocation7 + $0x240] sm:$0xff]
    %v3025 = vld [vmem:[#allocation7 + $0x248] sm:$0xff]
    %v3026 = vld [vmem:[#allocation7 + $0x250] sm:$0xff]
    %v3027 = vld [vmem:[#allocation7 + $0x258] sm:$0xff]
    %v3028 = vld [vmem:[#allocation7 + $0x260] sm:$0xff]
    %v3029 = vld [vmem:[#allocation7 + $0x268] sm:$0xff]
    %v3030 = vld [vmem:[#allocation7 + $0x270] sm:$0xff]
    %v3031 = vld [vmem:[#allocation7 + $0x278] sm:$0xff]
    %v3032 = vld [vmem:[#allocation7 + $0x280] sm:$0xff]
    %v3033 = vld [vmem:[#allocation7 + $0x288] sm:$0xff]
    %v3034 = vld [vmem:[#allocation7 + $0x290] sm:$0xff]
    %v3035 = vld [vmem:[#allocation7 + $0x298] sm:$0xff]
    %v3036 = vld [vmem:[#allocation7 + $0x2a0] sm:$0xff]
    %v3037 = vld [vmem:[#allocation7 + $0x2a8] sm:$0xff]
    %v3038 = vld [vmem:[#allocation7 + $0x2b0] sm:$0xff]
    %v3039 = vld [vmem:[#allocation7 + $0x2b8] sm:$0xff]
    %v3040 = vld [vmem:[#allocation7 + $0x2c0] sm:$0xff]
    %v3041 = vld [vmem:[#allocation7 + $0x2c8] sm:$0xff]
    %v3042 = vld [vmem:[#allocation7 + $0x2d0] sm:$0xff]
    %v3043 = vld [vmem:[#allocation7 + $0x2d8] sm:$0xff]
    %v3044 = vld [vmem:[#allocation7 + $0x2e0] sm:$0xff]
    %v3045 = vld [vmem:[#allocation7 + $0x2e8] sm:$0xff]
    %v3046 = vld [vmem:[#allocation7 + $0x2f0] sm:$0xff]
    %v3047 = vld [vmem:[#allocation7 + $0x2f8] sm:$0xff]
    %v3048 = vld [vmem:[#allocation7 + $0x300] sm:$0xff]
    %v3049 = vld [vmem:[#allocation7 + $0x308] sm:$0xff]
    %v3050 = vld [vmem:[#allocation7 + $0x310] sm:$0xff]
    %v3051 = vld [vmem:[#allocation7 + $0x318] sm:$0xff]
    %v3052 = vld [vmem:[#allocation7 + $0x320] sm:$0xff]
    %v3053 = vld [vmem:[#allocation7 + $0x328] sm:$0xff]
    %v3054 = vld [vmem:[#allocation7 + $0x330] sm:$0xff]
    %v3055 = vld [vmem:[#allocation7 + $0x338] sm:$0xff]
    %v3056 = vld [vmem:[#allocation7 + $0x340] sm:$0xff]
    %v3057 = vld [vmem:[#allocation7 + $0x348] sm:$0xff]
    %v3058 = vld [vmem:[#allocation7 + $0x350] sm:$0xff]
    %v3059 = vld [vmem:[#allocation7 + $0x358] sm:$0xff]
    %v3060 = vld [vmem:[#allocation7 + $0x360] sm:$0xff]
    %v3061 = vld [vmem:[#allocation7 + $0x368] sm:$0xff]
    %v3062 = vld [vmem:[#allocation7 + $0x370] sm:$0xff]
    %v3063 = vld [vmem:[#allocation7 + $0x378] sm:$0xff]
    %v3064 = vld [vmem:[#allocation7 + $0x380] sm:$0xff]
    %v3065 = vld [vmem:[#allocation7 + $0x388] sm:$0xff]
    %v3066 = vld [vmem:[#allocation7 + $0x390] sm:$0xff]
    %v3067 = vld [vmem:[#allocation7 + $0x398] sm:$0xff]
    %v3068 = vld [vmem:[#allocation7 + $0x3a0] sm:$0xff]
    %v3069 = vld [vmem:[#allocation7 + $0x3a8] sm:$0xff]
    %v3070 = vld [vmem:[#allocation7 + $0x3b0] sm:$0xff]
    %v3071 = vld [vmem:[#allocation7 + $0x3b8] sm:$0xff]
    %v3072 = vld [vmem:[#allocation7 + $0x3c0] sm:$0xff]
    %v3073 = vld [vmem:[#allocation7 + $0x3c8] sm:$0xff]
    %v3074 = vld [vmem:[#allocation7 + $0x3d0] sm:$0xff]
    %v3075 = vld [vmem:[#allocation7 + $0x3d8] sm:$0xff]
    %v3076 = vld [vmem:[#allocation7 + $0x3e0] sm:$0xff]
    %v3077 = vld [vmem:[#allocation7 + $0x3e8] sm:$0xff]
    %v3078 = vld [vmem:[#allocation7 + $0x3f0] sm:$0xff]
    %v3079 = vld [vmem:[#allocation7 + $0x3f8] sm:$0xff]
    %v3080 = vld [vmem:[#allocation7 + $0x400] sm:$0xff]
    %v3081 = vld [vmem:[#allocation7 + $0x408] sm:$0xff]
    %v3082 = vld [vmem:[#allocation7 + $0x410] sm:$0xff]
    %v3083 = vld [vmem:[#allocation7 + $0x418] sm:$0xff]
    %v3084 = vld [vmem:[#allocation7 + $0x420] sm:$0xff]
    %v3085 = vld [vmem:[#allocation7 + $0x428] sm:$0xff]
    %v3086 = vld [vmem:[#allocation7 + $0x430] sm:$0xff]
    %v3087 = vld [vmem:[#allocation7 + $0x438] sm:$0xff]
    %v3088 = vld [vmem:[#allocation7 + $0x440] sm:$0xff]
    %v3089 = vld [vmem:[#allocation7 + $0x448] sm:$0xff]
    %v3090 = vld [vmem:[#allocation7 + $0x450] sm:$0xff]
    %v3091 = vld [vmem:[#allocation7 + $0x458] sm:$0xff]
    %v3092 = vld [vmem:[#allocation7 + $0x460] sm:$0xff]
    %v3093 = vld [vmem:[#allocation7 + $0x468] sm:$0xff]
    %v3094 = vld [vmem:[#allocation7 + $0x470] sm:$0xff]
    %v3095 = vld [vmem:[#allocation7 + $0x478] sm:$0xff]
    %v3096 = vld [vmem:[#allocation7 + $0x480] sm:$0xff]
    %v3097 = vld [vmem:[#allocation7 + $0x488] sm:$0xff]
    %v3098 = vld [vmem:[#allocation7 + $0x490] sm:$0xff]
    %v3099 = vld [vmem:[#allocation7 + $0x498] sm:$0xff]
    %v3100 = vld [vmem:[#allocation7 + $0x4a0] sm:$0xff]
    %v3101 = vld [vmem:[#allocation7 + $0x4a8] sm:$0xff]
    %v3102 = vld [vmem:[#allocation7 + $0x4b0] sm:$0xff]
    %v3103 = vld [vmem:[#allocation7 + $0x4b8] sm:$0xff]
    %v3104 = vld [vmem:[#allocation7 + $0x4c0] sm:$0xff]
    %v3105 = vld [vmem:[#allocation7 + $0x4c8] sm:$0xff]
    %v3106 = vld [vmem:[#allocation7 + $0x4d0] sm:$0xff]
    %v3107 = vld [vmem:[#allocation7 + $0x4d8] sm:$0xff]
    %v3108 = vld [vmem:[#allocation7 + $0x4e0] sm:$0xff]
    %v3109 = vld [vmem:[#allocation7 + $0x4e8] sm:$0xff]
    %v3110 = vld [vmem:[#allocation7 + $0x4f0] sm:$0xff]
    %v3111 = vld [vmem:[#allocation7 + $0x4f8] sm:$0xff]
    %v3112 = vld [vmem:[#allocation7 + $0x500] sm:$0xff]
    %v3113 = vld [vmem:[#allocation7 + $0x508] sm:$0xff]
    %v3114 = vld [vmem:[#allocation7 + $0x510] sm:$0xff]
    %v3115 = vld [vmem:[#allocation7 + $0x518] sm:$0xff]
    %v3116 = vld [vmem:[#allocation7 + $0x520] sm:$0xff]
    %v3117 = vld [vmem:[#allocation7 + $0x528] sm:$0xff]
    %v3118 = vld [vmem:[#allocation7 + $0x530] sm:$0xff]
    %v3119 = vld [vmem:[#allocation7 + $0x538] sm:$0xff]
    %v3120 = vld [vmem:[#allocation7 + $0x540] sm:$0xff]
    %v3121 = vld [vmem:[#allocation7 + $0x548] sm:$0xff]
    %v3122 = vld [vmem:[#allocation7 + $0x550] sm:$0xff]
    %v3123 = vld [vmem:[#allocation7 + $0x558] sm:$0xff]
    %v3124 = vld [vmem:[#allocation7 + $0x560] sm:$0xff]
    %v3125 = vld [vmem:[#allocation7 + $0x568] sm:$0xff]
    %v3126 = vld [vmem:[#allocation7 + $0x570] sm:$0xff]
    %v3127 = vld [vmem:[#allocation7 + $0x578] sm:$0xff]
    %v3128 = vld [vmem:[#allocation7 + $0x580] sm:$0xff]
    %v3129 = vld [vmem:[#allocation7 + $0x588] sm:$0xff]
    %v3130 = vld [vmem:[#allocation7 + $0x590] sm:$0xff]
    %v3131 = vld [vmem:[#allocation7 + $0x598] sm:$0xff]
    %v3132 = vld [vmem:[#allocation7 + $0x5a0] sm:$0xff]
    %v3133 = vld [vmem:[#allocation7 + $0x5a8] sm:$0xff]
    %v3134 = vld [vmem:[#allocation7 + $0x5b0] sm:$0xff]
    %v3135 = vld [vmem:[#allocation7 + $0x5b8] sm:$0xff]
    %v3136 = vld [vmem:[#allocation7 + $0x5c0] sm:$0xff]
    %v3137 = vld [vmem:[#allocation7 + $0x5c8] sm:$0xff]
    %v3138 = vld [vmem:[#allocation7 + $0x5d0] sm:$0xff]
    %v3139 = vld [vmem:[#allocation7 + $0x5d8] sm:$0xff]
    %v3140 = vld [vmem:[#allocation7 + $0x5e0] sm:$0xff]
    %v3141 = vld [vmem:[#allocation7 + $0x5e8] sm:$0xff]
    %v3142 = vld [vmem:[#allocation7 + $0x5f0] sm:$0xff]
    %v3143 = vld [vmem:[#allocation7 + $0x5f8] sm:$0xff]
    %v3144 = vld [vmem:[#allocation7 + $0x600] sm:$0xff]
    %v3145 = vld [vmem:[#allocation7 + $0x608] sm:$0xff]
    %v3146 = vld [vmem:[#allocation7 + $0x610] sm:$0xff]
    %v3147 = vld [vmem:[#allocation7 + $0x618] sm:$0xff]
    %v3148 = vld [vmem:[#allocation7 + $0x620] sm:$0xff]
    %v3149 = vld [vmem:[#allocation7 + $0x628] sm:$0xff]
    %v3150 = vld [vmem:[#allocation7 + $0x630] sm:$0xff]
    %v3151 = vld [vmem:[#allocation7 + $0x638] sm:$0xff]
    %v3152 = vld [vmem:[#allocation7 + $0x640] sm:$0xff]
    %v3153 = vld [vmem:[#allocation7 + $0x648] sm:$0xff]
    %v3154 = vld [vmem:[#allocation7 + $0x650] sm:$0xff]
    %v3155 = vld [vmem:[#allocation7 + $0x658] sm:$0xff]
    %v3156 = vld [vmem:[#allocation7 + $0x660] sm:$0xff]
    %v3157 = vld [vmem:[#allocation7 + $0x668] sm:$0xff]
    %v3158 = vld [vmem:[#allocation7 + $0x670] sm:$0xff]
    %v3159 = vld [vmem:[#allocation7 + $0x678] sm:$0xff]
    %v3160 = vld [vmem:[#allocation7 + $0x680] sm:$0xff]
    %v3161 = vld [vmem:[#allocation7 + $0x688] sm:$0xff]
    %v3162 = vld [vmem:[#allocation7 + $0x690] sm:$0xff]
    %v3163 = vld [vmem:[#allocation7 + $0x698] sm:$0xff]
    %v3164 = vld [vmem:[#allocation7 + $0x6a0] sm:$0xff]
    %v3165 = vld [vmem:[#allocation7 + $0x6a8] sm:$0xff]
    %v3166 = vld [vmem:[#allocation7 + $0x6b0] sm:$0xff]
    %v3167 = vld [vmem:[#allocation7 + $0x6b8] sm:$0xff]
    %v3168 = vld [vmem:[#allocation7 + $0x6c0] sm:$0xff]
    %v3169 = vld [vmem:[#allocation7 + $0x6c8] sm:$0xff]
    %v3170 = vld [vmem:[#allocation7 + $0x6d0] sm:$0xff]
    %v3171 = vld [vmem:[#allocation7 + $0x6d8] sm:$0xff]
    %v3172 = vld [vmem:[#allocation7 + $0x6e0] sm:$0xff]
    %v3173 = vld [vmem:[#allocation7 + $0x6e8] sm:$0xff]
    %v3174 = vld [vmem:[#allocation7 + $0x6f0] sm:$0xff]
    %v3175 = vld [vmem:[#allocation7 + $0x6f8] sm:$0xff]
    %v3176 = vld [vmem:[#allocation7 + $0x700] sm:$0xff]
    %v3177 = vld [vmem:[#allocation7 + $0x708] sm:$0xff]
    %v3178 = vld [vmem:[#allocation7 + $0x710] sm:$0xff]
    %v3179 = vld [vmem:[#allocation7 + $0x718] sm:$0xff]
    %v3180 = vld [vmem:[#allocation7 + $0x720] sm:$0xff]
    %v3181 = vld [vmem:[#allocation7 + $0x728] sm:$0xff]
    %v3182 = vld [vmem:[#allocation7 + $0x730] sm:$0xff]
    %v3183 = vld [vmem:[#allocation7 + $0x738] sm:$0xff]
    %v3184 = vld [vmem:[#allocation7 + $0x740] sm:$0xff]
    %v3185 = vld [vmem:[#allocation7 + $0x748] sm:$0xff]
    %v3186 = vld [vmem:[#allocation7 + $0x750] sm:$0xff]
    %v3187 = vld [vmem:[#allocation7 + $0x758] sm:$0xff]
    %v3188 = vld [vmem:[#allocation7 + $0x760] sm:$0xff]
    %v3189 = vld [vmem:[#allocation7 + $0x768] sm:$0xff]
    %v3190 = vld [vmem:[#allocation7 + $0x770] sm:$0xff]
    %v3191 = vld [vmem:[#allocation7 + $0x778] sm:$0xff]
    %v3192 = vld [vmem:[#allocation7 + $0x780] sm:$0xff]
    %v3193 = vld [vmem:[#allocation7 + $0x788] sm:$0xff]
    %v3194 = vld [vmem:[#allocation7 + $0x790] sm:$0xff]
    %v3195 = vld [vmem:[#allocation7 + $0x798] sm:$0xff]
    %v3196 = vld [vmem:[#allocation7 + $0x7a0] sm:$0xff]
    %v3197 = vld [vmem:[#allocation7 + $0x7a8] sm:$0xff]
    %v3198 = vld [vmem:[#allocation7 + $0x7b0] sm:$0xff]
    %v3199 = vld [vmem:[#allocation7 + $0x7b8] sm:$0xff]
    %v3200 = vld [vmem:[#allocation7 + $0x7c0] sm:$0xff]
    %v3201 = vld [vmem:[#allocation7 + $0x7c8] sm:$0xff]
    %v3202 = vld [vmem:[#allocation7 + $0x7d0] sm:$0xff]
    %v3203 = vld [vmem:[#allocation7 + $0x7d8] sm:$0xff]
    %v3204 = vld [vmem:[#allocation7 + $0x7e0] sm:$0xff]
    %v3205 = vld [vmem:[#allocation7 + $0x7e8] sm:$0xff]
    %v3206 = vld [vmem:[#allocation7 + $0x7f0] sm:$0xff]
    %v3207 = vld [vmem:[#allocation7 + $0x7f8] sm:$0xff]
    %v3208 = vld [vmem:[%s12] sm:$0xff]
    %v3210 = vlaneseq
    %v3211 = vshrl.u32 %v3210, 7
    %v3212 = vsub.s32 0, %v3211
    %v3213 = vrot.slane %v3208, %v3212
    %v3214 = vlaneseq
    %v3215 = vshrl.u32 %v3214, 7
    %v3216 = vsub.s32 1, %v3215
    %v3217 = vrot.slane %v3208, %v3216
    %v3218 = vlaneseq
    %v3219 = vshrl.u32 %v3218, 7
    %v3220 = vsub.s32 2, %v3219
    %v3221 = vrot.slane %v3208, %v3220
    %v3222 = vlaneseq
    %v3223 = vshrl.u32 %v3222, 7
    %v3224 = vsub.s32 3, %v3223
    %v3225 = vrot.slane %v3208, %v3224
    %v3226 = vlaneseq
    %v3227 = vshrl.u32 %v3226, 7
    %v3228 = vsub.s32 4, %v3227
    %v3229 = vrot.slane %v3208, %v3228
    %v3230 = vlaneseq
    %v3231 = vshrl.u32 %v3230, 7
    %v3232 = vsub.s32 5, %v3231
    %v3233 = vrot.slane %v3208, %v3232
    %v3234 = vlaneseq
    %v3235 = vshrl.u32 %v3234, 7
    %v3236 = vsub.s32 6, %v3235
    %v3237 = vrot.slane %v3208, %v3236
    %v3238 = vlaneseq
    %v3239 = vshrl.u32 %v3238, 7
    %v3240 = vsub.s32 7, %v3239
    %v3241 = vrot.slane %v3208, %v3240
    %v3506 = vunpack.c.l.b16 %v2952
    %v3507 = vunpack.c.h.b16 %v2952
    %v3508 = vunpack.c.l.b16 %v2953
    %v3509 = vunpack.c.h.b16 %v2953
    %v3510 = vunpack.c.l.b16 %v2954
    %v3511 = vunpack.c.h.b16 %v2954
    %v3512 = vunpack.c.l.b16 %v2955
    %v3513 = vunpack.c.h.b16 %v2955
    %v3514 = vunpack.c.l.b16 %v2956
    %v3515 = vunpack.c.h.b16 %v2956
    %v3516 = vunpack.c.l.b16 %v2957
    %v3517 = vunpack.c.h.b16 %v2957
    %v3518 = vunpack.c.l.b16 %v2958
    %v3519 = vunpack.c.h.b16 %v2958
    %v3520 = vunpack.c.l.b16 %v2959
    %v3521 = vunpack.c.h.b16 %v2959
    %v3522 = vunpack.c.l.b16 %v2960
    %v3523 = vunpack.c.h.b16 %v2960
    %v3524 = vunpack.c.l.b16 %v2961
    %v3525 = vunpack.c.h.b16 %v2961
    %v3526 = vunpack.c.l.b16 %v2962
    %v3527 = vunpack.c.h.b16 %v2962
    %v3528 = vunpack.c.l.b16 %v2963
    %v3529 = vunpack.c.h.b16 %v2963
    %v3530 = vunpack.c.l.b16 %v2964
    %v3531 = vunpack.c.h.b16 %v2964
    %v3532 = vunpack.c.l.b16 %v2965
    %v3533 = vunpack.c.h.b16 %v2965
    %v3534 = vunpack.c.l.b16 %v2966
    %v3535 = vunpack.c.h.b16 %v2966
    %v3536 = vunpack.c.l.b16 %v2967
    %v3537 = vunpack.c.h.b16 %v2967
    %v3538 = vunpack.c.l.b16 %v2968
    %v3539 = vunpack.c.h.b16 %v2968
    %v3540 = vunpack.c.l.b16 %v2969
    %v3541 = vunpack.c.h.b16 %v2969
    %v3542 = vunpack.c.l.b16 %v2970
    %v3543 = vunpack.c.h.b16 %v2970
    %v3544 = vunpack.c.l.b16 %v2971
    %v3545 = vunpack.c.h.b16 %v2971
    %v3546 = vunpack.c.l.b16 %v2972
    %v3547 = vunpack.c.h.b16 %v2972
    %v3548 = vunpack.c.l.b16 %v2973
    %v3549 = vunpack.c.h.b16 %v2973
    %v3550 = vunpack.c.l.b16 %v2974
    %v3551 = vunpack.c.h.b16 %v2974
    %v3552 = vunpack.c.l.b16 %v2975
    %v3553 = vunpack.c.h.b16 %v2975
    %v3554 = vunpack.c.l.b16 %v2976
    %v3555 = vunpack.c.h.b16 %v2976
    %v3556 = vunpack.c.l.b16 %v2977
    %v3557 = vunpack.c.h.b16 %v2977
    %v3558 = vunpack.c.l.b16 %v2978
    %v3559 = vunpack.c.h.b16 %v2978
    %v3560 = vunpack.c.l.b16 %v2979
    %v3561 = vunpack.c.h.b16 %v2979
    %v3562 = vunpack.c.l.b16 %v2980
    %v3563 = vunpack.c.h.b16 %v2980
    %v3564 = vunpack.c.l.b16 %v2981
    %v3565 = vunpack.c.h.b16 %v2981
    %v3566 = vunpack.c.l.b16 %v2982
    %v3567 = vunpack.c.h.b16 %v2982
    %v3568 = vunpack.c.l.b16 %v2983
    %v3569 = vunpack.c.h.b16 %v2983
    %v3570 = vunpack.c.l.b16 %v2984
    %v3571 = vunpack.c.h.b16 %v2984
    %v3572 = vunpack.c.l.b16 %v2985
    %v3573 = vunpack.c.h.b16 %v2985
    %v3574 = vunpack.c.l.b16 %v2986
    %v3575 = vunpack.c.h.b16 %v2986
    %v3576 = vunpack.c.l.b16 %v2987
    %v3577 = vunpack.c.h.b16 %v2987
    %v3578 = vunpack.c.l.b16 %v2988
    %v3579 = vunpack.c.h.b16 %v2988
    %v3580 = vunpack.c.l.b16 %v2989
    %v3581 = vunpack.c.h.b16 %v2989
    %v3582 = vunpack.c.l.b16 %v2990
    %v3583 = vunpack.c.h.b16 %v2990
    %v3584 = vunpack.c.l.b16 %v2991
    %v3585 = vunpack.c.h.b16 %v2991
    %v3586 = vunpack.c.l.b16 %v2992
    %v3587 = vunpack.c.h.b16 %v2992
    %v3588 = vunpack.c.l.b16 %v2993
    %v3589 = vunpack.c.h.b16 %v2993
    %v3590 = vunpack.c.l.b16 %v2994
    %v3591 = vunpack.c.h.b16 %v2994
    %v3592 = vunpack.c.l.b16 %v2995
    %v3593 = vunpack.c.h.b16 %v2995
    %v3594 = vunpack.c.l.b16 %v2996
    %v3595 = vunpack.c.h.b16 %v2996
    %v3596 = vunpack.c.l.b16 %v2997
    %v3597 = vunpack.c.h.b16 %v2997
    %v3598 = vunpack.c.l.b16 %v2998
    %v3599 = vunpack.c.h.b16 %v2998
    %v3600 = vunpack.c.l.b16 %v2999
    %v3601 = vunpack.c.h.b16 %v2999
    %v3602 = vunpack.c.l.b16 %v3000
    %v3603 = vunpack.c.h.b16 %v3000
    %v3604 = vunpack.c.l.b16 %v3001
    %v3605 = vunpack.c.h.b16 %v3001
    %v3606 = vunpack.c.l.b16 %v3002
    %v3607 = vunpack.c.h.b16 %v3002
    %v3608 = vunpack.c.l.b16 %v3003
    %v3609 = vunpack.c.h.b16 %v3003
    %v3610 = vunpack.c.l.b16 %v3004
    %v3611 = vunpack.c.h.b16 %v3004
    %v3612 = vunpack.c.l.b16 %v3005
    %v3613 = vunpack.c.h.b16 %v3005
    %v3614 = vunpack.c.l.b16 %v3006
    %v3615 = vunpack.c.h.b16 %v3006
    %v3616 = vunpack.c.l.b16 %v3007
    %v3617 = vunpack.c.h.b16 %v3007
    %v3618 = vunpack.c.l.b16 %v3008
    %v3619 = vunpack.c.h.b16 %v3008
    %v3620 = vunpack.c.l.b16 %v3009
    %v3621 = vunpack.c.h.b16 %v3009
    %v3622 = vunpack.c.l.b16 %v3010
    %v3623 = vunpack.c.h.b16 %v3010
    %v3624 = vunpack.c.l.b16 %v3011
    %v3625 = vunpack.c.h.b16 %v3011
    %v3626 = vunpack.c.l.b16 %v3012
    %v3627 = vunpack.c.h.b16 %v3012
    %v3628 = vunpack.c.l.b16 %v3013
    %v3629 = vunpack.c.h.b16 %v3013
    %v3630 = vunpack.c.l.b16 %v3014
    %v3631 = vunpack.c.h.b16 %v3014
    %v3632 = vunpack.c.l.b16 %v3015
    %v3633 = vunpack.c.h.b16 %v3015
    %v3634 = vunpack.c.l.b16 %v3016
    %v3635 = vunpack.c.h.b16 %v3016
    %v3636 = vunpack.c.l.b16 %v3017
    %v3637 = vunpack.c.h.b16 %v3017
    %v3638 = vunpack.c.l.b16 %v3018
    %v3639 = vunpack.c.h.b16 %v3018
    %v3640 = vunpack.c.l.b16 %v3019
    %v3641 = vunpack.c.h.b16 %v3019
    %v3642 = vunpack.c.l.b16 %v3020
    %v3643 = vunpack.c.h.b16 %v3020
    %v3644 = vunpack.c.l.b16 %v3021
    %v3645 = vunpack.c.h.b16 %v3021
    %v3646 = vunpack.c.l.b16 %v3022
    %v3647 = vunpack.c.h.b16 %v3022
    %v3648 = vunpack.c.l.b16 %v3023
    %v3649 = vunpack.c.h.b16 %v3023
    %v3650 = vunpack.c.l.b16 %v3024
    %v3651 = vunpack.c.h.b16 %v3024
    %v3652 = vunpack.c.l.b16 %v3025
    %v3653 = vunpack.c.h.b16 %v3025
    %v3654 = vunpack.c.l.b16 %v3026
    %v3655 = vunpack.c.h.b16 %v3026
    %v3656 = vunpack.c.l.b16 %v3027
    %v3657 = vunpack.c.h.b16 %v3027
    %v3658 = vunpack.c.l.b16 %v3028
    %v3659 = vunpack.c.h.b16 %v3028
    %v3660 = vunpack.c.l.b16 %v3029
    %v3661 = vunpack.c.h.b16 %v3029
    %v3662 = vunpack.c.l.b16 %v3030
    %v3663 = vunpack.c.h.b16 %v3030
    %v3664 = vunpack.c.l.b16 %v3031
    %v3665 = vunpack.c.h.b16 %v3031
    %v3666 = vunpack.c.l.b16 %v3032
    %v3667 = vunpack.c.h.b16 %v3032
    %v3668 = vunpack.c.l.b16 %v3033
    %v3669 = vunpack.c.h.b16 %v3033
    %v3670 = vunpack.c.l.b16 %v3034
    %v3671 = vunpack.c.h.b16 %v3034
    %v3672 = vunpack.c.l.b16 %v3035
    %v3673 = vunpack.c.h.b16 %v3035
    %v3674 = vunpack.c.l.b16 %v3036
    %v3675 = vunpack.c.h.b16 %v3036
    %v3676 = vunpack.c.l.b16 %v3037
    %v3677 = vunpack.c.h.b16 %v3037
    %v3678 = vunpack.c.l.b16 %v3038
    %v3679 = vunpack.c.h.b16 %v3038
    %v3680 = vunpack.c.l.b16 %v3039
    %v3681 = vunpack.c.h.b16 %v3039
    %v3682 = vunpack.c.l.b16 %v3040
    %v3683 = vunpack.c.h.b16 %v3040
    %v3684 = vunpack.c.l.b16 %v3041
    %v3685 = vunpack.c.h.b16 %v3041
    %v3686 = vunpack.c.l.b16 %v3042
    %v3687 = vunpack.c.h.b16 %v3042
    %v3688 = vunpack.c.l.b16 %v3043
    %v3689 = vunpack.c.h.b16 %v3043
    %v3690 = vunpack.c.l.b16 %v3044
    %v3691 = vunpack.c.h.b16 %v3044
    %v3692 = vunpack.c.l.b16 %v3045
    %v3693 = vunpack.c.h.b16 %v3045
    %v3694 = vunpack.c.l.b16 %v3046
    %v3695 = vunpack.c.h.b16 %v3046
    %v3696 = vunpack.c.l.b16 %v3047
    %v3697 = vunpack.c.h.b16 %v3047
    %v3698 = vunpack.c.l.b16 %v3048
    %v3699 = vunpack.c.h.b16 %v3048
    %v3700 = vunpack.c.l.b16 %v3049
    %v3701 = vunpack.c.h.b16 %v3049
    %v3702 = vunpack.c.l.b16 %v3050
    %v3703 = vunpack.c.h.b16 %v3050
    %v3704 = vunpack.c.l.b16 %v3051
    %v3705 = vunpack.c.h.b16 %v3051
    %v3706 = vunpack.c.l.b16 %v3052
    %v3707 = vunpack.c.h.b16 %v3052
    %v3708 = vunpack.c.l.b16 %v3053
    %v3709 = vunpack.c.h.b16 %v3053
    %v3710 = vunpack.c.l.b16 %v3054
    %v3711 = vunpack.c.h.b16 %v3054
    %v3712 = vunpack.c.l.b16 %v3055
    %v3713 = vunpack.c.h.b16 %v3055
    %v3714 = vunpack.c.l.b16 %v3056
    %v3715 = vunpack.c.h.b16 %v3056
    %v3716 = vunpack.c.l.b16 %v3057
    %v3717 = vunpack.c.h.b16 %v3057
    %v3718 = vunpack.c.l.b16 %v3058
    %v3719 = vunpack.c.h.b16 %v3058
    %v3720 = vunpack.c.l.b16 %v3059
    %v3721 = vunpack.c.h.b16 %v3059
    %v3722 = vunpack.c.l.b16 %v3060
    %v3723 = vunpack.c.h.b16 %v3060
    %v3724 = vunpack.c.l.b16 %v3061
    %v3725 = vunpack.c.h.b16 %v3061
    %v3726 = vunpack.c.l.b16 %v3062
    %v3727 = vunpack.c.h.b16 %v3062
    %v3728 = vunpack.c.l.b16 %v3063
    %v3729 = vunpack.c.h.b16 %v3063
    %v3730 = vunpack.c.l.b16 %v3064
    %v3731 = vunpack.c.h.b16 %v3064
    %v3732 = vunpack.c.l.b16 %v3065
    %v3733 = vunpack.c.h.b16 %v3065
    %v3734 = vunpack.c.l.b16 %v3066
    %v3735 = vunpack.c.h.b16 %v3066
    %v3736 = vunpack.c.l.b16 %v3067
    %v3737 = vunpack.c.h.b16 %v3067
    %v3738 = vunpack.c.l.b16 %v3068
    %v3739 = vunpack.c.h.b16 %v3068
    %v3740 = vunpack.c.l.b16 %v3069
    %v3741 = vunpack.c.h.b16 %v3069
    %v3742 = vunpack.c.l.b16 %v3070
    %v3743 = vunpack.c.h.b16 %v3070
    %v3744 = vunpack.c.l.b16 %v3071
    %v3745 = vunpack.c.h.b16 %v3071
    %v3746 = vunpack.c.l.b16 %v3072
    %v3747 = vunpack.c.h.b16 %v3072
    %v3748 = vunpack.c.l.b16 %v3073
    %v3749 = vunpack.c.h.b16 %v3073
    %v3750 = vunpack.c.l.b16 %v3074
    %v3751 = vunpack.c.h.b16 %v3074
    %v3752 = vunpack.c.l.b16 %v3075
    %v3753 = vunpack.c.h.b16 %v3075
    %v3754 = vunpack.c.l.b16 %v3076
    %v3755 = vunpack.c.h.b16 %v3076
    %v3756 = vunpack.c.l.b16 %v3077
    %v3757 = vunpack.c.h.b16 %v3077
    %v3758 = vunpack.c.l.b16 %v3078
    %v3759 = vunpack.c.h.b16 %v3078
    %v3760 = vunpack.c.l.b16 %v3079
    %v3761 = vunpack.c.h.b16 %v3079
    %v3762 = vunpack.c.l.b16 %v3080
    %v3763 = vunpack.c.h.b16 %v3080
    %v3764 = vunpack.c.l.b16 %v3081
    %v3765 = vunpack.c.h.b16 %v3081
    %v3766 = vunpack.c.l.b16 %v3082
    %v3767 = vunpack.c.h.b16 %v3082
    %v3768 = vunpack.c.l.b16 %v3083
    %v3769 = vunpack.c.h.b16 %v3083
    %v3770 = vunpack.c.l.b16 %v3084
    %v3771 = vunpack.c.h.b16 %v3084
    %v3772 = vunpack.c.l.b16 %v3085
    %v3773 = vunpack.c.h.b16 %v3085
    %v3774 = vunpack.c.l.b16 %v3086
    %v3775 = vunpack.c.h.b16 %v3086
    %v3776 = vunpack.c.l.b16 %v3087
    %v3777 = vunpack.c.h.b16 %v3087
    %v3778 = vunpack.c.l.b16 %v3088
    %v3779 = vunpack.c.h.b16 %v3088
    %v3780 = vunpack.c.l.b16 %v3089
    %v3781 = vunpack.c.h.b16 %v3089
    %v3782 = vunpack.c.l.b16 %v3090
    %v3783 = vunpack.c.h.b16 %v3090
    %v3784 = vunpack.c.l.b16 %v3091
    %v3785 = vunpack.c.h.b16 %v3091
    %v3786 = vunpack.c.l.b16 %v3092
    %v3787 = vunpack.c.h.b16 %v3092
    %v3788 = vunpack.c.l.b16 %v3093
    %v3789 = vunpack.c.h.b16 %v3093
    %v3790 = vunpack.c.l.b16 %v3094
    %v3791 = vunpack.c.h.b16 %v3094
    %v3792 = vunpack.c.l.b16 %v3095
    %v3793 = vunpack.c.h.b16 %v3095
    %v3794 = vunpack.c.l.b16 %v3096
    %v3795 = vunpack.c.h.b16 %v3096
    %v3796 = vunpack.c.l.b16 %v3097
    %v3797 = vunpack.c.h.b16 %v3097
    %v3798 = vunpack.c.l.b16 %v3098
    %v3799 = vunpack.c.h.b16 %v3098
    %v3800 = vunpack.c.l.b16 %v3099
    %v3801 = vunpack.c.h.b16 %v3099
    %v3802 = vunpack.c.l.b16 %v3100
    %v3803 = vunpack.c.h.b16 %v3100
    %v3804 = vunpack.c.l.b16 %v3101
    %v3805 = vunpack.c.h.b16 %v3101
    %v3806 = vunpack.c.l.b16 %v3102
    %v3807 = vunpack.c.h.b16 %v3102
    %v3808 = vunpack.c.l.b16 %v3103
    %v3809 = vunpack.c.h.b16 %v3103
    %v3810 = vunpack.c.l.b16 %v3104
    %v3811 = vunpack.c.h.b16 %v3104
    %v3812 = vunpack.c.l.b16 %v3105
    %v3813 = vunpack.c.h.b16 %v3105
    %v3814 = vunpack.c.l.b16 %v3106
    %v3815 = vunpack.c.h.b16 %v3106
    %v3816 = vunpack.c.l.b16 %v3107
    %v3817 = vunpack.c.h.b16 %v3107
    %v3818 = vunpack.c.l.b16 %v3108
    %v3819 = vunpack.c.h.b16 %v3108
    %v3820 = vunpack.c.l.b16 %v3109
    %v3821 = vunpack.c.h.b16 %v3109
    %v3822 = vunpack.c.l.b16 %v3110
    %v3823 = vunpack.c.h.b16 %v3110
    %v3824 = vunpack.c.l.b16 %v3111
    %v3825 = vunpack.c.h.b16 %v3111
    %v3826 = vunpack.c.l.b16 %v3112
    %v3827 = vunpack.c.h.b16 %v3112
    %v3828 = vunpack.c.l.b16 %v3113
    %v3829 = vunpack.c.h.b16 %v3113
    %v3830 = vunpack.c.l.b16 %v3114
    %v3831 = vunpack.c.h.b16 %v3114
    %v3832 = vunpack.c.l.b16 %v3115
    %v3833 = vunpack.c.h.b16 %v3115
    %v3834 = vunpack.c.l.b16 %v3116
    %v3835 = vunpack.c.h.b16 %v3116
    %v3836 = vunpack.c.l.b16 %v3117
    %v3837 = vunpack.c.h.b16 %v3117
    %v3838 = vunpack.c.l.b16 %v3118
    %v3839 = vunpack.c.h.b16 %v3118
    %v3840 = vunpack.c.l.b16 %v3119
    %v3841 = vunpack.c.h.b16 %v3119
    %v3842 = vunpack.c.l.b16 %v3120
    %v3843 = vunpack.c.h.b16 %v3120
    %v3844 = vunpack.c.l.b16 %v3121
    %v3845 = vunpack.c.h.b16 %v3121
    %v3846 = vunpack.c.l.b16 %v3122
    %v3847 = vunpack.c.h.b16 %v3122
    %v3848 = vunpack.c.l.b16 %v3123
    %v3849 = vunpack.c.h.b16 %v3123
    %v3850 = vunpack.c.l.b16 %v3124
    %v3851 = vunpack.c.h.b16 %v3124
    %v3852 = vunpack.c.l.b16 %v3125
    %v3853 = vunpack.c.h.b16 %v3125
    %v3854 = vunpack.c.l.b16 %v3126
    %v3855 = vunpack.c.h.b16 %v3126
    %v3856 = vunpack.c.l.b16 %v3127
    %v3857 = vunpack.c.h.b16 %v3127
    %v3858 = vunpack.c.l.b16 %v3128
    %v3859 = vunpack.c.h.b16 %v3128
    %v3860 = vunpack.c.l.b16 %v3129
    %v3861 = vunpack.c.h.b16 %v3129
    %v3862 = vunpack.c.l.b16 %v3130
    %v3863 = vunpack.c.h.b16 %v3130
    %v3864 = vunpack.c.l.b16 %v3131
    %v3865 = vunpack.c.h.b16 %v3131
    %v3866 = vunpack.c.l.b16 %v3132
    %v3867 = vunpack.c.h.b16 %v3132
    %v3868 = vunpack.c.l.b16 %v3133
    %v3869 = vunpack.c.h.b16 %v3133
    %v3870 = vunpack.c.l.b16 %v3134
    %v3871 = vunpack.c.h.b16 %v3134
    %v3872 = vunpack.c.l.b16 %v3135
    %v3873 = vunpack.c.h.b16 %v3135
    %v3874 = vunpack.c.l.b16 %v3136
    %v3875 = vunpack.c.h.b16 %v3136
    %v3876 = vunpack.c.l.b16 %v3137
    %v3877 = vunpack.c.h.b16 %v3137
    %v3878 = vunpack.c.l.b16 %v3138
    %v3879 = vunpack.c.h.b16 %v3138
    %v3880 = vunpack.c.l.b16 %v3139
    %v3881 = vunpack.c.h.b16 %v3139
    %v3882 = vunpack.c.l.b16 %v3140
    %v3883 = vunpack.c.h.b16 %v3140
    %v3884 = vunpack.c.l.b16 %v3141
    %v3885 = vunpack.c.h.b16 %v3141
    %v3886 = vunpack.c.l.b16 %v3142
    %v3887 = vunpack.c.h.b16 %v3142
    %v3888 = vunpack.c.l.b16 %v3143
    %v3889 = vunpack.c.h.b16 %v3143
    %v3890 = vunpack.c.l.b16 %v3144
    %v3891 = vunpack.c.h.b16 %v3144
    %v3892 = vunpack.c.l.b16 %v3145
    %v3893 = vunpack.c.h.b16 %v3145
    %v3894 = vunpack.c.l.b16 %v3146
    %v3895 = vunpack.c.h.b16 %v3146
    %v3896 = vunpack.c.l.b16 %v3147
    %v3897 = vunpack.c.h.b16 %v3147
    %v3898 = vunpack.c.l.b16 %v3148
    %v3899 = vunpack.c.h.b16 %v3148
    %v3900 = vunpack.c.l.b16 %v3149
    %v3901 = vunpack.c.h.b16 %v3149
    %v3902 = vunpack.c.l.b16 %v3150
    %v3903 = vunpack.c.h.b16 %v3150
    %v3904 = vunpack.c.l.b16 %v3151
    %v3905 = vunpack.c.h.b16 %v3151
    %v3906 = vunpack.c.l.b16 %v3152
    %v3907 = vunpack.c.h.b16 %v3152
    %v3908 = vunpack.c.l.b16 %v3153
    %v3909 = vunpack.c.h.b16 %v3153
    %v3910 = vunpack.c.l.b16 %v3154
    %v3911 = vunpack.c.h.b16 %v3154
    %v3912 = vunpack.c.l.b16 %v3155
    %v3913 = vunpack.c.h.b16 %v3155
    %v3914 = vunpack.c.l.b16 %v3156
    %v3915 = vunpack.c.h.b16 %v3156
    %v3916 = vunpack.c.l.b16 %v3157
    %v3917 = vunpack.c.h.b16 %v3157
    %v3918 = vunpack.c.l.b16 %v3158
    %v3919 = vunpack.c.h.b16 %v3158
    %v3920 = vunpack.c.l.b16 %v3159
    %v3921 = vunpack.c.h.b16 %v3159
    %v3922 = vunpack.c.l.b16 %v3160
    %v3923 = vunpack.c.h.b16 %v3160
    %v3924 = vunpack.c.l.b16 %v3161
    %v3925 = vunpack.c.h.b16 %v3161
    %v3926 = vunpack.c.l.b16 %v3162
    %v3927 = vunpack.c.h.b16 %v3162
    %v3928 = vunpack.c.l.b16 %v3163
    %v3929 = vunpack.c.h.b16 %v3163
    %v3930 = vunpack.c.l.b16 %v3164
    %v3931 = vunpack.c.h.b16 %v3164
    %v3932 = vunpack.c.l.b16 %v3165
    %v3933 = vunpack.c.h.b16 %v3165
    %v3934 = vunpack.c.l.b16 %v3166
    %v3935 = vunpack.c.h.b16 %v3166
    %v3936 = vunpack.c.l.b16 %v3167
    %v3937 = vunpack.c.h.b16 %v3167
    %v3938 = vunpack.c.l.b16 %v3168
    %v3939 = vunpack.c.h.b16 %v3168
    %v3940 = vunpack.c.l.b16 %v3169
    %v3941 = vunpack.c.h.b16 %v3169
    %v3942 = vunpack.c.l.b16 %v3170
    %v3943 = vunpack.c.h.b16 %v3170
    %v3944 = vunpack.c.l.b16 %v3171
    %v3945 = vunpack.c.h.b16 %v3171
    %v3946 = vunpack.c.l.b16 %v3172
    %v3947 = vunpack.c.h.b16 %v3172
    %v3948 = vunpack.c.l.b16 %v3173
    %v3949 = vunpack.c.h.b16 %v3173
    %v3950 = vunpack.c.l.b16 %v3174
    %v3951 = vunpack.c.h.b16 %v3174
    %v3952 = vunpack.c.l.b16 %v3175
    %v3953 = vunpack.c.h.b16 %v3175
    %v3954 = vunpack.c.l.b16 %v3176
    %v3955 = vunpack.c.h.b16 %v3176
    %v3956 = vunpack.c.l.b16 %v3177
    %v3957 = vunpack.c.h.b16 %v3177
    %v3958 = vunpack.c.l.b16 %v3178
    %v3959 = vunpack.c.h.b16 %v3178
    %v3960 = vunpack.c.l.b16 %v3179
    %v3961 = vunpack.c.h.b16 %v3179
    %v3962 = vunpack.c.l.b16 %v3180
    %v3963 = vunpack.c.h.b16 %v3180
    %v3964 = vunpack.c.l.b16 %v3181
    %v3965 = vunpack.c.h.b16 %v3181
    %v3966 = vunpack.c.l.b16 %v3182
    %v3967 = vunpack.c.h.b16 %v3182
    %v3968 = vunpack.c.l.b16 %v3183
    %v3969 = vunpack.c.h.b16 %v3183
    %v3970 = vunpack.c.l.b16 %v3184
    %v3971 = vunpack.c.h.b16 %v3184
    %v3972 = vunpack.c.l.b16 %v3185
    %v3973 = vunpack.c.h.b16 %v3185
    %v3974 = vunpack.c.l.b16 %v3186
    %v3975 = vunpack.c.h.b16 %v3186
    %v3976 = vunpack.c.l.b16 %v3187
    %v3977 = vunpack.c.h.b16 %v3187
    %v3978 = vunpack.c.l.b16 %v3188
    %v3979 = vunpack.c.h.b16 %v3188
    %v3980 = vunpack.c.l.b16 %v3189
    %v3981 = vunpack.c.h.b16 %v3189
    %v3982 = vunpack.c.l.b16 %v3190
    %v3983 = vunpack.c.h.b16 %v3190
    %v3984 = vunpack.c.l.b16 %v3191
    %v3985 = vunpack.c.h.b16 %v3191
    %v3986 = vunpack.c.l.b16 %v3192
    %v3987 = vunpack.c.h.b16 %v3192
    %v3988 = vunpack.c.l.b16 %v3193
    %v3989 = vunpack.c.h.b16 %v3193
    %v3990 = vunpack.c.l.b16 %v3194
    %v3991 = vunpack.c.h.b16 %v3194
    %v3992 = vunpack.c.l.b16 %v3195
    %v3993 = vunpack.c.h.b16 %v3195
    %v3994 = vunpack.c.l.b16 %v3196
    %v3995 = vunpack.c.h.b16 %v3196
    %v3996 = vunpack.c.l.b16 %v3197
    %v3997 = vunpack.c.h.b16 %v3197
    %v3998 = vunpack.c.l.b16 %v3198
    %v3999 = vunpack.c.h.b16 %v3198
    %v4000 = vunpack.c.l.b16 %v3199
    %v4001 = vunpack.c.h.b16 %v3199
    %v4002 = vunpack.c.l.b16 %v3200
    %v4003 = vunpack.c.h.b16 %v3200
    %v4004 = vunpack.c.l.b16 %v3201
    %v4005 = vunpack.c.h.b16 %v3201
    %v4006 = vunpack.c.l.b16 %v3202
    %v4007 = vunpack.c.h.b16 %v3202
    %v4008 = vunpack.c.l.b16 %v3203
    %v4009 = vunpack.c.h.b16 %v3203
    %v4010 = vunpack.c.l.b16 %v3204
    %v4011 = vunpack.c.h.b16 %v3204
    %v4012 = vunpack.c.l.b16 %v3205
    %v4013 = vunpack.c.h.b16 %v3205
    %v4014 = vunpack.c.l.b16 %v3206
    %v4015 = vunpack.c.h.b16 %v3206
    %v4016 = vunpack.c.l.b16 %v3207
    %v4017 = vunpack.c.h.b16 %v3207
    %v4018 = vpack.c.b16 %v3514, %v3506
    %v4019 = vpack.c.b16 %v3515, %v3507
    %v4020 = vpack.c.b16 %v3516, %v3508
    %v4021 = vpack.c.b16 %v3517, %v3509
    %v4022 = vpack.c.b16 %v3518, %v3510
    %v4023 = vpack.c.b16 %v3519, %v3511
    %v4024 = vpack.c.b16 %v3520, %v3512
    %v4025 = vpack.c.b16 %v3521, %v3513
    %v4026 = vpack.c.b16 %v3530, %v3522
    %v4027 = vpack.c.b16 %v3531, %v3523
    %v4028 = vpack.c.b16 %v3532, %v3524
    %v4029 = vpack.c.b16 %v3533, %v3525
    %v4030 = vpack.c.b16 %v3534, %v3526
    %v4031 = vpack.c.b16 %v3535, %v3527
    %v4032 = vpack.c.b16 %v3536, %v3528
    %v4033 = vpack.c.b16 %v3537, %v3529
    %v4034 = vpack.c.b16 %v3546, %v3538
    %v4035 = vpack.c.b16 %v3547, %v3539
    %v4036 = vpack.c.b16 %v3548, %v3540
    %v4037 = vpack.c.b16 %v3549, %v3541
    %v4038 = vpack.c.b16 %v3550, %v3542
    %v4039 = vpack.c.b16 %v3551, %v3543
    %v4040 = vpack.c.b16 %v3552, %v3544
    %v4041 = vpack.c.b16 %v3553, %v3545
    %v4042 = vpack.c.b16 %v3562, %v3554
    %v4043 = vpack.c.b16 %v3563, %v3555
    %v4044 = vpack.c.b16 %v3564, %v3556
    %v4045 = vpack.c.b16 %v3565, %v3557
    %v4046 = vpack.c.b16 %v3566, %v3558
    %v4047 = vpack.c.b16 %v3567, %v3559
    %v4048 = vpack.c.b16 %v3568, %v3560
    %v4049 = vpack.c.b16 %v3569, %v3561
    %v4050 = vpack.c.b16 %v3578, %v3570
    %v4051 = vpack.c.b16 %v3579, %v3571
    %v4052 = vpack.c.b16 %v3580, %v3572
    %v4053 = vpack.c.b16 %v3581, %v3573
    %v4054 = vpack.c.b16 %v3582, %v3574
    %v4055 = vpack.c.b16 %v3583, %v3575
    %v4056 = vpack.c.b16 %v3584, %v3576
    %v4057 = vpack.c.b16 %v3585, %v3577
    %v4058 = vpack.c.b16 %v3594, %v3586
    %v4059 = vpack.c.b16 %v3595, %v3587
    %v4060 = vpack.c.b16 %v3596, %v3588
    %v4061 = vpack.c.b16 %v3597, %v3589
    %v4062 = vpack.c.b16 %v3598, %v3590
    %v4063 = vpack.c.b16 %v3599, %v3591
    %v4064 = vpack.c.b16 %v3600, %v3592
    %v4065 = vpack.c.b16 %v3601, %v3593
    %v4066 = vpack.c.b16 %v3610, %v3602
    %v4067 = vpack.c.b16 %v3611, %v3603
    %v4068 = vpack.c.b16 %v3612, %v3604
    %v4069 = vpack.c.b16 %v3613, %v3605
    %v4070 = vpack.c.b16 %v3614, %v3606
    %v4071 = vpack.c.b16 %v3615, %v3607
    %v4072 = vpack.c.b16 %v3616, %v3608
    %v4073 = vpack.c.b16 %v3617, %v3609
    %v4074 = vpack.c.b16 %v3626, %v3618
    %v4075 = vpack.c.b16 %v3627, %v3619
    %v4076 = vpack.c.b16 %v3628, %v3620
    %v4077 = vpack.c.b16 %v3629, %v3621
    %v4078 = vpack.c.b16 %v3630, %v3622
    %v4079 = vpack.c.b16 %v3631, %v3623
    %v4080 = vpack.c.b16 %v3632, %v3624
    %v4081 = vpack.c.b16 %v3633, %v3625
    %v4082 = vpack.c.b16 %v3642, %v3634
    %v4083 = vpack.c.b16 %v3643, %v3635
    %v4084 = vpack.c.b16 %v3644, %v3636
    %v4085 = vpack.c.b16 %v3645, %v3637
    %v4086 = vpack.c.b16 %v3646, %v3638
    %v4087 = vpack.c.b16 %v3647, %v3639
    %v4088 = vpack.c.b16 %v3648, %v3640
    %v4089 = vpack.c.b16 %v3649, %v3641
    %v4090 = vpack.c.b16 %v3658, %v3650
    %v4091 = vpack.c.b16 %v3659, %v3651
    %v4092 = vpack.c.b16 %v3660, %v3652
    %v4093 = vpack.c.b16 %v3661, %v3653
    %v4094 = vpack.c.b16 %v3662, %v3654
    %v4095 = vpack.c.b16 %v3663, %v3655
    %v4096 = vpack.c.b16 %v3664, %v3656
    %v4097 = vpack.c.b16 %v3665, %v3657
    %v4098 = vpack.c.b16 %v3674, %v3666
    %v4099 = vpack.c.b16 %v3675, %v3667
    %v4100 = vpack.c.b16 %v3676, %v3668
    %v4101 = vpack.c.b16 %v3677, %v3669
    %v4102 = vpack.c.b16 %v3678, %v3670
    %v4103 = vpack.c.b16 %v3679, %v3671
    %v4104 = vpack.c.b16 %v3680, %v3672
    %v4105 = vpack.c.b16 %v3681, %v3673
    %v4106 = vpack.c.b16 %v3690, %v3682
    %v4107 = vpack.c.b16 %v3691, %v3683
    %v4108 = vpack.c.b16 %v3692, %v3684
    %v4109 = vpack.c.b16 %v3693, %v3685
    %v4110 = vpack.c.b16 %v3694, %v3686
    %v4111 = vpack.c.b16 %v3695, %v3687
    %v4112 = vpack.c.b16 %v3696, %v3688
    %v4113 = vpack.c.b16 %v3697, %v3689
    %v4114 = vpack.c.b16 %v3706, %v3698
    %v4115 = vpack.c.b16 %v3707, %v3699
    %v4116 = vpack.c.b16 %v3708, %v3700
    %v4117 = vpack.c.b16 %v3709, %v3701
    %v4118 = vpack.c.b16 %v3710, %v3702
    %v4119 = vpack.c.b16 %v3711, %v3703
    %v4120 = vpack.c.b16 %v3712, %v3704
    %v4121 = vpack.c.b16 %v3713, %v3705
    %v4122 = vpack.c.b16 %v3722, %v3714
    %v4123 = vpack.c.b16 %v3723, %v3715
    %v4124 = vpack.c.b16 %v3724, %v3716
    %v4125 = vpack.c.b16 %v3725, %v3717
    %v4126 = vpack.c.b16 %v3726, %v3718
    %v4127 = vpack.c.b16 %v3727, %v3719
    %v4128 = vpack.c.b16 %v3728, %v3720
    %v4129 = vpack.c.b16 %v3729, %v3721
    %v4130 = vpack.c.b16 %v3738, %v3730
    %v4131 = vpack.c.b16 %v3739, %v3731
    %v4132 = vpack.c.b16 %v3740, %v3732
    %v4133 = vpack.c.b16 %v3741, %v3733
    %v4134 = vpack.c.b16 %v3742, %v3734
    %v4135 = vpack.c.b16 %v3743, %v3735
    %v4136 = vpack.c.b16 %v3744, %v3736
    %v4137 = vpack.c.b16 %v3745, %v3737
    %v4138 = vpack.c.b16 %v3754, %v3746
    %v4139 = vpack.c.b16 %v3755, %v3747
    %v4140 = vpack.c.b16 %v3756, %v3748
    %v4141 = vpack.c.b16 %v3757, %v3749
    %v4142 = vpack.c.b16 %v3758, %v3750
    %v4143 = vpack.c.b16 %v3759, %v3751
    %v4144 = vpack.c.b16 %v3760, %v3752
    %v4145 = vpack.c.b16 %v3761, %v3753
    %v4146 = vpack.c.b16 %v3770, %v3762
    %v4147 = vpack.c.b16 %v3771, %v3763
    %v4148 = vpack.c.b16 %v3772, %v3764
    %v4149 = vpack.c.b16 %v3773, %v3765
    %v4150 = vpack.c.b16 %v3774, %v3766
    %v4151 = vpack.c.b16 %v3775, %v3767
    %v4152 = vpack.c.b16 %v3776, %v3768
    %v4153 = vpack.c.b16 %v3777, %v3769
    %v4154 = vpack.c.b16 %v3786, %v3778
    %v4155 = vpack.c.b16 %v3787, %v3779
    %v4156 = vpack.c.b16 %v3788, %v3780
    %v4157 = vpack.c.b16 %v3789, %v3781
    %v4158 = vpack.c.b16 %v3790, %v3782
    %v4159 = vpack.c.b16 %v3791, %v3783
    %v4160 = vpack.c.b16 %v3792, %v3784
    %v4161 = vpack.c.b16 %v3793, %v3785
    %v4162 = vpack.c.b16 %v3802, %v3794
    %v4163 = vpack.c.b16 %v3803, %v3795
    %v4164 = vpack.c.b16 %v3804, %v3796
    %v4165 = vpack.c.b16 %v3805, %v3797
    %v4166 = vpack.c.b16 %v3806, %v3798
    %v4167 = vpack.c.b16 %v3807, %v3799
    %v4168 = vpack.c.b16 %v3808, %v3800
    %v4169 = vpack.c.b16 %v3809, %v3801
    %v4170 = vpack.c.b16 %v3818, %v3810
    %v4171 = vpack.c.b16 %v3819, %v3811
    %v4172 = vpack.c.b16 %v3820, %v3812
    %v4173 = vpack.c.b16 %v3821, %v3813
    %v4174 = vpack.c.b16 %v3822, %v3814
    %v4175 = vpack.c.b16 %v3823, %v3815
    %v4176 = vpack.c.b16 %v3824, %v3816
    %v4177 = vpack.c.b16 %v3825, %v3817
    %v4178 = vpack.c.b16 %v3834, %v3826
    %v4179 = vpack.c.b16 %v3835, %v3827
    %v4180 = vpack.c.b16 %v3836, %v3828
    %v4181 = vpack.c.b16 %v3837, %v3829
    %v4182 = vpack.c.b16 %v3838, %v3830
    %v4183 = vpack.c.b16 %v3839, %v3831
    %v4184 = vpack.c.b16 %v3840, %v3832
    %v4185 = vpack.c.b16 %v3841, %v3833
    %v4186 = vpack.c.b16 %v3850, %v3842
    %v4187 = vpack.c.b16 %v3851, %v3843
    %v4188 = vpack.c.b16 %v3852, %v3844
    %v4189 = vpack.c.b16 %v3853, %v3845
    %v4190 = vpack.c.b16 %v3854, %v3846
    %v4191 = vpack.c.b16 %v3855, %v3847
    %v4192 = vpack.c.b16 %v3856, %v3848
    %v4193 = vpack.c.b16 %v3857, %v3849
    %v4194 = vpack.c.b16 %v3866, %v3858
    %v4195 = vpack.c.b16 %v3867, %v3859
    %v4196 = vpack.c.b16 %v3868, %v3860
    %v4197 = vpack.c.b16 %v3869, %v3861
    %v4198 = vpack.c.b16 %v3870, %v3862
    %v4199 = vpack.c.b16 %v3871, %v3863
    %v4200 = vpack.c.b16 %v3872, %v3864
    %v4201 = vpack.c.b16 %v3873, %v3865
    %v4202 = vpack.c.b16 %v3882, %v3874
    %v4203 = vpack.c.b16 %v3883, %v3875
    %v4204 = vpack.c.b16 %v3884, %v3876
    %v4205 = vpack.c.b16 %v3885, %v3877
    %v4206 = vpack.c.b16 %v3886, %v3878
    %v4207 = vpack.c.b16 %v3887, %v3879
    %v4208 = vpack.c.b16 %v3888, %v3880
    %v4209 = vpack.c.b16 %v3889, %v3881
    %v4210 = vpack.c.b16 %v3898, %v3890
    %v4211 = vpack.c.b16 %v3899, %v3891
    %v4212 = vpack.c.b16 %v3900, %v3892
    %v4213 = vpack.c.b16 %v3901, %v3893
    %v4214 = vpack.c.b16 %v3902, %v3894
    %v4215 = vpack.c.b16 %v3903, %v3895
    %v4216 = vpack.c.b16 %v3904, %v3896
    %v4217 = vpack.c.b16 %v3905, %v3897
    %v4218 = vpack.c.b16 %v3914, %v3906
    %v4219 = vpack.c.b16 %v3915, %v3907
    %v4220 = vpack.c.b16 %v3916, %v3908
    %v4221 = vpack.c.b16 %v3917, %v3909
    %v4222 = vpack.c.b16 %v3918, %v3910
    %v4223 = vpack.c.b16 %v3919, %v3911
    %v4224 = vpack.c.b16 %v3920, %v3912
    %v4225 = vpack.c.b16 %v3921, %v3913
    %v4226 = vpack.c.b16 %v3930, %v3922
    %v4227 = vpack.c.b16 %v3931, %v3923
    %v4228 = vpack.c.b16 %v3932, %v3924
    %v4229 = vpack.c.b16 %v3933, %v3925
    %v4230 = vpack.c.b16 %v3934, %v3926
    %v4231 = vpack.c.b16 %v3935, %v3927
    %v4232 = vpack.c.b16 %v3936, %v3928
    %v4233 = vpack.c.b16 %v3937, %v3929
    %v4234 = vpack.c.b16 %v3946, %v3938
    %v4235 = vpack.c.b16 %v3947, %v3939
    %v4236 = vpack.c.b16 %v3948, %v3940
    %v4237 = vpack.c.b16 %v3949, %v3941
    %v4238 = vpack.c.b16 %v3950, %v3942
    %v4239 = vpack.c.b16 %v3951, %v3943
    %v4240 = vpack.c.b16 %v3952, %v3944
    %v4241 = vpack.c.b16 %v3953, %v3945
    %v4242 = vpack.c.b16 %v3962, %v3954
    %v4243 = vpack.c.b16 %v3963, %v3955
    %v4244 = vpack.c.b16 %v3964, %v3956
    %v4245 = vpack.c.b16 %v3965, %v3957
    %v4246 = vpack.c.b16 %v3966, %v3958
    %v4247 = vpack.c.b16 %v3967, %v3959
    %v4248 = vpack.c.b16 %v3968, %v3960
    %v4249 = vpack.c.b16 %v3969, %v3961
    %v4250 = vpack.c.b16 %v3978, %v3970
    %v4251 = vpack.c.b16 %v3979, %v3971
    %v4252 = vpack.c.b16 %v3980, %v3972
    %v4253 = vpack.c.b16 %v3981, %v3973
    %v4254 = vpack.c.b16 %v3982, %v3974
    %v4255 = vpack.c.b16 %v3983, %v3975
    %v4256 = vpack.c.b16 %v3984, %v3976
    %v4257 = vpack.c.b16 %v3985, %v3977
    %v4258 = vpack.c.b16 %v3994, %v3986
    %v4259 = vpack.c.b16 %v3995, %v3987
    %v4260 = vpack.c.b16 %v3996, %v3988
    %v4261 = vpack.c.b16 %v3997, %v3989
    %v4262 = vpack.c.b16 %v3998, %v3990
    %v4263 = vpack.c.b16 %v3999, %v3991
    %v4264 = vpack.c.b16 %v4000, %v3992
    %v4265 = vpack.c.b16 %v4001, %v3993
    %v4266 = vpack.c.b16 %v4010, %v4002
    %v4267 = vpack.c.b16 %v4011, %v4003
    %v4268 = vpack.c.b16 %v4012, %v4004
    %v4269 = vpack.c.b16 %v4013, %v4005
    %v4270 = vpack.c.b16 %v4014, %v4006
    %v4271 = vpack.c.b16 %v4015, %v4007
    %v4272 = vpack.c.b16 %v4016, %v4008
    %v4273 = vpack.c.b16 %v4017, %v4009
    %4530 = vmatprep.subr.bf16.mxu0 %v4019
    %4531 = vmatpush1.bf16.msra.mxu0 %v4018
    %4532 = vmatprep.subr.bf16.mxu0 %v4027
    %4533 = vmatpush1.bf16.msra.mxu0 %v4026
    %4534 = vmatprep.subr.bf16.mxu0 %v4035
    %4535 = vmatpush1.bf16.msra.mxu0 %v4034
    %4536 = vmatprep.subr.bf16.mxu0 %v4043
    %4537 = vmatpush1.bf16.msra.mxu0 %v4042
    %4538 = vmatprep.subr.bf16.mxu0 %v4051
    %4539 = vmatpush1.bf16.msra.mxu0 %v4050
    %4540 = vmatprep.subr.bf16.mxu0 %v4059
    %4541 = vmatpush1.bf16.msra.mxu0 %v4058
    %4542 = vmatprep.subr.bf16.mxu0 %v4067
    %4543 = vmatpush1.bf16.msra.mxu0 %v4066
    %4544 = vmatprep.subr.bf16.mxu0 %v4075
    %4545 = vmatpush1.bf16.msra.mxu0 %v4074
    %4546 = vmatprep.subr.bf16.mxu0 %v4083
    %4547 = vmatpush1.bf16.msra.mxu0 %v4082
    %4548 = vmatprep.subr.bf16.mxu0 %v4091
    %4549 = vmatpush1.bf16.msra.mxu0 %v4090
    %4550 = vmatprep.subr.bf16.mxu0 %v4099
    %4551 = vmatpush1.bf16.msra.mxu0 %v4098
    %4552 = vmatprep.subr.bf16.mxu0 %v4107
    %4553 = vmatpush1.bf16.msra.mxu0 %v4106
    %4554 = vmatprep.subr.bf16.mxu0 %v4115
    %4555 = vmatpush1.bf16.msra.mxu0 %v4114
    %4556 = vmatprep.subr.bf16.mxu0 %v4123
    %4557 = vmatpush1.bf16.msra.mxu0 %v4122
    %4558 = vmatprep.subr.bf16.mxu0 %v4131
    %4559 = vmatpush1.bf16.msra.mxu0 %v4130
    %4560 = vmatprep.subr.bf16.mxu0 %v4139
    %4561 = vmatpush1.bf16.msra.mxu0 %v4138
    %4562 = vmatprep.mubr.bf16.mxu0 %v2949
    %4563 = vmatmul.mubr.bf16.gmra.mrb[0].mxu0 %v2948
    %v4564 = vpop.f32.mrb[0].mxu0
    %v4565 = vadd.f32 %v3213, %v4564
    %v4566 = vpop.f32.mrb[0].mxu0
    %v4567 = vadd.f32 %v3217, %v4566
    %v4568 = vpop.f32.mrb[0].mxu0
    %v4569 = vadd.f32 %v3213, %v4568
    %v4570 = vpop.f32.mrb[0].mxu0
    %v4571 = vadd.f32 %v3217, %v4570
    %4572 = vdwg.mxu0
    %4573 = vmatprep.subr.bf16.mxu0 %v4147
    %4574 = vmatpush1.bf16.msra.mxu0 %v4146
    %4575 = vmatprep.subr.bf16.mxu0 %v4155
    %4576 = vmatpush1.bf16.msra.mxu0 %v4154
    %4577 = vmatprep.subr.bf16.mxu0 %v4163
    %4578 = vmatpush1.bf16.msra.mxu0 %v4162
    %4579 = vmatprep.subr.bf16.mxu0 %v4171
    %4580 = vmatpush1.bf16.msra.mxu0 %v4170
    %4581 = vmatprep.subr.bf16.mxu0 %v4179
    %4582 = vmatpush1.bf16.msra.mxu0 %v4178
    %4583 = vmatprep.subr.bf16.mxu0 %v4187
    %4584 = vmatpush1.bf16.msra.mxu0 %v4186
    %4585 = vmatprep.subr.bf16.mxu0 %v4195
    %4586 = vmatpush1.bf16.msra.mxu0 %v4194
    %4587 = vmatprep.subr.bf16.mxu0 %v4203
    %4588 = vmatpush1.bf16.msra.mxu0 %v4202
    %4589 = vmatprep.subr.bf16.mxu0 %v4211
    %4590 = vmatpush1.bf16.msra.mxu0 %v4210
    %4591 = vmatprep.subr.bf16.mxu0 %v4219
    %4592 = vmatpush1.bf16.msra.mxu0 %v4218
    %4593 = vmatprep.subr.bf16.mxu0 %v4227
    %4594 = vmatpush1.bf16.msra.mxu0 %v4226
    %4595 = vmatprep.subr.bf16.mxu0 %v4235
    %4596 = vmatpush1.bf16.msra.mxu0 %v4234
    %4597 = vmatprep.subr.bf16.mxu0 %v4243
    %4598 = vmatpush1.bf16.msra.mxu0 %v4242
    %4599 = vmatprep.subr.bf16.mxu0 %v4251
    %4600 = vmatpush1.bf16.msra.mxu0 %v4250
    %4601 = vmatprep.subr.bf16.mxu0 %v4259
    %4602 = vmatpush1.bf16.msra.mxu0 %v4258
    %4603 = vmatprep.subr.bf16.mxu0 %v4267
    %4604 = vmatpush1.bf16.msra.mxu0 %v4266
    %4605 = vmatprep.mubr.bf16.mxu0 %v2951
    %4606 = vmatmul.mubr.bf16.gmra.mrb[0].mxu0 %v2950
    %v4607 = vpop.f32.mrb[0].mxu0
    %v4608 = vadd.f32 %v4565, %v4607
    %v4609 = vpop.f32.mrb[0].mxu0
    %v4610 = vadd.f32 %v4567, %v4609
    %v4611 = vpop.f32.mrb[0].mxu0
    %v4612 = vadd.f32 %v4569, %v4611
    %v4613 = vpop.f32.mrb[0].mxu0
    %v4614 = vadd.f32 %v4571, %v4613
    %4615 = vdwg.mxu0
    %4616 = vmatprep.subr.bf16.mxu0 %v4021
    %4617 = vmatpush1.bf16.msra.mxu0 %v4020
    %4618 = vmatprep.subr.bf16.mxu0 %v4029
    %4619 = vmatpush1.bf16.msra.mxu0 %v4028
    %4620 = vmatprep.subr.bf16.mxu0 %v4037
    %4621 = vmatpush1.bf16.msra.mxu0 %v4036
    %4622 = vmatprep.subr.bf16.mxu0 %v4045
    %4623 = vmatpush1.bf16.msra.mxu0 %v4044
    %4624 = vmatprep.subr.bf16.mxu0 %v4053
    %4625 = vmatpush1.bf16.msra.mxu0 %v4052
    %4626 = vmatprep.subr.bf16.mxu0 %v4061
    %4627 = vmatpush1.bf16.msra.mxu0 %v4060
    %4628 = vmatprep.subr.bf16.mxu0 %v4069
    %4629 = vmatpush1.bf16.msra.mxu0 %v4068
    %4630 = vmatprep.subr.bf16.mxu0 %v4077
    %4631 = vmatpush1.bf16.msra.mxu0 %v4076
    %4632 = vmatprep.subr.bf16.mxu0 %v4085
    %4633 = vmatpush1.bf16.msra.mxu0 %v4084
    %4634 = vmatprep.subr.bf16.mxu0 %v4093
    %4635 = vmatpush1.bf16.msra.mxu0 %v4092
    %4636 = vmatprep.subr.bf16.mxu0 %v4101
    %4637 = vmatpush1.bf16.msra.mxu0 %v4100
    %4638 = vmatprep.subr.bf16.mxu0 %v4109
    %4639 = vmatpush1.bf16.msra.mxu0 %v4108
    %4640 = vmatprep.subr.bf16.mxu0 %v4117
    %4641 = vmatpush1.bf16.msra.mxu0 %v4116
    %4642 = vmatprep.subr.bf16.mxu0 %v4125
    %4643 = vmatpush1.bf16.msra.mxu0 %v4124
    %4644 = vmatprep.subr.bf16.mxu0 %v4133
    %4645 = vmatpush1.bf16.msra.mxu0 %v4132
    %4646 = vmatprep.subr.bf16.mxu0 %v4141
    %4647 = vmatpush1.bf16.msra.mxu0 %v4140
    %4648 = vmatprep.mubr.bf16.mxu0 %v2949
    %4649 = vmatmul.mubr.bf16.gmra.mrb[0].mxu0 %v2948
    %v4650 = vpop.f32.mrb[0].mxu0
    %v4651 = vadd.f32 %v3221, %v4650
    %v4652 = vpop.f32.mrb[0].mxu0
    %v4653 = vadd.f32 %v3225, %v4652
    %v4654 = vpop.f32.mrb[0].mxu0
    %v4655 = vadd.f32 %v3221, %v4654
    %v4656 = vpop.f32.mrb[0].mxu0
    %v4657 = vadd.f32 %v3225, %v4656
    %4658 = vdwg.mxu0
    %4659 = vmatprep.subr.bf16.mxu0 %v4149
    %4660 = vmatpush1.bf16.msra.mxu0 %v4148
    %4661 = vmatprep.subr.bf16.mxu0 %v4157
    %4662 = vmatpush1.bf16.msra.mxu0 %v4156
    %4663 = vmatprep.subr.bf16.mxu0 %v4165
    %4664 = vmatpush1.bf16.msra.mxu0 %v4164
    %4665 = vmatprep.subr.bf16.mxu0 %v4173
    %4666 = vmatpush1.bf16.msra.mxu0 %v4172
    %4667 = vmatprep.subr.bf16.mxu0 %v4181
    %4668 = vmatpush1.bf16.msra.mxu0 %v4180
    %4669 = vmatprep.subr.bf16.mxu0 %v4189
    %4670 = vmatpush1.bf16.msra.mxu0 %v4188
    %4671 = vmatprep.subr.bf16.mxu0 %v4197
    %4672 = vmatpush1.bf16.msra.mxu0 %v4196
    %4673 = vmatprep.subr.bf16.mxu0 %v4205
    %4674 = vmatpush1.bf16.msra.mxu0 %v4204
    %4675 = vmatprep.subr.bf16.mxu0 %v4213
    %4676 = vmatpush1.bf16.msra.mxu0 %v4212
    %4677 = vmatprep.subr.bf16.mxu0 %v4221
    %4678 = vmatpush1.bf16.msra.mxu0 %v4220
    %4679 = vmatprep.subr.bf16.mxu0 %v4229
    %4680 = vmatpush1.bf16.msra.mxu0 %v4228
    %4681 = vmatprep.subr.bf16.mxu0 %v4237
    %4682 = vmatpush1.bf16.msra.mxu0 %v4236
    %4683 = vmatprep.subr.bf16.mxu0 %v4245
    %4684 = vmatpush1.bf16.msra.mxu0 %v4244
    %4685 = vmatprep.subr.bf16.mxu0 %v4253
    %4686 = vmatpush1.bf16.msra.mxu0 %v4252
    %4687 = vmatprep.subr.bf16.mxu0 %v4261
    %4688 = vmatpush1.bf16.msra.mxu0 %v4260
    %4689 = vmatprep.subr.bf16.mxu0 %v4269
    %4690 = vmatpush1.bf16.msra.mxu0 %v4268
    %4691 = vmatprep.mubr.bf16.mxu0 %v2951
    %4692 = vmatmul.mubr.bf16.gmra.mrb[0].mxu0 %v2950
    %v4693 = vpop.f32.mrb[0].mxu0
    %v4694 = vadd.f32 %v4651, %v4693
    %v4695 = vpop.f32.mrb[0].mxu0
    %v4696 = vadd.f32 %v4653, %v4695
    %v4697 = vpop.f32.mrb[0].mxu0
    %v4698 = vadd.f32 %v4655, %v4697
    %v4699 = vpop.f32.mrb[0].mxu0
    %v4700 = vadd.f32 %v4657, %v4699
    %4701 = vdwg.mxu0
    %4702 = vmatprep.subr.bf16.mxu0 %v4023
    %4703 = vmatpush1.bf16.msra.mxu0 %v4022
    %4704 = vmatprep.subr.bf16.mxu0 %v4031
    %4705 = vmatpush1.bf16.msra.mxu0 %v4030
    %4706 = vmatprep.subr.bf16.mxu0 %v4039
    %4707 = vmatpush1.bf16.msra.mxu0 %v4038
    %4708 = vmatprep.subr.bf16.mxu0 %v4047
    %4709 = vmatpush1.bf16.msra.mxu0 %v4046
    %4710 = vmatprep.subr.bf16.mxu0 %v4055
    %4711 = vmatpush1.bf16.msra.mxu0 %v4054
    %4712 = vmatprep.subr.bf16.mxu0 %v4063
    %4713 = vmatpush1.bf16.msra.mxu0 %v4062
    %4714 = vmatprep.subr.bf16.mxu0 %v4071
    %4715 = vmatpush1.bf16.msra.mxu0 %v4070
    %4716 = vmatprep.subr.bf16.mxu0 %v4079
    %4717 = vmatpush1.bf16.msra.mxu0 %v4078
    %4718 = vmatprep.subr.bf16.mxu0 %v4087
    %4719 = vmatpush1.bf16.msra.mxu0 %v4086
    %4720 = vmatprep.subr.bf16.mxu0 %v4095
    %4721 = vmatpush1.bf16.msra.mxu0 %v4094
    %4722 = vmatprep.subr.bf16.mxu0 %v4103
    %4723 = vmatpush1.bf16.msra.mxu0 %v4102
    %4724 = vmatprep.subr.bf16.mxu0 %v4111
    %4725 = vmatpush1.bf16.msra.mxu0 %v4110
    %4726 = vmatprep.subr.bf16.mxu0 %v4119
    %4727 = vmatpush1.bf16.msra.mxu0 %v4118
    %4728 = vmatprep.subr.bf16.mxu0 %v4127
    %4729 = vmatpush1.bf16.msra.mxu0 %v4126
    %4730 = vmatprep.subr.bf16.mxu0 %v4135
    %4731 = vmatpush1.bf16.msra.mxu0 %v4134
    %4732 = vmatprep.subr.bf16.mxu0 %v4143
    %4733 = vmatpush1.bf16.msra.mxu0 %v4142
    %4734 = vmatprep.mubr.bf16.mxu0 %v2949
    %4735 = vmatmul.mubr.bf16.gmra.mrb[0].mxu0 %v2948
    %v4736 = vpop.f32.mrb[0].mxu0
    %v4737 = vadd.f32 %v3229, %v4736
    %v4738 = vpop.f32.mrb[0].mxu0
    %v4739 = vadd.f32 %v3233, %v4738
    %v4740 = vpop.f32.mrb[0].mxu0
    %v4741 = vadd.f32 %v3229, %v4740
    %v4742 = vpop.f32.mrb[0].mxu0
    %v4743 = vadd.f32 %v3233, %v4742
    %4744 = vdwg.mxu0
    %4745 = vmatprep.subr.bf16.mxu0 %v4151
    %4746 = vmatpush1.bf16.msra.mxu0 %v4150
    %4747 = vmatprep.subr.bf16.mxu0 %v4159
    %4748 = vmatpush1.bf16.msra.mxu0 %v4158
    %4749 = vmatprep.subr.bf16.mxu0 %v4167
    %4750 = vmatpush1.bf16.msra.mxu0 %v4166
    %4751 = vmatprep.subr.bf16.mxu0 %v4175
    %4752 = vmatpush1.bf16.msra.mxu0 %v4174
    %4753 = vmatprep.subr.bf16.mxu0 %v4183
    %4754 = vmatpush1.bf16.msra.mxu0 %v4182
    %4755 = vmatprep.subr.bf16.mxu0 %v4191
    %4756 = vmatpush1.bf16.msra.mxu0 %v4190
    %4757 = vmatprep.subr.bf16.mxu0 %v4199
    %4758 = vmatpush1.bf16.msra.mxu0 %v4198
    %4759 = vmatprep.subr.bf16.mxu0 %v4207
    %4760 = vmatpush1.bf16.msra.mxu0 %v4206
    %4761 = vmatprep.subr.bf16.mxu0 %v4215
    %4762 = vmatpush1.bf16.msra.mxu0 %v4214
    %4763 = vmatprep.subr.bf16.mxu0 %v4223
    %4764 = vmatpush1.bf16.msra.mxu0 %v4222
    %4765 = vmatprep.subr.bf16.mxu0 %v4231
    %4766 = vmatpush1.bf16.msra.mxu0 %v4230
    %4767 = vmatprep.subr.bf16.mxu0 %v4239
    %4768 = vmatpush1.bf16.msra.mxu0 %v4238
    %4769 = vmatprep.subr.bf16.mxu0 %v4247
    %4770 = vmatpush1.bf16.msra.mxu0 %v4246
    %4771 = vmatprep.subr.bf16.mxu0 %v4255
    %4772 = vmatpush1.bf16.msra.mxu0 %v4254
    %4773 = vmatprep.subr.bf16.mxu0 %v4263
    %4774 = vmatpush1.bf16.msra.mxu0 %v4262
    %4775 = vmatprep.subr.bf16.mxu0 %v4271
    %4776 = vmatpush1.bf16.msra.mxu0 %v4270
    %4777 = vmatprep.mubr.bf16.mxu0 %v2951
    %4778 = vmatmul.mubr.bf16.gmra.mrb[0].mxu0 %v2950
    %v4779 = vpop.f32.mrb[0].mxu0
    %v4780 = vadd.f32 %v4737, %v4779
    %v4781 = vpop.f32.mrb[0].mxu0
    %v4782 = vadd.f32 %v4739, %v4781
    %v4783 = vpop.f32.mrb[0].mxu0
    %v4784 = vadd.f32 %v4741, %v4783
    %v4785 = vpop.f32.mrb[0].mxu0
    %v4786 = vadd.f32 %v4743, %v4785
    %4787 = vdwg.mxu0
    %4788 = vmatprep.subr.bf16.mxu0 %v4025
    %4789 = vmatpush1.bf16.msra.mxu0 %v4024
    %4790 = vmatprep.subr.bf16.mxu0 %v4033
    %4791 = vmatpush1.bf16.msra.mxu0 %v4032
    %4792 = vmatprep.subr.bf16.mxu0 %v4041
    %4793 = vmatpush1.bf16.msra.mxu0 %v4040
    %4794 = vmatprep.subr.bf16.mxu0 %v4049
    %4795 = vmatpush1.bf16.msra.mxu0 %v4048
    %4796 = vmatprep.subr.bf16.mxu0 %v4057
    %4797 = vmatpush1.bf16.msra.mxu0 %v4056
    %4798 = vmatprep.subr.bf16.mxu0 %v4065
    %4799 = vmatpush1.bf16.msra.mxu0 %v4064
    %4800 = vmatprep.subr.bf16.mxu0 %v4073
    %4801 = vmatpush1.bf16.msra.mxu0 %v4072
    %4802 = vmatprep.subr.bf16.mxu0 %v4081
    %4803 = vmatpush1.bf16.msra.mxu0 %v4080
    %4804 = vmatprep.subr.bf16.mxu0 %v4089
    %4805 = vmatpush1.bf16.msra.mxu0 %v4088
    %4806 = vmatprep.subr.bf16.mxu0 %v4097
    %4807 = vmatpush1.bf16.msra.mxu0 %v4096
    %4808 = vmatprep.subr.bf16.mxu0 %v4105
    %4809 = vmatpush1.bf16.msra.mxu0 %v4104
    %4810 = vmatprep.subr.bf16.mxu0 %v4113
    %4811 = vmatpush1.bf16.msra.mxu0 %v4112
    %4812 = vmatprep.subr.bf16.mxu0 %v4121
    %4813 = vmatpush1.bf16.msra.mxu0 %v4120
    %4814 = vmatprep.subr.bf16.mxu0 %v4129
    %4815 = vmatpush1.bf16.msra.mxu0 %v4128
    %4816 = vmatprep.subr.bf16.mxu0 %v4137
    %4817 = vmatpush1.bf16.msra.mxu0 %v4136
    %4818 = vmatprep.subr.bf16.mxu0 %v4145
    %4819 = vmatpush1.bf16.msra.mxu0 %v4144
    %4820 = vmatprep.mubr.bf16.mxu0 %v2949
    %4821 = vmatmul.mubr.bf16.gmra.mrb[0].mxu0 %v2948
    %v4822 = vpop.f32.mrb[0].mxu0
    %v4823 = vadd.f32 %v3237, %v4822
    %v4824 = vpop.f32.mrb[0].mxu0
    %v4825 = vadd.f32 %v3241, %v4824
    %v4826 = vpop.f32.mrb[0].mxu0
    %v4827 = vadd.f32 %v3237, %v4826
    %v4828 = vpop.f32.mrb[0].mxu0
    %v4829 = vadd.f32 %v3241, %v4828
    %4830 = vdwg.mxu0
    %4831 = vmatprep.subr.bf16.mxu0 %v4153
    %4832 = vmatpush1.bf16.msra.mxu0 %v4152
    %4833 = vmatprep.subr.bf16.mxu0 %v4161
    %4834 = vmatpush1.bf16.msra.mxu0 %v4160
    %4835 = vmatprep.subr.bf16.mxu0 %v4169
    %4836 = vmatpush1.bf16.msra.mxu0 %v4168
    %4837 = vmatprep.subr.bf16.mxu0 %v4177
    %4838 = vmatpush1.bf16.msra.mxu0 %v4176
    %4839 = vmatprep.subr.bf16.mxu0 %v4185
    %4840 = vmatpush1.bf16.msra.mxu0 %v4184
    %4841 = vmatprep.subr.bf16.mxu0 %v4193
    %4842 = vmatpush1.bf16.msra.mxu0 %v4192
    %4843 = vmatprep.subr.bf16.mxu0 %v4201
    %4844 = vmatpush1.bf16.msra.mxu0 %v4200
    %4845 = vmatprep.subr.bf16.mxu0 %v4209
    %4846 = vmatpush1.bf16.msra.mxu0 %v4208
    %4847 = vmatprep.subr.bf16.mxu0 %v4217
    %4848 = vmatpush1.bf16.msra.mxu0 %v4216
    %4849 = vmatprep.subr.bf16.mxu0 %v4225
    %4850 = vmatpush1.bf16.msra.mxu0 %v4224
    %4851 = vmatprep.subr.bf16.mxu0 %v4233
    %4852 = vmatpush1.bf16.msra.mxu0 %v4232
    %4853 = vmatprep.subr.bf16.mxu0 %v4241
    %4854 = vmatpush1.bf16.msra.mxu0 %v4240
    %4855 = vmatprep.subr.bf16.mxu0 %v4249
    %4856 = vmatpush1.bf16.msra.mxu0 %v4248
    %4857 = vmatprep.subr.bf16.mxu0 %v4257
    %4858 = vmatpush1.bf16.msra.mxu0 %v4256
    %4859 = vmatprep.subr.bf16.mxu0 %v4265
    %4860 = vmatpush1.bf16.msra.mxu0 %v4264
    %4861 = vmatprep.subr.bf16.mxu0 %v4273
    %4862 = vmatpush1.bf16.msra.mxu0 %v4272
    %4863 = vmatprep.mubr.bf16.mxu0 %v2951
    %4864 = vmatmul.mubr.bf16.gmra.mrb[0].mxu0 %v2950
    %v4865 = vpop.f32.mrb[0].mxu0
    %v4866 = vadd.f32 %v4823, %v4865
    %v4867 = vpop.f32.mrb[0].mxu0
    %v4868 = vadd.f32 %v4825, %v4867
    %v4869 = vpop.f32.mrb[0].mxu0
    %v4870 = vadd.f32 %v4827, %v4869
    %v4871 = vpop.f32.mrb[0].mxu0
    %v4872 = vadd.f32 %v4829, %v4871
    %4873 = vdwg.mxu0
    %v4874 = vmax.f32 %v4608, 0.0
    %v4875 = vmax.f32 %v4610, 0.0
    %v4876 = vmax.f32 %v4694, 0.0
    %v4877 = vmax.f32 %v4696, 0.0
    %v4878 = vmax.f32 %v4780, 0.0
    %v4879 = vmax.f32 %v4782, 0.0
    %v4880 = vmax.f32 %v4866, 0.0
    %v4881 = vmax.f32 %v4868, 0.0
    %v4882 = vmax.f32 %v4612, 0.0
    %v4883 = vmax.f32 %v4614, 0.0
    %v4884 = vmax.f32 %v4698, 0.0
    %v4885 = vmax.f32 %v4700, 0.0
    %v4886 = vmax.f32 %v4784, 0.0
    %v4887 = vmax.f32 %v4786, 0.0
    %v4888 = vmax.f32 %v4870, 0.0
    %v4889 = vmax.f32 %v4872, 0.0
    %4890 = vst [vmem:[%s13] sm:$0xff] %v4874
    %4891 = vst [vmem:[%s13 + $0x8] sm:$0xff] %v4875
    %4892 = vst [vmem:[%s13 + $0x10] sm:$0xff] %v4876
    %4893 = vst [vmem:[%s13 + $0x18] sm:$0xff] %v4877
    %4894 = vst [vmem:[%s13 + $0x20] sm:$0xff] %v4878
    %4895 = vst [vmem:[%s13 + $0x28] sm:$0xff] %v4879
    %4896 = vst [vmem:[%s13 + $0x30] sm:$0xff] %v4880
    %4897 = vst [vmem:[%s13 + $0x38] sm:$0xff] %v4881
    %4898 = vst [vmem:[%s13 + $0x40] sm:$0xff] %v4882
    %4899 = vst [vmem:[%s13 + $0x48] sm:$0xff] %v4883
    %4900 = vst [vmem:[%s13 + $0x50] sm:$0xff] %v4884
    %4901 = vst [vmem:[%s13 + $0x58] sm:$0xff] %v4885
    %4902 = vst [vmem:[%s13 + $0x60] sm:$0xff] %v4886
    %4903 = vst [vmem:[%s13 + $0x68] sm:$0xff] %v4887
    %4904 = vst [vmem:[%s13 + $0x70] sm:$0xff] %v4888
    %4905 = vst [vmem:[%s13 + $0x78] sm:$0xff] %v4889
    // Predicated region
    $region70: #{autoencoder_forward.1} parent=1 // pred_check
      _
    $region71: #{autoencoder_forward.1} parent=1 // pred_check_branch
      %4907 = sbr.rel (0) target = $region73
    $region72: #{autoencoder_forward.1} parent=1 // pred_region
      _
    $region73: #{autoencoder_forward.1} parent=1 // pred_fallthru
      _
    // Predicated region
    $region74: #{autoencoder_forward.1} parent=1 // pred_check
      _
    $region75: #{autoencoder_forward.1} parent=1 // pred_check_branch
      %4909 = sbr.rel (0) target = $region77
    $region76: #{autoencoder_forward.1} parent=1 // pred_region
      _
    $region77: #{autoencoder_forward.1} parent=1 // pred_fallthru
      _
    %4910 = vsyncpa [#allocation3], 1
    %4911 = vsyncpa [#allocation5], 1
    %4912 = vsyncpa [#allocation8], 1

</llo_original>
